<compile_context>
chip_gen: v7x
topology: tpu7x:2x2x1
jax: 0.10.0
libtpu: 0.0.40
codegen_flags: <defaults>
</compile_context>

<pallas_src>
import functools

import jax
import jax.numpy as jnp
from jax import lax
from jax.experimental import pallas as pl
from jax.experimental.pallas import tpu as pltpu

_LANE = 128


def _make_conv_block_kernel(B, H, W, Cin_p, Cout_p, compute_dtype):
    Hh, Wh = H // 2, W // 2

    def _pad_hw(t):
        """Zero-pad the two spatial dims of (B, h, w, C) by 1 on each side, in registers."""
        b, h, w, c = t.shape
        zr = jnp.zeros((b, 1, w, c), t.dtype)
        t = jnp.concatenate([zr, t, zr], axis=1)           # pad H (untiled leading axis)
        zc = jnp.zeros((b, h + 2, 1, c), t.dtype)
        return jnp.concatenate([zc, t, zc], axis=2)         # pad W (sublane axis)

    def _im2col(t, c):
        """(B, H, W, C) -> (B*H*W, 9*C); tap-major (dy outer, dx inner), channel-minor.

        Only the 3 dx offsets touch the sublane axis (one relayout each); the 3 dy
        offsets are cheap leading-axis slices reused across them. With C a multiple of
        128 the lane concatenation is tile-aligned.
        """
        tp = _pad_hw(t)                                     # (B, H+2, W+2, C)
        xs = [tp[:, :, dx:dx + W, :] for dx in range(3)]    # 3 sublane-shifted copies
        cols = [xs[dx][:, dy:dy + H, :, :].reshape(B * H * W, c)
                for dy in range(3) for dx in range(3)]
        return jnp.concatenate(cols, axis=-1)               # (B*H*W, 9*C)

    def kernel(x_ref, w1_ref, b1_ref, w2_ref, b2_ref, o_ref, pool_ref):
        # ---- conv1 (BN1 scale pre-folded into w1): ONE MXU matmul, K = 9*Cin_p ----
        p1 = _im2col(x_ref[...], Cin_p)                     # already compute_dtype
        y = jnp.dot(p1, w1_ref[...], preferred_element_type=jnp.float32)
        y = jnp.maximum(y + b1_ref[...], 0.0)               # folded BN bias + ReLU (f32)

        # ---- conv2 (BN2 scale pre-folded into w2): ONE MXU matmul, K = 9*Cout_p ----
        p2 = _im2col(y.reshape(B, H, W, Cout_p).astype(compute_dtype), Cout_p)
        y2 = jnp.dot(p2, w2_ref[...], preferred_element_type=jnp.float32)
        y2 = jnp.maximum(y2 + b2_ref[...], 0.0)

        # ---- downsample: MaxPool2d(kernel_size=2, stride=2) ----
        # H-pool in registers (splits only an untiled leading axis).
        y2 = y2.reshape(B, Hh, 2, W, Cout_p)
        pool_ref[...] = jnp.maximum(y2[:, :, 0], y2[:, :, 1])    # (B, Hh, W, Cout_p)
        # W-pool: two sublane-strided reads of the staged row-pooled buffer,
        # then a single lane-dense full-block store.
        even = pool_ref[:, :, pl.ds(0, Wh, stride=2), :]
        odd = pool_ref[:, :, pl.ds(1, Wh, stride=2), :]
        o_ref[...] = jnp.maximum(even, odd)                      # (B, Hh, Wh, Cout_p)

        # dropout: identity (eval mode)

    return kernel


def _vmem_limit_bytes():
    """~75% of the physical VMEM of the current chip, capped at 100 MiB.

    -> ~96 MiB on v5e/v6e (128 MiB physical), ~48 MiB on v7x (64 MiB physical).
    """
    try:
        phys = int(pltpu.get_tpu_info().vmem_capacity_bytes)
    except Exception:
        phys = 64 * 1024 * 1024          # conservative fallback (safe on every gen)
    return min(phys * 3 // 4, 100 * 1024 * 1024)


def _pick_batch_block(n, per_image_bytes, budget_bytes):
    """Largest divisor of n whose working set fits the budget, with >= 2 grid steps
    whenever n >= 2 (so the 'parallel' batch axis can shard across v7x's 2 TCs)."""
    cap = max(1, budget_bytes // max(per_image_bytes, 1))
    if n >= 2:
        cap = min(cap, n // 2)
    cap = max(cap, 1)
    b = min(n, cap)
    while n % b:
        b -= 1
    return b


def conv_block_forward(x_nchw, params, eps=1e-5, compute_dtype=jnp.bfloat16):
    """x_nchw: (N, Cin, H, W) float32 -> (N, Cout, H//2, W//2) float32 (eval mode)."""
    N, Cin, H, W = x_nchw.shape
    Cout = params["w1"].shape[0]
    assert H % 2 == 0 and W % 2 == 0
    Hh, Wh = H // 2, W // 2

    # Pad channel dims to the 128-lane tile (lane-dense matmuls / stores).
    Cin_p = ((Cin + _LANE - 1) // _LANE) * _LANE
    Cout_p = ((Cout + _LANE - 1) // _LANE) * _LANE

    # NCHW -> NHWC (channels on lanes), zero-pad channels, pre-cast to compute dtype.
    x = jnp.transpose(x_nchw, (0, 2, 3, 1))
    x = jnp.pad(x, ((0, 0), (0, 0), (0, 0), (0, Cin_p - Cin))).astype(compute_dtype)

    # Fold conv bias + BatchNorm (inference, running stats): scale goes into the conv
    # weight columns, leaving a single per-channel bias for the kernel.
    def fold(cb, g, bt, m, v):
        s = g / jnp.sqrt(v + eps)
        b = (cb - m) * s + bt
        return s, b

    s1, b1 = fold(params["cb1"], params["g1"], params["bt1"], params["m1"], params["v1"])
    s2, b2 = fold(params["cb2"], params["g2"], params["bt2"], params["m2"], params["v2"])

    def prep_weight(w_oihw, scale, cin_p, cout_p):
        # OIHW -> HWIO, fold BN scale into output columns, zero-pad channel dims to the
        # lane tile, flatten to the tap-major / channel-minor im2col matrix.
        w = jnp.transpose(w_oihw, (2, 3, 1, 0)).astype(jnp.float32) * scale[None, None, None, :]
        kh, kw, ci, co = w.shape
        w = jnp.pad(w, ((0, 0), (0, 0), (0, cin_p - ci), (0, cout_p - co)))
        return w.reshape(kh * kw * cin_p, cout_p).astype(compute_dtype)

    w1m = prep_weight(params["w1"], s1, Cin_p, Cout_p)       # (9*Cin_p, Cout_p)
    w2m = prep_weight(params["w2"], s2, Cout_p, Cout_p)      # (9*Cout_p, Cout_p)
    # Padded bias lanes are zero -> padded output lanes stay exactly 0 through ReLU/pool.
    b1p = jnp.pad(b1, (0, Cout_p - Cout)).reshape(1, Cout_p).astype(jnp.float32)
    b2p = jnp.pad(b2, (0, Cout_p - Cout)).reshape(1, Cout_p).astype(jnp.float32)

    # ---- VMEM-derived batch tile ----
    cb = jnp.dtype(compute_dtype).itemsize
    vmem_limit = _vmem_limit_bytes()
    weight_bytes = 2 * ((9 * Cin_p + 9 * Cout_p) * Cout_p * cb + 2 * Cout_p * 4)
    per_image = (H * W * (2 * Cin_p * cb          # double-buffered input tile
                          + 9 * Cin_p * cb        # conv1 patch matrix
                          + 9 * Cout_p * cb       # conv2 patch matrix
                          + 3 * Cout_p * 4)       # f32 conv outputs / relayout slack
                 + Hh * W * Cout_p * 4             # row-pool staging scratch
                 + 2 * Hh * Wh * Cout_p * 4)       # double-buffered output tile
    budget = max(vmem_limit // 2 - weight_bytes, per_image)
    B_blk = _pick_batch_block(N, per_image, budget)
    kernel = _make_conv_block_kernel(B_blk, H, W, Cin_p, Cout_p, compute_dtype)

    flops = 2 * N * H * W * 9 * Cout_p * (Cin_p + Cout_p)
    bytes_accessed = (N * H * W * Cin_p * cb
                      + (9 * Cin_p + 9 * Cout_p) * Cout_p * cb + 2 * Cout_p * 4
                      + N * Hh * Wh * Cout_p * 4)

    out_nhwc = pl.pallas_call(
        kernel,
        out_shape=jax.ShapeDtypeStruct((N, Hh, Wh, Cout_p), jnp.float32),
        grid_spec=pltpu.PrefetchScalarGridSpec(
            num_scalar_prefetch=0,
            grid=(N // B_blk,),
            in_specs=[
                pl.BlockSpec((B_blk, H, W, Cin_p), lambda n: (n, 0, 0, 0)),
                pl.BlockSpec((9 * Cin_p, Cout_p), lambda n: (0, 0)),
                pl.BlockSpec((1, Cout_p), lambda n: (0, 0)),
                pl.BlockSpec((9 * Cout_p, Cout_p), lambda n: (0, 0)),
                pl.BlockSpec((1, Cout_p), lambda n: (0, 0)),
            ],
            out_specs=pl.BlockSpec((B_blk, Hh, Wh, Cout_p), lambda n: (n, 0, 0, 0)),
            scratch_shapes=[
                pltpu.VMEM((B_blk, Hh, W, Cout_p), jnp.float32),  # row-pooled staging
            ],
        ),
        compiler_params=pltpu.CompilerParams(
            dimension_semantics=("parallel",),
            vmem_limit_bytes=vmem_limit,
        ),
        cost_estimate=pl.CostEstimate(flops=flops, transcendentals=0,
                                      bytes_accessed=bytes_accessed),
    )(x, w1m, b1p, w2m, b2p)

    # Slice away the padded channel lanes, NHWC -> NCHW.
    return jnp.transpose(out_nhwc[..., :Cout], (0, 3, 1, 2))


def reference_forward(x_nchw, params, eps=1e-5):
    """Pure-JAX reference matching PyTorch ConvBlock (eval mode)."""
    def conv(x, w, b):
        y = lax.conv_general_dilated(x, w, (1, 1), "SAME",
                                     dimension_numbers=("NCHW", "OIHW", "NCHW"))
        return y + b[None, :, None, None]

    def bn(x, g, bt, m, v):
        return ((x - m[None, :, None, None]) /
                jnp.sqrt(v[None, :, None, None] + eps)
                * g[None, :, None, None] + bt[None, :, None, None])

    y = jnp.maximum(bn(conv(x_nchw, params["w1"], params["cb1"]),
                       params["g1"], params["bt1"], params["m1"], params["v1"]), 0.0)
    y = jnp.maximum(bn(conv(y, params["w2"], params["cb2"]),
                       params["g2"], params["bt2"], params["m2"], params["v2"]), 0.0)
    N, C, H, W = y.shape
    y = y.reshape(N, C, H // 2, 2, W // 2, 2).max(axis=(3, 5))   # MaxPool2d(2)
    return y


def make_params(key, in_channels, out_channels):
    ks = jax.random.split(key, 12)
    f32 = jnp.float32
    return {
        "w1": 0.2 * jax.random.normal(ks[0], (out_channels, in_channels, 3, 3), f32),
        "cb1": 0.1 * jax.random.normal(ks[1], (out_channels,), f32),
        "g1": 1.0 + 0.1 * jax.random.normal(ks[2], (out_channels,), f32),
        "bt1": 0.1 * jax.random.normal(ks[3], (out_channels,), f32),
        "m1": 0.1 * jax.random.normal(ks[4], (out_channels,), f32),
        "v1": 1.0 + 0.2 * jax.random.uniform(ks[5], (out_channels,), f32),
        "w2": 0.2 * jax.random.normal(ks[6], (out_channels, out_channels, 3, 3), f32),
        "cb2": 0.1 * jax.random.normal(ks[7], (out_channels,), f32),
        "g2": 1.0 + 0.1 * jax.random.normal(ks[8], (out_channels,), f32),
        "bt2": 0.1 * jax.random.normal(ks[9], (out_channels,), f32),
        "m2": 0.1 * jax.random.normal(ks[10], (out_channels,), f32),
        "v2": 1.0 + 0.2 * jax.random.uniform(ks[11], (out_channels,), f32),
    }


if __name__ == "__main__":
    key = jax.random.PRNGKey(0)
    k_param, k_x = jax.random.split(key)

    N, Cin, Cout, H, W = 2, 4, 8, 16, 16
    params = make_params(k_param, Cin, Cout)
    x = jax.random.normal(k_x, (N, Cin, H, W), jnp.float32)

    ref = reference_forward(x, params)

    # Strict semantics check: f32 matmul operands must match the reference tightly.
    fwd_f32 = jax.jit(functools.partial(conv_block_forward, params=params,
                                        compute_dtype=jnp.float32))
    out_f32 = jax.block_until_ready(fwd_f32(x))
    assert out_f32.shape == (N, Cout, H // 2, W // 2), out_f32.shape
    assert jnp.allclose(out_f32, ref, atol=1e-3, rtol=1e-3), (
        float(jnp.max(jnp.abs(out_f32 - ref))))

    # Default fast path: bf16 MXU operands with f32 accumulation; tolerance reflects
    # bf16 operand rounding (~2^-9 relative per operand) over two 3x3 convolutions.
    fwd = jax.jit(functools.partial(conv_block_forward, params=params))
    out = jax.block_until_ready(fwd(x))
    assert out.shape == (N, Cout, H // 2, W // 2), out.shape
    assert jnp.allclose(out, ref, atol=1e-1, rtol=1e-1), (
        float(jnp.max(jnp.abs(out - ref))))

    print("KERNEL_OK")
</pallas_src>

<mosaic_0001>
module attributes {stable_mosaic.version = 11 : i64} {
  func.func @kernel(%arg0: i32, %arg1: memref<1x16x16x128xf32, #tpu.memory_space<vmem>>, %arg2: memref<1152x128xf32, #tpu.memory_space<vmem>>, %arg3: memref<1x128xf32, #tpu.memory_space<vmem>>, %arg4: memref<1152x128xf32, #tpu.memory_space<vmem>>, %arg5: memref<1x128xf32, #tpu.memory_space<vmem>>, %arg6: memref<1x8x8x128xf32, #tpu.memory_space<vmem>>, %arg7: memref<1x8x16x128xf32, #tpu.memory_space<vmem>>) attributes {dimension_semantics = [#tpu.dimension_semantics<parallel>], iteration_bounds = array<i64: 2>, scalar_prefetch = 0 : i64, scratch_operands = 1 : i64, tpu.core_type = #tpu.core_type<tc>, window_params = [{transform_indices = @transform_0, window_bounds = array<i64: 1, 16, 16, 128>}, {pipeline_mode = #tpu.pipeline_mode<synchronous>, transform_indices = @transform_1, window_bounds = array<i64: 1152, 128>}, {pipeline_mode = #tpu.pipeline_mode<synchronous>, transform_indices = @transform_2, window_bounds = array<i64: 1, 128>}, {pipeline_mode = #tpu.pipeline_mode<synchronous>, transform_indices = @transform_3, window_bounds = array<i64: 1152, 128>}, {pipeline_mode = #tpu.pipeline_mode<synchronous>, transform_indices = @transform_4, window_bounds = array<i64: 1, 128>}, {transform_indices = @transform_5, window_bounds = array<i64: 1, 8, 8, 128>}]} {
    %c0 = arith.constant 0 : index
    %c0_0 = arith.constant 0 : index
    %c0_1 = arith.constant 0 : index
    %c0_2 = arith.constant 0 : index
    %0 = vector.load %arg1[%c0, %c0_0, %c0_1, %c0_2] : memref<1x16x16x128xf32, #tpu.memory_space<vmem>>, vector<1x16x16x128xf32>
    %cst = arith.constant 0.000000e+00 : f32
    %1 = vector.broadcast %cst : f32 to vector<1x1x16x128xf32>
    %2 = tpu.concatenate %1, %0, %1 in 1 : vector<1x1x16x128xf32>, vector<1x16x16x128xf32>, vector<1x1x16x128xf32> -> vector<1x18x16x128xf32>
    %cst_3 = arith.constant 0.000000e+00 : f32
    %3 = vector.broadcast %cst_3 : f32 to vector<1x18x1x128xf32>
    %4 = tpu.concatenate %3, %2, %3 in 2 : vector<1x18x1x128xf32>, vector<1x18x16x128xf32>, vector<1x18x1x128xf32> -> vector<1x18x18x128xf32>
    %5 = vector.extract_strided_slice %4 {offsets = [0, 0, 0, 0], sizes = [1, 18, 16, 128], strides = [1, 1, 1, 1]} : vector<1x18x18x128xf32> to vector<1x18x16x128xf32>
    %6 = vector.extract_strided_slice %4 {offsets = [0, 0, 1, 0], sizes = [1, 18, 16, 128], strides = [1, 1, 1, 1]} : vector<1x18x18x128xf32> to vector<1x18x16x128xf32>
    %7 = vector.extract_strided_slice %4 {offsets = [0, 0, 2, 0], sizes = [1, 18, 16, 128], strides = [1, 1, 1, 1]} : vector<1x18x18x128xf32> to vector<1x18x16x128xf32>
    %8 = vector.extract_strided_slice %5 {offsets = [0, 0, 0, 0], sizes = [1, 16, 16, 128], strides = [1, 1, 1, 1]} : vector<1x18x16x128xf32> to vector<1x16x16x128xf32>
    %9 = vector.shape_cast %8 : vector<1x16x16x128xf32> to vector<256x128xf32>
    %10 = vector.extract_strided_slice %6 {offsets = [0, 0, 0, 0], sizes = [1, 16, 16, 128], strides = [1, 1, 1, 1]} : vector<1x18x16x128xf32> to vector<1x16x16x128xf32>
    %11 = vector.shape_cast %10 : vector<1x16x16x128xf32> to vector<256x128xf32>
    %12 = vector.extract_strided_slice %7 {offsets = [0, 0, 0, 0], sizes = [1, 16, 16, 128], strides = [1, 1, 1, 1]} : vector<1x18x16x128xf32> to vector<1x16x16x128xf32>
    %13 = vector.shape_cast %12 : vector<1x16x16x128xf32> to vector<256x128xf32>
    %14 = vector.extract_strided_slice %5 {offsets = [0, 1, 0, 0], sizes = [1, 16, 16, 128], strides = [1, 1, 1, 1]} : vector<1x18x16x128xf32> to vector<1x16x16x128xf32>
    %15 = vector.shape_cast %14 : vector<1x16x16x128xf32> to vector<256x128xf32>
    %16 = vector.extract_strided_slice %6 {offsets = [0, 1, 0, 0], sizes = [1, 16, 16, 128], strides = [1, 1, 1, 1]} : vector<1x18x16x128xf32> to vector<1x16x16x128xf32>
    %17 = vector.shape_cast %16 : vector<1x16x16x128xf32> to vector<256x128xf32>
    %18 = vector.extract_strided_slice %7 {offsets = [0, 1, 0, 0], sizes = [1, 16, 16, 128], strides = [1, 1, 1, 1]} : vector<1x18x16x128xf32> to vector<1x16x16x128xf32>
    %19 = vector.shape_cast %18 : vector<1x16x16x128xf32> to vector<256x128xf32>
    %20 = vector.extract_strided_slice %5 {offsets = [0, 2, 0, 0], sizes = [1, 16, 16, 128], strides = [1, 1, 1, 1]} : vector<1x18x16x128xf32> to vector<1x16x16x128xf32>
    %21 = vector.shape_cast %20 : vector<1x16x16x128xf32> to vector<256x128xf32>
    %22 = vector.extract_strided_slice %6 {offsets = [0, 2, 0, 0], sizes = [1, 16, 16, 128], strides = [1, 1, 1, 1]} : vector<1x18x16x128xf32> to vector<1x16x16x128xf32>
    %23 = vector.shape_cast %22 : vector<1x16x16x128xf32> to vector<256x128xf32>
    %24 = vector.extract_strided_slice %7 {offsets = [0, 2, 0, 0], sizes = [1, 16, 16, 128], strides = [1, 1, 1, 1]} : vector<1x18x16x128xf32> to vector<1x16x16x128xf32>
    %25 = vector.shape_cast %24 : vector<1x16x16x128xf32> to vector<256x128xf32>
    %26 = tpu.concatenate %9, %11, %13, %15, %17, %19, %21, %23, %25 in 1 : vector<256x128xf32>, vector<256x128xf32>, vector<256x128xf32>, vector<256x128xf32>, vector<256x128xf32>, vector<256x128xf32>, vector<256x128xf32>, vector<256x128xf32>, vector<256x128xf32> -> vector<256x1152xf32>
    %c0_4 = arith.constant 0 : index
    %c0_5 = arith.constant 0 : index
    %27 = vector.load %arg2[%c0_4, %c0_5] : memref<1152x128xf32, #tpu.memory_space<vmem>>, vector<1152x128xf32>
    %cst_6 = arith.constant dense<0.000000e+00> : vector<256x128xf32>
    %28 = tpu.matmul %26, %27, %cst_6 {dimension_numbers = #tpu.dot_dimension_numbers<[1], [0], [0], [1], [0, 0, 1, 1], [], []>} : vector<256x1152xf32>, vector<1152x128xf32>, vector<256x128xf32> -> vector<256x128xf32>
    %c0_7 = arith.constant 0 : index
    %c0_8 = arith.constant 0 : index
    %29 = vector.load %arg3[%c0_7, %c0_8] : memref<1x128xf32, #tpu.memory_space<vmem>>, vector<1x128xf32>
    %30 = vector.broadcast %29 : vector<1x128xf32> to vector<256x128xf32>
    %31 = arith.addf %28, %30 : vector<256x128xf32>
    %cst_9 = arith.constant 0.000000e+00 : f32
    %32 = vector.broadcast %cst_9 : f32 to vector<256x128xf32>
    %33 = arith.maximumf %31, %32 : vector<256x128xf32>
    %34 = vector.shape_cast %33 : vector<256x128xf32> to vector<1x16x16x128xf32>
    %cst_10 = arith.constant 0.000000e+00 : f32
    %35 = vector.broadcast %cst_10 : f32 to vector<1x1x16x128xf32>
    %36 = tpu.concatenate %35, %34, %35 in 1 : vector<1x1x16x128xf32>, vector<1x16x16x128xf32>, vector<1x1x16x128xf32> -> vector<1x18x16x128xf32>
    %cst_11 = arith.constant 0.000000e+00 : f32
    %37 = vector.broadcast %cst_11 : f32 to vector<1x18x1x128xf32>
    %38 = tpu.concatenate %37, %36, %37 in 2 : vector<1x18x1x128xf32>, vector<1x18x16x128xf32>, vector<1x18x1x128xf32> -> vector<1x18x18x128xf32>
    %39 = vector.extract_strided_slice %38 {offsets = [0, 0, 0, 0], sizes = [1, 18, 16, 128], strides = [1, 1, 1, 1]} : vector<1x18x18x128xf32> to vector<1x18x16x128xf32>
    %40 = vector.extract_strided_slice %38 {offsets = [0, 0, 1, 0], sizes = [1, 18, 16, 128], strides = [1, 1, 1, 1]} : vector<1x18x18x128xf32> to vector<1x18x16x128xf32>
    %41 = vector.extract_strided_slice %38 {offsets = [0, 0, 2, 0], sizes = [1, 18, 16, 128], strides = [1, 1, 1, 1]} : vector<1x18x18x128xf32> to vector<1x18x16x128xf32>
    %42 = vector.extract_strided_slice %39 {offsets = [0, 0, 0, 0], sizes = [1, 16, 16, 128], strides = [1, 1, 1, 1]} : vector<1x18x16x128xf32> to vector<1x16x16x128xf32>
    %43 = vector.shape_cast %42 : vector<1x16x16x128xf32> to vector<256x128xf32>
    %44 = vector.extract_strided_slice %40 {offsets = [0, 0, 0, 0], sizes = [1, 16, 16, 128], strides = [1, 1, 1, 1]} : vector<1x18x16x128xf32> to vector<1x16x16x128xf32>
    %45 = vector.shape_cast %44 : vector<1x16x16x128xf32> to vector<256x128xf32>
    %46 = vector.extract_strided_slice %41 {offsets = [0, 0, 0, 0], sizes = [1, 16, 16, 128], strides = [1, 1, 1, 1]} : vector<1x18x16x128xf32> to vector<1x16x16x128xf32>
    %47 = vector.shape_cast %46 : vector<1x16x16x128xf32> to vector<256x128xf32>
    %48 = vector.extract_strided_slice %39 {offsets = [0, 1, 0, 0], sizes = [1, 16, 16, 128], strides = [1, 1, 1, 1]} : vector<1x18x16x128xf32> to vector<1x16x16x128xf32>
    %49 = vector.shape_cast %48 : vector<1x16x16x128xf32> to vector<256x128xf32>
    %50 = vector.extract_strided_slice %40 {offsets = [0, 1, 0, 0], sizes = [1, 16, 16, 128], strides = [1, 1, 1, 1]} : vector<1x18x16x128xf32> to vector<1x16x16x128xf32>
    %51 = vector.shape_cast %50 : vector<1x16x16x128xf32> to vector<256x128xf32>
    %52 = vector.extract_strided_slice %41 {offsets = [0, 1, 0, 0], sizes = [1, 16, 16, 128], strides = [1, 1, 1, 1]} : vector<1x18x16x128xf32> to vector<1x16x16x128xf32>
    %53 = vector.shape_cast %52 : vector<1x16x16x128xf32> to vector<256x128xf32>
    %54 = vector.extract_strided_slice %39 {offsets = [0, 2, 0, 0], sizes = [1, 16, 16, 128], strides = [1, 1, 1, 1]} : vector<1x18x16x128xf32> to vector<1x16x16x128xf32>
    %55 = vector.shape_cast %54 : vector<1x16x16x128xf32> to vector<256x128xf32>
    %56 = vector.extract_strided_slice %40 {offsets = [0, 2, 0, 0], sizes = [1, 16, 16, 128], strides = [1, 1, 1, 1]} : vector<1x18x16x128xf32> to vector<1x16x16x128xf32>
    %57 = vector.shape_cast %56 : vector<1x16x16x128xf32> to vector<256x128xf32>
    %58 = vector.extract_strided_slice %41 {offsets = [0, 2, 0, 0], sizes = [1, 16, 16, 128], strides = [1, 1, 1, 1]} : vector<1x18x16x128xf32> to vector<1x16x16x128xf32>
    %59 = vector.shape_cast %58 : vector<1x16x16x128xf32> to vector<256x128xf32>
    %60 = tpu.concatenate %43, %45, %47, %49, %51, %53, %55, %57, %59 in 1 : vector<256x128xf32>, vector<256x128xf32>, vector<256x128xf32>, vector<256x128xf32>, vector<256x128xf32>, vector<256x128xf32>, vector<256x128xf32>, vector<256x128xf32>, vector<256x128xf32> -> vector<256x1152xf32>
    %c0_12 = arith.constant 0 : index
    %c0_13 = arith.constant 0 : index
    %61 = vector.load %arg4[%c0_12, %c0_13] : memref<1152x128xf32, #tpu.memory_space<vmem>>, vector<1152x128xf32>
    %cst_14 = arith.constant dense<0.000000e+00> : vector<256x128xf32>
    %62 = tpu.matmul %60, %61, %cst_14 {dimension_numbers = #tpu.dot_dimension_numbers<[1], [0], [0], [1], [0, 0, 1, 1], [], []>} : vector<256x1152xf32>, vector<1152x128xf32>, vector<256x128xf32> -> vector<256x128xf32>
    %c0_15 = arith.constant 0 : index
    %c0_16 = arith.constant 0 : index
    %63 = vector.load %arg5[%c0_15, %c0_16] : memref<1x128xf32, #tpu.memory_space<vmem>>, vector<1x128xf32>
    %64 = vector.broadcast %63 : vector<1x128xf32> to vector<256x128xf32>
    %65 = arith.addf %62, %64 : vector<256x128xf32>
    %cst_17 = arith.constant 0.000000e+00 : f32
    %66 = vector.broadcast %cst_17 : f32 to vector<256x128xf32>
    %67 = arith.maximumf %65, %66 : vector<256x128xf32>
    %68 = vector.shape_cast %67 : vector<256x128xf32> to vector<1x8x2x16x128xf32>
    %69 = vector.extract_strided_slice %68 {offsets = [0, 0, 0, 0, 0], sizes = [1, 8, 1, 16, 128], strides = [1, 1, 1, 1, 1]} : vector<1x8x2x16x128xf32> to vector<1x8x1x16x128xf32>
    %70 = vector.shape_cast %69 : vector<1x8x1x16x128xf32> to vector<1x8x16x128xf32>
    %71 = vector.extract_strided_slice %68 {offsets = [0, 0, 1, 0, 0], sizes = [1, 8, 1, 16, 128], strides = [1, 1, 1, 1, 1]} : vector<1x8x2x16x128xf32> to vector<1x8x1x16x128xf32>
    %72 = vector.shape_cast %71 : vector<1x8x1x16x128xf32> to vector<1x8x16x128xf32>
    %73 = arith.maximumf %70, %72 : vector<1x8x16x128xf32>
    %c0_18 = arith.constant 0 : index
    %c0_19 = arith.constant 0 : index
    %c0_20 = arith.constant 0 : index
    %c0_21 = arith.constant 0 : index
    %74 = vector.load %arg7[%c0_18, %c0_19, %c0_20, %c0_21] : memref<1x8x16x128xf32, #tpu.memory_space<vmem>>, vector<1x8x16x128xf32>
    tpu.vector_store %arg7[%c0_18, %c0_19, %c0_20, %c0_21], %73 {strides = array<i32>} : memref<1x8x16x128xf32, #tpu.memory_space<vmem>>, vector<1x8x16x128xf32>,
    %c0_22 = arith.constant 0 : index
    %c0_23 = arith.constant 0 : index
    %c0_24 = arith.constant 0 : index
    %c0_25 = arith.constant 0 : index
    %75 = tpu.strided_load %arg7[%c0_22, %c0_23, %c0_24, %c0_25] {strides = array<i32: 1, 1, 2, 1>} : memref<1x8x16x128xf32, #tpu.memory_space<vmem>>, vector<1x8x8x128xf32>
    %c0_26 = arith.constant 0 : index
    %c0_27 = arith.constant 0 : index
    %c1 = arith.constant 1 : index
    %c0_28 = arith.constant 0 : index
    %76 = tpu.strided_load %arg7[%c0_26, %c0_27, %c1, %c0_28] {strides = array<i32: 1, 1, 2, 1>} : memref<1x8x16x128xf32, #tpu.memory_space<vmem>>, vector<1x8x8x128xf32>
    %77 = arith.maximumf %75, %76 : vector<1x8x8x128xf32>
    %c0_29 = arith.constant 0 : index
    %c0_30 = arith.constant 0 : index
    %c0_31 = arith.constant 0 : index
    %c0_32 = arith.constant 0 : index
    %78 = vector.load %arg6[%c0_29, %c0_30, %c0_31, %c0_32] : memref<1x8x8x128xf32, #tpu.memory_space<vmem>>, vector<1x8x8x128xf32>
    tpu.vector_store %arg6[%c0_29, %c0_30, %c0_31, %c0_32], %77 {strides = array<i32>} : memref<1x8x8x128xf32, #tpu.memory_space<vmem>>, vector<1x8x8x128xf32>,
    return
  }
  func.func @transform_0(%arg0: i32) -> (i32, i32, i32, i32) {
    %c0_i32 = arith.constant 0 : i32
    %c0_i32_0 = arith.constant 0 : i32
    %c0_i32_1 = arith.constant 0 : i32
    %c0_i32_2 = arith.constant 0 : i32
    return %arg0, %c0_i32, %c0_i32_0, %c0_i32_1 : i32, i32, i32, i32
  }
  func.func @transform_1(%arg0: i32) -> (i32, i32) {
    %c0_i32 = arith.constant 0 : i32
    %c0_i32_0 = arith.constant 0 : i32
    %c0_i32_1 = arith.constant 0 : i32
    return %c0_i32, %c0_i32_0 : i32, i32
  }
  func.func @transform_2(%arg0: i32) -> (i32, i32) {
    %c0_i32 = arith.constant 0 : i32
    %c0_i32_0 = arith.constant 0 : i32
    %c0_i32_1 = arith.constant 0 : i32
    return %c0_i32, %c0_i32_0 : i32, i32
  }
  func.func @transform_3(%arg0: i32) -> (i32, i32) {
    %c0_i32 = arith.constant 0 : i32
    %c0_i32_0 = arith.constant 0 : i32
    %c0_i32_1 = arith.constant 0 : i32
    return %c0_i32, %c0_i32_0 : i32, i32
  }
  func.func @transform_4(%arg0: i32) -> (i32, i32) {
    %c0_i32 = arith.constant 0 : i32
    %c0_i32_0 = arith.constant 0 : i32
    %c0_i32_1 = arith.constant 0 : i32
    return %c0_i32, %c0_i32_0 : i32, i32
  }
  func.func @transform_5(%arg0: i32) -> (i32, i32, i32, i32) {
    %c0_i32 = arith.constant 0 : i32
    %c0_i32_0 = arith.constant 0 : i32
    %c0_i32_1 = arith.constant 0 : i32
    %c0_i32_2 = arith.constant 0 : i32
    return %arg0, %c0_i32, %c0_i32_0, %c0_i32_1 : i32, i32, i32, i32
  }
}

</mosaic_0001>

<llo_original>
// kernel: conv_block_forward.1
$region0: #{conv_block_forward.1}
  #allocation0 [shape = 'u32[]', space=smem, size = 0x4, offset = 0x4, fixed_abs, tag = 'smem constant byte address 0x4 - core index']
  #allocation1 [shape = 'u32[144,128]{1,0:T(1,128)}', space=vmem, size = 0x12000, scoped, tag = 'internal scratch']
  #allocation2 [shape = 'f32[1,8,16,128]{3,2,1,0:T(8,128)}', space=vmem, size = 0x10000, scoped, tag = 'scratch operand']
  %s0 = inlined_call_operand.vmem [shape: f32[2,16,16,128], index: 0, kind: input, shape index: {}]
  %s1 = inlined_call_operand.hbm [shape: f32[1152,128], index: 1, kind: input, shape index: {}]
  %s2 = inlined_call_operand.vmem [shape: f32[1,128], index: 2, kind: input, shape index: {}]
  %s3 = inlined_call_operand.vmem [shape: f32[1152,128], index: 3, kind: input, shape index: {}]
  %s4 = inlined_call_operand.vmem [shape: f32[1,128], index: 4, kind: input, shape index: {}]
  %s5 = inlined_call_operand.vmem [shape: f32[2,8,8,128], index: 5, kind: output, shape index: {}]
  %s6 = sld [smem:[#allocation0]]
  $region57: #{conv_block_forward.1} parent=0
    _
  %s8 = ssub.s32 1, %s6
  %s9 = scalar_select 0, %s8, %s6
  $region1: #{conv_block_forward.1} parent=0
    #allocation3 [shape = 'u8[589824]{0}', space=vmem, size = 0x90000, scoped, tag = 'input window, operand 1, single buffered']
    #allocation4 [shape = 's32[2]{0}', space=sflag, size = 0x8, scoped, tag = 'scoped memory for conv_block_forward.1']
    %10 = vsyncpa [#allocation4], 0
    loop: start=0, step=1, limit=4
    $region2: #{conv_block_forward.1} parent=1 // loop_pre_header
      _
    $region3: #{conv_block_forward.1} parent=1 // loop_header
      %s12 = sphi 0, %s16
      %p13 = scmp.ge.s32.totalorder %s12, 4
      %s22 = sphi 0, %s24
      %s25 = sphi 0, %s22
      %s26 = sphi 0, %s25
      %s42 = sphi 0, %s26
      %s46 = sphi 0, %s46
      %s48 = sphi 0, %s46
      %s49 = sphi 0, %s48
      %s63 = sphi 0, %s49
      %s67 = sphi 0, %s67
      %s69 = sphi 0, %s67
      %s70 = sphi 0, %s69
      %s84 = sphi 0, %s70
      %s88 = sphi 0, %s88
      %s90 = sphi 0, %s88
      %s91 = sphi 0, %s90
      %s105 = sphi 0, %s91
      %s109 = sphi 0, %s109
      %s111 = sphi 0, %s109
      %s112 = sphi 0, %s111
      %s126 = sphi 0, %s112
      %s132 = sphi 0, %s134
      %s135 = sphi 0, %s132
      %s136 = sphi 0, %s135
      %s152 = sphi 0, %s136
    $region4: #{conv_block_forward.1} parent=1 // loop_header_branch
      %15 = sbr.rel (%p13) target = $region8
    $region5: #{conv_block_forward.1} parent=1 // loop_body
      %s17 = ssub.s32 %s12, 1
      %s18 = ssub.s32 %s12, 2
      %s19 = sadd.s32 %s12, 1
      %s20 = ssub.s32 %s12, %s19
      %p21 = scmp.eq.s32.totalorder %s20, 0
      %s23 = sadd.s32 %s22, 1
      %s24 = scalar_select %p21, %s22, %s23
      %p27 = pneg %p21
      %p28 = scmp.eq.s32.totalorder %s12, 1
      %p29 = por %p27, %p28
      %p30 = scmp.ne.s32.totalorder %s22, %s25
      %p31 = scmp.eq.s32.totalorder %s12, 0
      %p32 = por %p30, %p31
      %p33 = scmp.ne.s32.totalorder %s22, %s25
      %p34 = scmp.eq.s32.totalorder %s17, 1
      %p35 = por %p33, %p34
      %p36 = scmp.ne.s32.totalorder %s25, %s26
      %p37 = scmp.eq.s32.totalorder %s17, 0
      %p38 = por %p36, %p37
      %p39 = scmp.ne.s32.totalorder %s25, %s26
      %p40 = scmp.eq.s32.totalorder %s18, 1
      %p41 = por %p39, %p40
      %p43 = scmp.ne.s32.totalorder %s26, %s42
      %p44 = scmp.eq.s32.totalorder %s18, 0
      %p45 = por %p43, %p44
      %s47 = sadd.s32 %s46, 1
      %p50 = scmp.eq.s32.totalorder %s12, 1
      %p51 = scmp.ne.s32.totalorder %s46, %s48
      %p52 = scmp.eq.s32.totalorder %s12, 0
      %p53 = por %p51, %p52
      %p54 = scmp.ne.s32.totalorder %s46, %s48
      %p55 = scmp.eq.s32.totalorder %s17, 1
      %p56 = por %p54, %p55
      %p57 = scmp.ne.s32.totalorder %s48, %s49
      %p58 = scmp.eq.s32.totalorder %s17, 0
      %p59 = por %p57, %p58
      %p60 = scmp.ne.s32.totalorder %s48, %s49
      %p61 = scmp.eq.s32.totalorder %s18, 1
      %p62 = por %p60, %p61
      %p64 = scmp.ne.s32.totalorder %s49, %s63
      %p65 = scmp.eq.s32.totalorder %s18, 0
      %p66 = por %p64, %p65
      %s68 = sadd.s32 %s67, 1
      %p71 = scmp.eq.s32.totalorder %s12, 1
      %p72 = scmp.ne.s32.totalorder %s67, %s69
      %p73 = scmp.eq.s32.totalorder %s12, 0
      %p74 = por %p72, %p73
      %p75 = scmp.ne.s32.totalorder %s67, %s69
      %p76 = scmp.eq.s32.totalorder %s17, 1
      %p77 = por %p75, %p76
      %p78 = scmp.ne.s32.totalorder %s69, %s70
      %p79 = scmp.eq.s32.totalorder %s17, 0
      %p80 = por %p78, %p79
      %p81 = scmp.ne.s32.totalorder %s69, %s70
      %p82 = scmp.eq.s32.totalorder %s18, 1
      %p83 = por %p81, %p82
      %p85 = scmp.ne.s32.totalorder %s70, %s84
      %p86 = scmp.eq.s32.totalorder %s18, 0
      %p87 = por %p85, %p86
      %s89 = sadd.s32 %s88, 1
      %p92 = scmp.eq.s32.totalorder %s12, 1
      %p93 = scmp.ne.s32.totalorder %s88, %s90
      %p94 = scmp.eq.s32.totalorder %s12, 0
      %p95 = por %p93, %p94
      %p96 = scmp.ne.s32.totalorder %s88, %s90
      %p97 = scmp.eq.s32.totalorder %s17, 1
      %p98 = por %p96, %p97
      %p99 = scmp.ne.s32.totalorder %s90, %s91
      %p100 = scmp.eq.s32.totalorder %s17, 0
      %p101 = por %p99, %p100
      %p102 = scmp.ne.s32.totalorder %s90, %s91
      %p103 = scmp.eq.s32.totalorder %s18, 1
      %p104 = por %p102, %p103
      %p106 = scmp.ne.s32.totalorder %s91, %s105
      %p107 = scmp.eq.s32.totalorder %s18, 0
      %p108 = por %p106, %p107
      %s110 = sadd.s32 %s109, 1
      %p113 = scmp.eq.s32.totalorder %s12, 1
      %p114 = scmp.ne.s32.totalorder %s109, %s111
      %p115 = scmp.eq.s32.totalorder %s12, 0
      %p116 = por %p114, %p115
      %p117 = scmp.ne.s32.totalorder %s109, %s111
      %p118 = scmp.eq.s32.totalorder %s17, 1
      %p119 = por %p117, %p118
      %p120 = scmp.ne.s32.totalorder %s111, %s112
      %p121 = scmp.eq.s32.totalorder %s17, 0
      %p122 = por %p120, %p121
      %p123 = scmp.ne.s32.totalorder %s111, %s112
      %p124 = scmp.eq.s32.totalorder %s18, 1
      %p125 = por %p123, %p124
      %p127 = scmp.ne.s32.totalorder %s112, %s126
      %p128 = scmp.eq.s32.totalorder %s18, 0
      %p129 = por %p127, %p128
      %s130 = ssub.s32 %s12, %s19
      %p131 = scmp.eq.s32.totalorder %s130, 0
      %s133 = sadd.s32 %s132, 1
      %s134 = scalar_select %p131, %s132, %s133
      %p137 = pneg %p131
      %p138 = scmp.eq.s32.totalorder %s12, 1
      %p139 = por %p137, %p138
      %p140 = scmp.ne.s32.totalorder %s132, %s135
      %p141 = scmp.eq.s32.totalorder %s12, 0
      %p142 = por %p140, %p141
      %p143 = scmp.ne.s32.totalorder %s132, %s135
      %p144 = scmp.eq.s32.totalorder %s17, 1
      %p145 = por %p143, %p144
      %p146 = scmp.ne.s32.totalorder %s135, %s136
      %p147 = scmp.eq.s32.totalorder %s17, 0
      %p148 = por %p146, %p147
      %p149 = scmp.ne.s32.totalorder %s135, %s136
      %p150 = scmp.eq.s32.totalorder %s18, 1
      %p151 = por %p149, %p150
      %p153 = scmp.ne.s32.totalorder %s136, %s152
      %p154 = scmp.eq.s32.totalorder %s18, 0
      %p155 = por %p153, %p154
      %p156 = scmp.le.s32.totalorder 1, %s12
      %p157 = scmp.lt.s32.totalorder %s12, 3
      %p158 = pnand %p156, %p157
      %p159 = pneg %p158
      // Predicated region
      $region9: #{conv_block_forward.1} parent=5 // pred_check
        _
      $region10: #{conv_block_forward.1} parent=5 // pred_check_branch
        %161 = sbr.rel (%p158) target = $region12
      $region11: #{conv_block_forward.1} parent=5 // pred_region
        %s162 = ssub.s32 %s12, 1
        // Predicated region
        $region13: #{conv_block_forward.1} parent=11 // pred_check
          %p163 = pneg %p59
        $region14: #{conv_block_forward.1} parent=11 // pred_check_branch
          %165 = sbr.rel (%p163) target = $region16
        $region15: #{conv_block_forward.1} parent=11 // pred_region
          %s167 = ssub.s32 18432, 18432
          %168 = vsyncadd [#allocation4], %s167
          %s169 = sshll.u32 [#allocation3], 4
          %s170 = int_to_ptr.vmem [resolvable:$true] %s169
          %175 = dma.hbm_to_vmem [thread:$0]  %s1, 18432, %s170, [#allocation4], 128, 128, 8
        $region16: #{conv_block_forward.1} parent=11 // pred_fallthru
          _
        // Predicated region
        $region17: #{conv_block_forward.1} parent=11 // pred_check
          %p176 = pneg %p80
        $region18: #{conv_block_forward.1} parent=11 // pred_check_branch
          %178 = sbr.rel (%p176) target = $region20
        $region19: #{conv_block_forward.1} parent=11 // pred_region
          _
        $region20: #{conv_block_forward.1} parent=11 // pred_fallthru
          _
        // Predicated region
        $region21: #{conv_block_forward.1} parent=11 // pred_check
          %p179 = pneg %p101
        $region22: #{conv_block_forward.1} parent=11 // pred_check_branch
          %181 = sbr.rel (%p179) target = $region24
        $region23: #{conv_block_forward.1} parent=11 // pred_region
          _
        $region24: #{conv_block_forward.1} parent=11 // pred_fallthru
          _
        // Predicated region
        $region25: #{conv_block_forward.1} parent=11 // pred_check
          %p182 = pneg %p122
        $region26: #{conv_block_forward.1} parent=11 // pred_check_branch
          %184 = sbr.rel (%p182) target = $region28
        $region27: #{conv_block_forward.1} parent=11 // pred_region
          _
        $region28: #{conv_block_forward.1} parent=11 // pred_fallthru
          _
      $region12: #{conv_block_forward.1} parent=5 // pred_fallthru
        _
      %p185 = scmp.lt.s32.totalorder %s12, 2
      // Predicated region
      $region29: #{conv_block_forward.1} parent=5 // pred_check
        %p186 = pneg %p185
      $region30: #{conv_block_forward.1} parent=5 // pred_check_branch
        %188 = sbr.rel (%p186) target = $region32
      $region31: #{conv_block_forward.1} parent=5 // pred_region
        // Predicated region
        $region33: #{conv_block_forward.1} parent=31 // pred_check
          %p189 = pneg %p32
        $region34: #{conv_block_forward.1} parent=31 // pred_check_branch
          %191 = sbr.rel (%p189) target = $region36
        $region35: #{conv_block_forward.1} parent=31 // pred_region
          %p192 = scmp.lt.s32.totalorder %s12, 1
          %s193 = scalar_select %p192, %s12, 1
          %s194 = smul.addr %s193, 32
          %s195 = smul.addr %s194, 8
          %s196 = scalar_lea.vmem %s0, %s195
        $region36: #{conv_block_forward.1} parent=31 // pred_fallthru
          _
      $region32: #{conv_block_forward.1} parent=5 // pred_fallthru
        _
      %p197 = scmp.le.s32.totalorder 1, %s12
      %p198 = scmp.lt.s32.totalorder %s12, 3
      %p199 = pnand %p197, %p198
      %p200 = pneg %p199
      // Predicated region
      $region37: #{conv_block_forward.1} parent=5 // pred_check
        _
      $region38: #{conv_block_forward.1} parent=5 // pred_check_branch
        %202 = sbr.rel (%p199) target = $region40
      $region39: #{conv_block_forward.1} parent=5 // pred_region
        %s203 = ssub.s32 %s12, 1
        // Predicated region
        $region41: #{conv_block_forward.1} parent=39 // pred_check
          %p204 = pneg %p59
        $region42: #{conv_block_forward.1} parent=39 // pred_check_branch
          %206 = sbr.rel (%p204) target = $region44
        $region43: #{conv_block_forward.1} parent=39 // pred_region
          %207 = dma.done [#allocation4], 18432
        $region44: #{conv_block_forward.1} parent=39 // pred_fallthru
          _
        %p208 = scmp.lt.s32.totalorder %s17, 1
        %s209 = scalar_select %p208, %s17, 1
        %s210 = smul.addr %s209, 32
        %s211 = smul.addr %s210, 8
        %s212 = scalar_lea.vmem %s0, %s211
        %p213 = pneg %p38
        %p214 = pneg %p35
        %p215 = pneg %p59
        %p216 = pneg %p56
        %p217 = pneg %p80
        %p218 = pneg %p77
        %p219 = pneg %p101
        %p220 = pneg %p98
        %p221 = pneg %p122
        %p222 = pneg %p119
        %p223 = pneg %p148
        %p224 = pneg %p145
        %p225 = scmp.lt.s32.totalorder %s17, 1
        %s226 = scalar_select %p225, %s17, 1
        %s227 = smul.addr %s226, 8
        %s228 = smul.addr %s227, 8
        %s229 = scalar_lea.vmem %s5, %s228
        %p230 = scmp.lt.s32.totalorder %s17, 1
        %s231 = scalar_select %p230, %s17, 1
        %s232 = smul.addr %s231, 32
        %s233 = smul.addr %s232, 8
        %s234 = scalar_lea.vmem %s0, %s233
        %p235 = scmp.lt.s32.totalorder %s17, 1
        %s236 = scalar_select %p235, %s17, 1
        %s237 = smul.addr %s236, 8
        %s238 = smul.addr %s237, 8
        %s239 = scalar_lea.vmem %s5, %s238
        %v240 = vld [vmem:[%s234] sm:$0xff]
        %v241 = vld [vmem:[%s234 + $0x8] sm:$0xff]
        %v242 = vld [vmem:[%s234 + $0x10] sm:$0xff]
        %v243 = vld [vmem:[%s234 + $0x18] sm:$0xff]
        %v244 = vld [vmem:[%s234 + $0x20] sm:$0xff]
        %v245 = vld [vmem:[%s234 + $0x28] sm:$0xff]
        %v246 = vld [vmem:[%s234 + $0x30] sm:$0xff]
        %v247 = vld [vmem:[%s234 + $0x38] sm:$0xff]
        %v248 = vld [vmem:[%s234 + $0x40] sm:$0xff]
        %v249 = vld [vmem:[%s234 + $0x48] sm:$0xff]
        %v250 = vld [vmem:[%s234 + $0x50] sm:$0xff]
        %v251 = vld [vmem:[%s234 + $0x58] sm:$0xff]
        %v252 = vld [vmem:[%s234 + $0x60] sm:$0xff]
        %v253 = vld [vmem:[%s234 + $0x68] sm:$0xff]
        %v254 = vld [vmem:[%s234 + $0x70] sm:$0xff]
        %v255 = vld [vmem:[%s234 + $0x78] sm:$0xff]
        %v256 = vld [vmem:[%s234 + $0x80] sm:$0xff]
        %v257 = vld [vmem:[%s234 + $0x88] sm:$0xff]
        %v258 = vld [vmem:[%s234 + $0x90] sm:$0xff]
        %v259 = vld [vmem:[%s234 + $0x98] sm:$0xff]
        %v260 = vld [vmem:[%s234 + $0xa0] sm:$0xff]
        %v261 = vld [vmem:[%s234 + $0xa8] sm:$0xff]
        %v262 = vld [vmem:[%s234 + $0xb0] sm:$0xff]
        %v263 = vld [vmem:[%s234 + $0xb8] sm:$0xff]
        %v264 = vld [vmem:[%s234 + $0xc0] sm:$0xff]
        %v265 = vld [vmem:[%s234 + $0xc8] sm:$0xff]
        %v266 = vld [vmem:[%s234 + $0xd0] sm:$0xff]
        %v267 = vld [vmem:[%s234 + $0xd8] sm:$0xff]
        %v268 = vld [vmem:[%s234 + $0xe0] sm:$0xff]
        %v269 = vld [vmem:[%s234 + $0xe8] sm:$0xff]
        %v270 = vld [vmem:[%s234 + $0xf0] sm:$0xff]
        %v271 = vld [vmem:[%s234 + $0xf8] sm:$0xff]
        %vm305 = vcmask 1040384
        %v306 = vrot.slane 0.0, 7
        %v307 = vsel %vm305, %v306, %v306
        %v308 = vrot.slane %v240, 7
        %v309 = vrot.slane %v241, 7
        %v310 = vsel %vm305, %v308, %v309
        %v311 = vrot.slane %v242, 7
        %v312 = vrot.slane %v243, 7
        %v313 = vsel %vm305, %v311, %v312
        %v314 = vrot.slane %v244, 7
        %v315 = vrot.slane %v245, 7
        %v316 = vsel %vm305, %v314, %v315
        %v317 = vrot.slane %v246, 7
        %v318 = vrot.slane %v247, 7
        %v319 = vsel %vm305, %v317, %v318
        %v320 = vrot.slane %v248, 7
        %v321 = vrot.slane %v249, 7
        %v322 = vsel %vm305, %v320, %v321
        %v323 = vrot.slane %v250, 7
        %v324 = vrot.slane %v251, 7
        %v325 = vsel %vm305, %v323, %v324
        %v326 = vrot.slane %v252, 7
        %v327 = vrot.slane %v253, 7
        %v328 = vsel %vm305, %v326, %v327
        %v329 = vrot.slane %v254, 7
        %v330 = vrot.slane %v255, 7
        %v331 = vsel %vm305, %v329, %v330
        %v332 = vrot.slane %v256, 7
        %v333 = vrot.slane %v257, 7
        %v334 = vsel %vm305, %v332, %v333
        %v335 = vrot.slane %v258, 7
        %v336 = vrot.slane %v259, 7
        %v337 = vsel %vm305, %v335, %v336
        %v338 = vrot.slane %v260, 7
        %v339 = vrot.slane %v261, 7
        %v340 = vsel %vm305, %v338, %v339
        %v341 = vrot.slane %v262, 7
        %v342 = vrot.slane %v263, 7
        %v343 = vsel %vm305, %v341, %v342
        %v344 = vrot.slane %v264, 7
        %v345 = vrot.slane %v265, 7
        %v346 = vsel %vm305, %v344, %v345
        %v347 = vrot.slane %v266, 7
        %v348 = vrot.slane %v267, 7
        %v349 = vsel %vm305, %v347, %v348
        %v350 = vrot.slane %v268, 7
        %v351 = vrot.slane %v269, 7
        %v352 = vsel %vm305, %v350, %v351
        %v353 = vrot.slane %v270, 7
        %v354 = vrot.slane %v271, 7
        %v355 = vsel %vm305, %v353, %v354
        %v406 = vsel %vm305, 0.0, %v306
        %v407 = vsel %vm305, 0.0, %v308
        %v408 = vsel %vm305, 0.0, %v311
        %v409 = vsel %vm305, 0.0, %v314
        %v410 = vsel %vm305, 0.0, %v317
        %v411 = vsel %vm305, 0.0, %v320
        %v412 = vsel %vm305, 0.0, %v323
        %v413 = vsel %vm305, 0.0, %v326
        %v414 = vsel %vm305, 0.0, %v329
        %v415 = vsel %vm305, 0.0, %v332
        %v416 = vsel %vm305, 0.0, %v335
        %v417 = vsel %vm305, 0.0, %v338
        %v418 = vsel %vm305, 0.0, %v341
        %v419 = vsel %vm305, 0.0, %v344
        %v420 = vsel %vm305, 0.0, %v347
        %v421 = vsel %vm305, 0.0, %v350
        %v422 = vsel %vm305, 0.0, %v353
        %v423 = vsel %vm305, %v306, 0.0
        %v424 = vsel %vm305, %v309, 0.0
        %v425 = vsel %vm305, %v312, 0.0
        %v426 = vsel %vm305, %v315, 0.0
        %v427 = vsel %vm305, %v318, 0.0
        %v428 = vsel %vm305, %v321, 0.0
        %v429 = vsel %vm305, %v324, 0.0
        %v430 = vsel %vm305, %v327, 0.0
        %v431 = vsel %vm305, %v330, 0.0
        %v432 = vsel %vm305, %v333, 0.0
        %v433 = vsel %vm305, %v336, 0.0
        %v434 = vsel %vm305, %v339, 0.0
        %v435 = vsel %vm305, %v342, 0.0
        %v436 = vsel %vm305, %v345, 0.0
        %v437 = vsel %vm305, %v348, 0.0
        %v438 = vsel %vm305, %v351, 0.0
        %v439 = vsel %vm305, %v354, 0.0
        %vm472 = vcmask 1046528
        %v473 = vrot.slane %v406, 1
        %v474 = vrot.slane %v307, 1
        %v475 = vsel %vm472, %v473, %v474
        %v476 = vrot.slane %v423, 1
        %v477 = vsel %vm472, %v474, %v476
        %v478 = vrot.slane %v407, 1
        %v479 = vrot.slane %v310, 1
        %v480 = vsel %vm472, %v478, %v479
        %v481 = vrot.slane %v424, 1
        %v482 = vsel %vm472, %v479, %v481
        %v483 = vrot.slane %v408, 1
        %v484 = vrot.slane %v313, 1
        %v485 = vsel %vm472, %v483, %v484
        %v486 = vrot.slane %v425, 1
        %v487 = vsel %vm472, %v484, %v486
        %v488 = vrot.slane %v409, 1
        %v489 = vrot.slane %v316, 1
        %v490 = vsel %vm472, %v488, %v489
        %v491 = vrot.slane %v426, 1
        %v492 = vsel %vm472, %v489, %v491
        %v493 = vrot.slane %v410, 1
        %v494 = vrot.slane %v319, 1
        %v495 = vsel %vm472, %v493, %v494
        %v496 = vrot.slane %v427, 1
        %v497 = vsel %vm472, %v494, %v496
        %v498 = vrot.slane %v411, 1
        %v499 = vrot.slane %v322, 1
        %v500 = vsel %vm472, %v498, %v499
        %v501 = vrot.slane %v428, 1
        %v502 = vsel %vm472, %v499, %v501
        %v503 = vrot.slane %v412, 1
        %v504 = vrot.slane %v325, 1
        %v505 = vsel %vm472, %v503, %v504
        %v506 = vrot.slane %v429, 1
        %v507 = vsel %vm472, %v504, %v506
        %v508 = vrot.slane %v413, 1
        %v509 = vrot.slane %v328, 1
        %v510 = vsel %vm472, %v508, %v509
        %v511 = vrot.slane %v430, 1
        %v512 = vsel %vm472, %v509, %v511
        %v513 = vrot.slane %v414, 1
        %v514 = vrot.slane %v331, 1
        %v515 = vsel %vm472, %v513, %v514
        %v516 = vrot.slane %v431, 1
        %v517 = vsel %vm472, %v514, %v516
        %v518 = vrot.slane %v415, 1
        %v519 = vrot.slane %v334, 1
        %v520 = vsel %vm472, %v518, %v519
        %v521 = vrot.slane %v432, 1
        %v522 = vsel %vm472, %v519, %v521
        %v523 = vrot.slane %v416, 1
        %v524 = vrot.slane %v337, 1
        %v525 = vsel %vm472, %v523, %v524
        %v526 = vrot.slane %v433, 1
        %v527 = vsel %vm472, %v524, %v526
        %v528 = vrot.slane %v417, 1
        %v529 = vrot.slane %v340, 1
        %v530 = vsel %vm472, %v528, %v529
        %v531 = vrot.slane %v434, 1
        %v532 = vsel %vm472, %v529, %v531
        %v533 = vrot.slane %v418, 1
        %v534 = vrot.slane %v343, 1
        %v535 = vsel %vm472, %v533, %v534
        %v536 = vrot.slane %v435, 1
        %v537 = vsel %vm472, %v534, %v536
        %v538 = vrot.slane %v419, 1
        %v539 = vrot.slane %v346, 1
        %v540 = vsel %vm472, %v538, %v539
        %v541 = vrot.slane %v436, 1
        %v542 = vsel %vm472, %v539, %v541
        %v543 = vrot.slane %v420, 1
        %v544 = vrot.slane %v349, 1
        %v545 = vsel %vm472, %v543, %v544
        %v546 = vrot.slane %v437, 1
        %v547 = vsel %vm472, %v544, %v546
        %v548 = vrot.slane %v421, 1
        %v549 = vrot.slane %v352, 1
        %v550 = vsel %vm472, %v548, %v549
        %v551 = vrot.slane %v438, 1
        %v552 = vsel %vm472, %v549, %v551
        %vm585 = vcmask 1045504
        %v586 = vrot.slane %v406, 2
        %v587 = vrot.slane %v307, 2
        %v588 = vsel %vm585, %v586, %v587
        %v589 = vrot.slane %v423, 2
        %v590 = vsel %vm585, %v587, %v589
        %v591 = vrot.slane %v407, 2
        %v592 = vrot.slane %v310, 2
        %v593 = vsel %vm585, %v591, %v592
        %v594 = vrot.slane %v424, 2
        %v595 = vsel %vm585, %v592, %v594
        %v596 = vrot.slane %v408, 2
        %v597 = vrot.slane %v313, 2
        %v598 = vsel %vm585, %v596, %v597
        %v599 = vrot.slane %v425, 2
        %v600 = vsel %vm585, %v597, %v599
        %v601 = vrot.slane %v409, 2
        %v602 = vrot.slane %v316, 2
        %v603 = vsel %vm585, %v601, %v602
        %v604 = vrot.slane %v426, 2
        %v605 = vsel %vm585, %v602, %v604
        %v606 = vrot.slane %v410, 2
        %v607 = vrot.slane %v319, 2
        %v608 = vsel %vm585, %v606, %v607
        %v609 = vrot.slane %v427, 2
        %v610 = vsel %vm585, %v607, %v609
        %v611 = vrot.slane %v411, 2
        %v612 = vrot.slane %v322, 2
        %v613 = vsel %vm585, %v611, %v612
        %v614 = vrot.slane %v428, 2
        %v615 = vsel %vm585, %v612, %v614
        %v616 = vrot.slane %v412, 2
        %v617 = vrot.slane %v325, 2
        %v618 = vsel %vm585, %v616, %v617
        %v619 = vrot.slane %v429, 2
        %v620 = vsel %vm585, %v617, %v619
        %v621 = vrot.slane %v413, 2
        %v622 = vrot.slane %v328, 2
        %v623 = vsel %vm585, %v621, %v622
        %v624 = vrot.slane %v430, 2
        %v625 = vsel %vm585, %v622, %v624
        %v626 = vrot.slane %v414, 2
        %v627 = vrot.slane %v331, 2
        %v628 = vsel %vm585, %v626, %v627
        %v629 = vrot.slane %v431, 2
        %v630 = vsel %vm585, %v627, %v629
        %v631 = vrot.slane %v415, 2
        %v632 = vrot.slane %v334, 2
        %v633 = vsel %vm585, %v631, %v632
        %v634 = vrot.slane %v432, 2
        %v635 = vsel %vm585, %v632, %v634
        %v636 = vrot.slane %v416, 2
        %v637 = vrot.slane %v337, 2
        %v638 = vsel %vm585, %v636, %v637
        %v639 = vrot.slane %v433, 2
        %v640 = vsel %vm585, %v637, %v639
        %v641 = vrot.slane %v417, 2
        %v642 = vrot.slane %v340, 2
        %v643 = vsel %vm585, %v641, %v642
        %v644 = vrot.slane %v434, 2
        %v645 = vsel %vm585, %v642, %v644
        %v646 = vrot.slane %v418, 2
        %v647 = vrot.slane %v343, 2
        %v648 = vsel %vm585, %v646, %v647
        %v649 = vrot.slane %v435, 2
        %v650 = vsel %vm585, %v647, %v649
        %v651 = vrot.slane %v419, 2
        %v652 = vrot.slane %v346, 2
        %v653 = vsel %vm585, %v651, %v652
        %v654 = vrot.slane %v436, 2
        %v655 = vsel %vm585, %v652, %v654
        %v656 = vrot.slane %v420, 2
        %v657 = vrot.slane %v349, 2
        %v658 = vsel %vm585, %v656, %v657
        %v659 = vrot.slane %v437, 2
        %v660 = vsel %vm585, %v657, %v659
        %v661 = vrot.slane %v421, 2
        %v662 = vrot.slane %v352, 2
        %v663 = vsel %vm585, %v661, %v662
        %v664 = vrot.slane %v438, 2
        %v665 = vsel %vm585, %v662, %v664
        %v700 = vrot.slane %v422, 1
        %v701 = vrot.slane %v355, 1
        %v702 = vsel %vm472, %v700, %v701
        %v703 = vrot.slane %v439, 1
        %v704 = vsel %vm472, %v701, %v703
        %v707 = vrot.slane %v422, 2
        %v708 = vrot.slane %v355, 2
        %v709 = vsel %vm585, %v707, %v708
        %v710 = vrot.slane %v439, 2
        %v711 = vsel %vm585, %v708, %v710
        %v714 = vld [vmem:[#allocation3] sm:$0xff]
        %v715 = vld [vmem:[#allocation3 + $0x8] sm:$0xff]
        %v716 = vld [vmem:[#allocation3 + $0x10] sm:$0xff]
        %v717 = vld [vmem:[#allocation3 + $0x18] sm:$0xff]
        %v718 = vld [vmem:[#allocation3 + $0x20] sm:$0xff]
        %v719 = vld [vmem:[#allocation3 + $0x28] sm:$0xff]
        %v720 = vld [vmem:[#allocation3 + $0x30] sm:$0xff]
        %v721 = vld [vmem:[#allocation3 + $0x38] sm:$0xff]
        %v722 = vld [vmem:[#allocation3 + $0x40] sm:$0xff]
        %v723 = vld [vmem:[#allocation3 + $0x48] sm:$0xff]
        %v724 = vld [vmem:[#allocation3 + $0x50] sm:$0xff]
        %v725 = vld [vmem:[#allocation3 + $0x58] sm:$0xff]
        %v726 = vld [vmem:[#allocation3 + $0x60] sm:$0xff]
        %v727 = vld [vmem:[#allocation3 + $0x68] sm:$0xff]
        %v728 = vld [vmem:[#allocation3 + $0x70] sm:$0xff]
        %v729 = vld [vmem:[#allocation3 + $0x78] sm:$0xff]
        %v730 = vld [vmem:[#allocation3 + $0x80] sm:$0xff]
        %v731 = vld [vmem:[#allocation3 + $0x88] sm:$0xff]
        %v732 = vld [vmem:[#allocation3 + $0x90] sm:$0xff]
        %v733 = vld [vmem:[#allocation3 + $0x98] sm:$0xff]
        %v734 = vld [vmem:[#allocation3 + $0xa0] sm:$0xff]
        %v735 = vld [vmem:[#allocation3 + $0xa8] sm:$0xff]
        %v736 = vld [vmem:[#allocation3 + $0xb0] sm:$0xff]
        %v737 = vld [vmem:[#allocation3 + $0xb8] sm:$0xff]
        %v738 = vld [vmem:[#allocation3 + $0xc0] sm:$0xff]
        %v739 = vld [vmem:[#allocation3 + $0xc8] sm:$0xff]
        %v740 = vld [vmem:[#allocation3 + $0xd0] sm:$0xff]
        %v741 = vld [vmem:[#allocation3 + $0xd8] sm:$0xff]
        %v742 = vld [vmem:[#allocation3 + $0xe0] sm:$0xff]
        %v743 = vld [vmem:[#allocation3 + $0xe8] sm:$0xff]
        %v744 = vld [vmem:[#allocation3 + $0xf0] sm:$0xff]
        %v745 = vld [vmem:[#allocation3 + $0xf8] sm:$0xff]
        %v746 = vld [vmem:[#allocation3 + $0x100] sm:$0xff]
        %v747 = vld [vmem:[#allocation3 + $0x108] sm:$0xff]
        %v748 = vld [vmem:[#allocation3 + $0x110] sm:$0xff]
        %v749 = vld [vmem:[#allocation3 + $0x118] sm:$0xff]
        %v750 = vld [vmem:[#allocation3 + $0x120] sm:$0xff]
        %v751 = vld [vmem:[#allocation3 + $0x128] sm:$0xff]
        %v752 = vld [vmem:[#allocation3 + $0x130] sm:$0xff]
        %v753 = vld [vmem:[#allocation3 + $0x138] sm:$0xff]
        %v754 = vld [vmem:[#allocation3 + $0x140] sm:$0xff]
        %v755 = vld [vmem:[#allocation3 + $0x148] sm:$0xff]
        %v756 = vld [vmem:[#allocation3 + $0x150] sm:$0xff]
        %v757 = vld [vmem:[#allocation3 + $0x158] sm:$0xff]
        %v758 = vld [vmem:[#allocation3 + $0x160] sm:$0xff]
        %v759 = vld [vmem:[#allocation3 + $0x168] sm:$0xff]
        %v760 = vld [vmem:[#allocation3 + $0x170] sm:$0xff]
        %v761 = vld [vmem:[#allocation3 + $0x178] sm:$0xff]
        %v762 = vld [vmem:[#allocation3 + $0x180] sm:$0xff]
        %v763 = vld [vmem:[#allocation3 + $0x188] sm:$0xff]
        %v764 = vld [vmem:[#allocation3 + $0x190] sm:$0xff]
        %v765 = vld [vmem:[#allocation3 + $0x198] sm:$0xff]
        %v766 = vld [vmem:[#allocation3 + $0x1a0] sm:$0xff]
        %v767 = vld [vmem:[#allocation3 + $0x1a8] sm:$0xff]
        %v768 = vld [vmem:[#allocation3 + $0x1b0] sm:$0xff]
        %v769 = vld [vmem:[#allocation3 + $0x1b8] sm:$0xff]
        %v770 = vld [vmem:[#allocation3 + $0x1c0] sm:$0xff]
        %v771 = vld [vmem:[#allocation3 + $0x1c8] sm:$0xff]
        %v772 = vld [vmem:[#allocation3 + $0x1d0] sm:$0xff]
        %v773 = vld [vmem:[#allocation3 + $0x1d8] sm:$0xff]
        %v774 = vld [vmem:[#allocation3 + $0x1e0] sm:$0xff]
        %v775 = vld [vmem:[#allocation3 + $0x1e8] sm:$0xff]
        %v776 = vld [vmem:[#allocation3 + $0x1f0] sm:$0xff]
        %v777 = vld [vmem:[#allocation3 + $0x1f8] sm:$0xff]
        %v778 = vld [vmem:[#allocation3 + $0x200] sm:$0xff]
        %v779 = vld [vmem:[#allocation3 + $0x208] sm:$0xff]
        %v780 = vld [vmem:[#allocation3 + $0x210] sm:$0xff]
        %v781 = vld [vmem:[#allocation3 + $0x218] sm:$0xff]
        %v782 = vld [vmem:[#allocation3 + $0x220] sm:$0xff]
        %v783 = vld [vmem:[#allocation3 + $0x228] sm:$0xff]
        %v784 = vld [vmem:[#allocation3 + $0x230] sm:$0xff]
        %v785 = vld [vmem:[#allocation3 + $0x238] sm:$0xff]
        %v786 = vld [vmem:[#allocation3 + $0x240] sm:$0xff]
        %v787 = vld [vmem:[#allocation3 + $0x248] sm:$0xff]
        %v788 = vld [vmem:[#allocation3 + $0x250] sm:$0xff]
        %v789 = vld [vmem:[#allocation3 + $0x258] sm:$0xff]
        %v790 = vld [vmem:[#allocation3 + $0x260] sm:$0xff]
        %v791 = vld [vmem:[#allocation3 + $0x268] sm:$0xff]
        %v792 = vld [vmem:[#allocation3 + $0x270] sm:$0xff]
        %v793 = vld [vmem:[#allocation3 + $0x278] sm:$0xff]
        %v794 = vld [vmem:[#allocation3 + $0x280] sm:$0xff]
        %v795 = vld [vmem:[#allocation3 + $0x288] sm:$0xff]
        %v796 = vld [vmem:[#allocation3 + $0x290] sm:$0xff]
        %v797 = vld [vmem:[#allocation3 + $0x298] sm:$0xff]
        %v798 = vld [vmem:[#allocation3 + $0x2a0] sm:$0xff]
        %v799 = vld [vmem:[#allocation3 + $0x2a8] sm:$0xff]
        %v800 = vld [vmem:[#allocation3 + $0x2b0] sm:$0xff]
        %v801 = vld [vmem:[#allocation3 + $0x2b8] sm:$0xff]
        %v802 = vld [vmem:[#allocation3 + $0x2c0] sm:$0xff]
        %v803 = vld [vmem:[#allocation3 + $0x2c8] sm:$0xff]
        %v804 = vld [vmem:[#allocation3 + $0x2d0] sm:$0xff]
        %v805 = vld [vmem:[#allocation3 + $0x2d8] sm:$0xff]
        %v806 = vld [vmem:[#allocation3 + $0x2e0] sm:$0xff]
        %v807 = vld [vmem:[#allocation3 + $0x2e8] sm:$0xff]
        %v808 = vld [vmem:[#allocation3 + $0x2f0] sm:$0xff]
        %v809 = vld [vmem:[#allocation3 + $0x2f8] sm:$0xff]
        %v810 = vld [vmem:[#allocation3 + $0x300] sm:$0xff]
        %v811 = vld [vmem:[#allocation3 + $0x308] sm:$0xff]
        %v812 = vld [vmem:[#allocation3 + $0x310] sm:$0xff]
        %v813 = vld [vmem:[#allocation3 + $0x318] sm:$0xff]
        %v814 = vld [vmem:[#allocation3 + $0x320] sm:$0xff]
        %v815 = vld [vmem:[#allocation3 + $0x328] sm:$0xff]
        %v816 = vld [vmem:[#allocation3 + $0x330] sm:$0xff]
        %v817 = vld [vmem:[#allocation3 + $0x338] sm:$0xff]
        %v818 = vld [vmem:[#allocation3 + $0x340] sm:$0xff]
        %v819 = vld [vmem:[#allocation3 + $0x348] sm:$0xff]
        %v820 = vld [vmem:[#allocation3 + $0x350] sm:$0xff]
        %v821 = vld [vmem:[#allocation3 + $0x358] sm:$0xff]
        %v822 = vld [vmem:[#allocation3 + $0x360] sm:$0xff]
        %v823 = vld [vmem:[#allocation3 + $0x368] sm:$0xff]
        %v824 = vld [vmem:[#allocation3 + $0x370] sm:$0xff]
        %v825 = vld [vmem:[#allocation3 + $0x378] sm:$0xff]
        %v826 = vld [vmem:[#allocation3 + $0x380] sm:$0xff]
        %v827 = vld [vmem:[#allocation3 + $0x388] sm:$0xff]
        %v828 = vld [vmem:[#allocation3 + $0x390] sm:$0xff]
        %v829 = vld [vmem:[#allocation3 + $0x398] sm:$0xff]
        %v830 = vld [vmem:[#allocation3 + $0x3a0] sm:$0xff]
        %v831 = vld [vmem:[#allocation3 + $0x3a8] sm:$0xff]
        %v832 = vld [vmem:[#allocation3 + $0x3b0] sm:$0xff]
        %v833 = vld [vmem:[#allocation3 + $0x3b8] sm:$0xff]
        %v834 = vld [vmem:[#allocation3 + $0x3c0] sm:$0xff]
        %v835 = vld [vmem:[#allocation3 + $0x3c8] sm:$0xff]
        %v836 = vld [vmem:[#allocation3 + $0x3d0] sm:$0xff]
        %v837 = vld [vmem:[#allocation3 + $0x3d8] sm:$0xff]
        %v838 = vld [vmem:[#allocation3 + $0x3e0] sm:$0xff]
        %v839 = vld [vmem:[#allocation3 + $0x3e8] sm:$0xff]
        %v840 = vld [vmem:[#allocation3 + $0x3f0] sm:$0xff]
        %v841 = vld [vmem:[#allocation3 + $0x3f8] sm:$0xff]
        %v842 = vld [vmem:[#allocation3 + $0x400] sm:$0xff]
        %v843 = vld [vmem:[#allocation3 + $0x408] sm:$0xff]
        %v844 = vld [vmem:[#allocation3 + $0x410] sm:$0xff]
        %v845 = vld [vmem:[#allocation3 + $0x418] sm:$0xff]
        %v846 = vld [vmem:[#allocation3 + $0x420] sm:$0xff]
        %v847 = vld [vmem:[#allocation3 + $0x428] sm:$0xff]
        %v848 = vld [vmem:[#allocation3 + $0x430] sm:$0xff]
        %v849 = vld [vmem:[#allocation3 + $0x438] sm:$0xff]
        %v850 = vld [vmem:[#allocation3 + $0x440] sm:$0xff]
        %v851 = vld [vmem:[#allocation3 + $0x448] sm:$0xff]
        %v852 = vld [vmem:[#allocation3 + $0x450] sm:$0xff]
        %v853 = vld [vmem:[#allocation3 + $0x458] sm:$0xff]
        %v854 = vld [vmem:[#allocation3 + $0x460] sm:$0xff]
        %v855 = vld [vmem:[#allocation3 + $0x468] sm:$0xff]
        %v856 = vld [vmem:[#allocation3 + $0x470] sm:$0xff]
        %v857 = vld [vmem:[#allocation3 + $0x478] sm:$0xff]
        %v858 = vld [vmem:[%s2] sm:$0x1]
        %v860 = vlaneseq
        %v861 = vshrl.u32 %v860, 7
        %v862 = vsub.s32 0, %v861
        %v863 = vrot.slane %v858, %v862
        %865 = vmatprep.subr.mxu0 0.0
        %866 = vmatpush1.msra.mxu0 %v714
        %867 = vmatprep.subr.mxu0 0.0
        %868 = vmatpush1.msra.mxu0 %v715
        %869 = vmatprep.subr.mxu0 0.0
        %870 = vmatpush1.msra.mxu0 %v716
        %871 = vmatprep.subr.mxu0 0.0
        %872 = vmatpush1.msra.mxu0 %v717
        %873 = vmatprep.subr.mxu0 0.0
        %874 = vmatpush1.msra.mxu0 %v718
        %875 = vmatprep.subr.mxu0 0.0
        %876 = vmatpush1.msra.mxu0 %v719
        %877 = vmatprep.subr.mxu0 0.0
        %878 = vmatpush1.msra.mxu0 %v720
        %879 = vmatprep.subr.mxu0 0.0
        %880 = vmatpush1.msra.mxu0 %v721
        %881 = vmatprep.subr.mxu0 0.0
        %882 = vmatpush1.msra.mxu0 %v722
        %883 = vmatprep.subr.mxu0 0.0
        %884 = vmatpush1.msra.mxu0 %v723
        %885 = vmatprep.subr.mxu0 0.0
        %886 = vmatpush1.msra.mxu0 %v724
        %887 = vmatprep.subr.mxu0 0.0
        %888 = vmatpush1.msra.mxu0 %v725
        %889 = vmatprep.subr.mxu0 0.0
        %890 = vmatpush1.msra.mxu0 %v726
        %891 = vmatprep.subr.mxu0 0.0
        %892 = vmatpush1.msra.mxu0 %v727
        %893 = vmatprep.subr.mxu0 0.0
        %894 = vmatpush1.msra.mxu0 %v728
        %895 = vmatprep.subr.mxu0 0.0
        %896 = vmatpush1.msra.mxu0 %v729
        %897 = vmatprep.subr.mxu0 0.0
        %898 = vmatpush1.msra.mxu0 %v730
        %899 = vmatprep.subr.mxu0 0.0
        %900 = vmatpush1.msra.mxu0 %v731
        %901 = vmatprep.subr.mxu0 0.0
        %902 = vmatpush1.msra.mxu0 %v732
        %903 = vmatprep.subr.mxu0 0.0
        %904 = vmatpush1.msra.mxu0 %v733
        %905 = vmatprep.subr.mxu0 0.0
        %906 = vmatpush1.msra.mxu0 %v734
        %907 = vmatprep.subr.mxu0 0.0
        %908 = vmatpush1.msra.mxu0 %v735
        %909 = vmatprep.subr.mxu0 0.0
        %910 = vmatpush1.msra.mxu0 %v736
        %911 = vmatprep.subr.mxu0 0.0
        %912 = vmatpush1.msra.mxu0 %v737
        %913 = vmatprep.subr.mxu0 0.0
        %914 = vmatpush1.msra.mxu0 %v738
        %915 = vmatprep.subr.mxu0 0.0
        %916 = vmatpush1.msra.mxu0 %v739
        %917 = vmatprep.subr.mxu0 0.0
        %918 = vmatpush1.msra.mxu0 %v740
        %919 = vmatprep.subr.mxu0 0.0
        %920 = vmatpush1.msra.mxu0 %v741
        %921 = vmatprep.subr.mxu0 0.0
        %922 = vmatpush1.msra.mxu0 %v742
        %923 = vmatprep.subr.mxu0 0.0
        %924 = vmatpush1.msra.mxu0 %v743
        %925 = vmatprep.subr.mxu0 0.0
        %926 = vmatpush1.msra.mxu0 %v744
        %927 = vmatprep.subr.mxu0 0.0
        %928 = vmatpush1.msra.mxu0 %v745
        %929 = vmatprep.mubr.f32.mxu0 %v475
        %930 = vmatmul.mubr.f32.gmra.mrb[0].mxu0 %v406
        %v931 = vpop.f32.mrb[0].mxu0
        %v932 = vadd.f32 %v863, %v931
        %v933 = vpop.f32.mrb[0].mxu0
        %934 = vmatprep.mubr.f32.mxu0 %v477
        %935 = vmatmul.mubr.f32.gmra.mrb[0].mxu0 %v307
        %v936 = vpop.f32.mrb[0].mxu0
        %v937 = vadd.f32 %v863, %v936
        %v938 = vpop.f32.mrb[0].mxu0
        %939 = vmatprep.mubr.f32.mxu0 %v480
        %940 = vmatmul.mubr.f32.gmra.mrb[0].mxu0 %v407
        %v941 = vpop.f32.mrb[0].mxu0
        %v942 = vadd.f32 %v863, %v941
        %v943 = vpop.f32.mrb[0].mxu0
        %944 = vmatprep.mubr.f32.mxu0 %v482
        %945 = vmatmul.mubr.f32.gmra.mrb[0].mxu0 %v310
        %v946 = vpop.f32.mrb[0].mxu0
        %v947 = vadd.f32 %v863, %v946
        %v948 = vpop.f32.mrb[0].mxu0
        %949 = vmatprep.mubr.f32.mxu0 %v485
        %950 = vmatmul.mubr.f32.gmra.mrb[0].mxu0 %v408
        %v951 = vpop.f32.mrb[0].mxu0
        %v952 = vadd.f32 %v863, %v951
        %v953 = vpop.f32.mrb[0].mxu0
        %954 = vmatprep.mubr.f32.mxu0 %v487
        %955 = vmatmul.mubr.f32.gmra.mrb[0].mxu0 %v313
        %v956 = vpop.f32.mrb[0].mxu0
        %v957 = vadd.f32 %v863, %v956
        %v958 = vpop.f32.mrb[0].mxu0
        %959 = vmatprep.mubr.f32.mxu0 %v490
        %960 = vmatmul.mubr.f32.gmra.mrb[0].mxu0 %v409
        %v961 = vpop.f32.mrb[0].mxu0
        %v962 = vadd.f32 %v863, %v961
        %v963 = vpop.f32.mrb[0].mxu0
        %964 = vmatprep.mubr.f32.mxu0 %v492
        %965 = vmatmul.mubr.f32.gmra.mrb[0].mxu0 %v316
        %v966 = vpop.f32.mrb[0].mxu0
        %v967 = vadd.f32 %v863, %v966
        %v968 = vpop.f32.mrb[0].mxu0
        %969 = vmatprep.mubr.f32.mxu0 %v495
        %970 = vmatmul.mubr.f32.gmra.mrb[0].mxu0 %v410
        %v971 = vpop.f32.mrb[0].mxu0
        %v972 = vadd.f32 %v863, %v971
        %v973 = vpop.f32.mrb[0].mxu0
        %974 = vmatprep.mubr.f32.mxu0 %v497
        %975 = vmatmul.mubr.f32.gmra.mrb[0].mxu0 %v319
        %v976 = vpop.f32.mrb[0].mxu0
        %v977 = vadd.f32 %v863, %v976
        %v978 = vpop.f32.mrb[0].mxu0
        %979 = vmatprep.mubr.f32.mxu0 %v500
        %980 = vmatmul.mubr.f32.gmra.mrb[0].mxu0 %v411
        %v981 = vpop.f32.mrb[0].mxu0
        %v982 = vadd.f32 %v863, %v981
        %v983 = vpop.f32.mrb[0].mxu0
        %984 = vmatprep.mubr.f32.mxu0 %v502
        %985 = vmatmul.mubr.f32.gmra.mrb[0].mxu0 %v322
        %v986 = vpop.f32.mrb[0].mxu0
        %v987 = vadd.f32 %v863, %v986
        %v988 = vpop.f32.mrb[0].mxu0
        %989 = vmatprep.mubr.f32.mxu0 %v505
        %990 = vmatmul.mubr.f32.gmra.mrb[0].mxu0 %v412
        %v991 = vpop.f32.mrb[0].mxu0
        %v992 = vadd.f32 %v863, %v991
        %v993 = vpop.f32.mrb[0].mxu0
        %994 = vmatprep.mubr.f32.mxu0 %v507
        %995 = vmatmul.mubr.f32.gmra.mrb[0].mxu0 %v325
        %v996 = vpop.f32.mrb[0].mxu0
        %v997 = vadd.f32 %v863, %v996
        %v998 = vpop.f32.mrb[0].mxu0
        %999 = vmatprep.mubr.f32.mxu0 %v510
        %1000 = vmatmul.mubr.f32.gmra.mrb[0].mxu0 %v413
        %v1001 = vpop.f32.mrb[0].mxu0
        %v1002 = vadd.f32 %v863, %v1001
        %v1003 = vpop.f32.mrb[0].mxu0
        %1004 = vmatprep.mubr.f32.mxu0 %v512
        %1005 = vmatmul.mubr.f32.gmra.mrb[0].mxu0 %v328
        %v1006 = vpop.f32.mrb[0].mxu0
        %v1007 = vadd.f32 %v863, %v1006
        %v1008 = vpop.f32.mrb[0].mxu0
        %1009 = vmatprep.mubr.f32.mxu0 %v515
        %1010 = vmatmul.mubr.f32.gmra.mrb[0].mxu0 %v414
        %v1011 = vpop.f32.mrb[0].mxu0
        %v1012 = vadd.f32 %v863, %v1011
        %v1013 = vpop.f32.mrb[0].mxu0
        %1014 = vmatprep.mubr.f32.mxu0 %v517
        %1015 = vmatmul.mubr.f32.gmra.mrb[0].mxu0 %v331
        %v1016 = vpop.f32.mrb[0].mxu0
        %v1017 = vadd.f32 %v863, %v1016
        %v1018 = vpop.f32.mrb[0].mxu0
        %1019 = vmatprep.mubr.f32.mxu0 %v520
        %1020 = vmatmul.mubr.f32.gmra.mrb[0].mxu0 %v415
        %v1021 = vpop.f32.mrb[0].mxu0
        %v1022 = vadd.f32 %v863, %v1021
        %v1023 = vpop.f32.mrb[0].mxu0
        %1024 = vmatprep.mubr.f32.mxu0 %v522
        %1025 = vmatmul.mubr.f32.gmra.mrb[0].mxu0 %v334
        %v1026 = vpop.f32.mrb[0].mxu0
        %v1027 = vadd.f32 %v863, %v1026
        %v1028 = vpop.f32.mrb[0].mxu0
        %1029 = vmatprep.mubr.f32.mxu0 %v525
        %1030 = vmatmul.mubr.f32.gmra.mrb[0].mxu0 %v416
        %v1031 = vpop.f32.mrb[0].mxu0
        %v1032 = vadd.f32 %v863, %v1031
        %v1033 = vpop.f32.mrb[0].mxu0
        %1034 = vmatprep.mubr.f32.mxu0 %v527
        %1035 = vmatmul.mubr.f32.gmra.mrb[0].mxu0 %v337
        %v1036 = vpop.f32.mrb[0].mxu0
        %v1037 = vadd.f32 %v863, %v1036
        %v1038 = vpop.f32.mrb[0].mxu0
        %1039 = vmatprep.mubr.f32.mxu0 %v530
        %1040 = vmatmul.mubr.f32.gmra.mrb[0].mxu0 %v417
        %v1041 = vpop.f32.mrb[0].mxu0
        %v1042 = vadd.f32 %v863, %v1041
        %v1043 = vpop.f32.mrb[0].mxu0
        %1044 = vmatprep.mubr.f32.mxu0 %v532
        %1045 = vmatmul.mubr.f32.gmra.mrb[0].mxu0 %v340
        %v1046 = vpop.f32.mrb[0].mxu0
        %v1047 = vadd.f32 %v863, %v1046
        %v1048 = vpop.f32.mrb[0].mxu0
        %1049 = vmatprep.mubr.f32.mxu0 %v535
        %1050 = vmatmul.mubr.f32.gmra.mrb[0].mxu0 %v418
        %v1051 = vpop.f32.mrb[0].mxu0
        %v1052 = vadd.f32 %v863, %v1051
        %v1053 = vpop.f32.mrb[0].mxu0
        %1054 = vmatprep.mubr.f32.mxu0 %v537
        %1055 = vmatmul.mubr.f32.gmra.mrb[0].mxu0 %v343
        %v1056 = vpop.f32.mrb[0].mxu0
        %v1057 = vadd.f32 %v863, %v1056
        %v1058 = vpop.f32.mrb[0].mxu0
        %1059 = vmatprep.mubr.f32.mxu0 %v540
        %1060 = vmatmul.mubr.f32.gmra.mrb[0].mxu0 %v419
        %v1061 = vpop.f32.mrb[0].mxu0
        %v1062 = vadd.f32 %v863, %v1061
        %v1063 = vpop.f32.mrb[0].mxu0
        %1064 = vmatprep.mubr.f32.mxu0 %v542
        %1065 = vmatmul.mubr.f32.gmra.mrb[0].mxu0 %v346
        %v1066 = vpop.f32.mrb[0].mxu0
        %v1067 = vadd.f32 %v863, %v1066
        %v1068 = vpop.f32.mrb[0].mxu0
        %1069 = vmatprep.mubr.f32.mxu0 %v545
        %1070 = vmatmul.mubr.f32.gmra.mrb[0].mxu0 %v420
        %v1071 = vpop.f32.mrb[0].mxu0
        %v1072 = vadd.f32 %v863, %v1071
        %v1073 = vpop.f32.mrb[0].mxu0
        %1074 = vmatprep.mubr.f32.mxu0 %v547
        %1075 = vmatmul.mubr.f32.gmra.mrb[0].mxu0 %v349
        %v1076 = vpop.f32.mrb[0].mxu0
        %v1077 = vadd.f32 %v863, %v1076
        %v1078 = vpop.f32.mrb[0].mxu0
        %1079 = vmatprep.mubr.f32.mxu0 %v550
        %1080 = vmatmul.mubr.f32.gmra.mrb[0].mxu0 %v421
        %v1081 = vpop.f32.mrb[0].mxu0
        %v1082 = vadd.f32 %v863, %v1081
        %v1083 = vpop.f32.mrb[0].mxu0
        %1084 = vmatprep.mubr.f32.mxu0 %v552
        %1085 = vmatmul.mubr.f32.gmra.mrb[0].mxu0 %v352
        %v1086 = vpop.f32.mrb[0].mxu0
        %v1087 = vadd.f32 %v863, %v1086
        %v1088 = vpop.f32.mrb[0].mxu0
        %1089 = vdwg.mxu0
        %1090 = vmatprep.subr.mxu0 0.0
        %1091 = vmatpush1.msra.mxu0 %v746
        %1092 = vmatprep.subr.mxu0 0.0
        %1093 = vmatpush1.msra.mxu0 %v747
        %1094 = vmatprep.subr.mxu0 0.0
        %1095 = vmatpush1.msra.mxu0 %v748
        %1096 = vmatprep.subr.mxu0 0.0
        %1097 = vmatpush1.msra.mxu0 %v749
        %1098 = vmatprep.subr.mxu0 0.0
        %1099 = vmatpush1.msra.mxu0 %v750
        %1100 = vmatprep.subr.mxu0 0.0
        %1101 = vmatpush1.msra.mxu0 %v751
        %1102 = vmatprep.subr.mxu0 0.0
        %1103 = vmatpush1.msra.mxu0 %v752
        %1104 = vmatprep.subr.mxu0 0.0
        %1105 = vmatpush1.msra.mxu0 %v753
        %1106 = vmatprep.subr.mxu0 0.0
        %1107 = vmatpush1.msra.mxu0 %v754
        %1108 = vmatprep.subr.mxu0 0.0
        %1109 = vmatpush1.msra.mxu0 %v755
        %1110 = vmatprep.subr.mxu0 0.0
        %1111 = vmatpush1.msra.mxu0 %v756
        %1112 = vmatprep.subr.mxu0 0.0
        %1113 = vmatpush1.msra.mxu0 %v757
        %1114 = vmatprep.subr.mxu0 0.0
        %1115 = vmatpush1.msra.mxu0 %v758
        %1116 = vmatprep.subr.mxu0 0.0
        %1117 = vmatpush1.msra.mxu0 %v759
        %1118 = vmatprep.subr.mxu0 0.0
        %1119 = vmatpush1.msra.mxu0 %v760
        %1120 = vmatprep.subr.mxu0 0.0
        %1121 = vmatpush1.msra.mxu0 %v761
        %1122 = vmatprep.subr.mxu0 0.0
        %1123 = vmatpush1.msra.mxu0 %v762
        %1124 = vmatprep.subr.mxu0 0.0
        %1125 = vmatpush1.msra.mxu0 %v763
        %1126 = vmatprep.subr.mxu0 0.0
        %1127 = vmatpush1.msra.mxu0 %v764
        %1128 = vmatprep.subr.mxu0 0.0
        %1129 = vmatpush1.msra.mxu0 %v765
        %1130 = vmatprep.subr.mxu0 0.0
        %1131 = vmatpush1.msra.mxu0 %v766
        %1132 = vmatprep.subr.mxu0 0.0
        %1133 = vmatpush1.msra.mxu0 %v767
        %1134 = vmatprep.subr.mxu0 0.0
        %1135 = vmatpush1.msra.mxu0 %v768
        %1136 = vmatprep.subr.mxu0 0.0
        %1137 = vmatpush1.msra.mxu0 %v769
        %1138 = vmatprep.subr.mxu0 0.0
        %1139 = vmatpush1.msra.mxu0 %v770
        %1140 = vmatprep.subr.mxu0 0.0
        %1141 = vmatpush1.msra.mxu0 %v771
        %1142 = vmatprep.subr.mxu0 0.0
        %1143 = vmatpush1.msra.mxu0 %v772
        %1144 = vmatprep.subr.mxu0 0.0
        %1145 = vmatpush1.msra.mxu0 %v773
        %1146 = vmatprep.subr.mxu0 0.0
        %1147 = vmatpush1.msra.mxu0 %v774
        %1148 = vmatprep.subr.mxu0 0.0
        %1149 = vmatpush1.msra.mxu0 %v775
        %1150 = vmatprep.subr.mxu0 0.0
        %1151 = vmatpush1.msra.mxu0 %v776
        %1152 = vmatprep.subr.mxu0 0.0
        %1153 = vmatpush1.msra.mxu0 %v777
        %1154 = vmatprep.mubr.f32.mxu0 %v407
        %1155 = vmatmul.mubr.f32.gmra.mrb[0].mxu0 %v588
        %v1156 = vpop.f32.mrb[0].mxu0
        %v1157 = vadd.f32 %v932, %v1156
        %v1158 = vpop.f32.mrb[0].mxu0
        %1159 = vmatprep.mubr.f32.mxu0 %v310
        %1160 = vmatmul.mubr.f32.gmra.mrb[0].mxu0 %v590
        %v1161 = vpop.f32.mrb[0].mxu0
        %v1162 = vadd.f32 %v937, %v1161
        %v1163 = vpop.f32.mrb[0].mxu0
        %1164 = vmatprep.mubr.f32.mxu0 %v408
        %1165 = vmatmul.mubr.f32.gmra.mrb[0].mxu0 %v593
        %v1166 = vpop.f32.mrb[0].mxu0
        %v1167 = vadd.f32 %v942, %v1166
        %v1168 = vpop.f32.mrb[0].mxu0
        %1169 = vmatprep.mubr.f32.mxu0 %v313
        %1170 = vmatmul.mubr.f32.gmra.mrb[0].mxu0 %v595
        %v1171 = vpop.f32.mrb[0].mxu0
        %v1172 = vadd.f32 %v947, %v1171
        %v1173 = vpop.f32.mrb[0].mxu0
        %1174 = vmatprep.mubr.f32.mxu0 %v409
        %1175 = vmatmul.mubr.f32.gmra.mrb[0].mxu0 %v598
        %v1176 = vpop.f32.mrb[0].mxu0
        %v1177 = vadd.f32 %v952, %v1176
        %v1178 = vpop.f32.mrb[0].mxu0
        %1179 = vmatprep.mubr.f32.mxu0 %v316
        %1180 = vmatmul.mubr.f32.gmra.mrb[0].mxu0 %v600
        %v1181 = vpop.f32.mrb[0].mxu0
        %v1182 = vadd.f32 %v957, %v1181
        %v1183 = vpop.f32.mrb[0].mxu0
        %1184 = vmatprep.mubr.f32.mxu0 %v410
        %1185 = vmatmul.mubr.f32.gmra.mrb[0].mxu0 %v603
        %v1186 = vpop.f32.mrb[0].mxu0
        %v1187 = vadd.f32 %v962, %v1186
        %v1188 = vpop.f32.mrb[0].mxu0
        %1189 = vmatprep.mubr.f32.mxu0 %v319
        %1190 = vmatmul.mubr.f32.gmra.mrb[0].mxu0 %v605
        %v1191 = vpop.f32.mrb[0].mxu0
        %v1192 = vadd.f32 %v967, %v1191
        %v1193 = vpop.f32.mrb[0].mxu0
        %1194 = vmatprep.mubr.f32.mxu0 %v411
        %1195 = vmatmul.mubr.f32.gmra.mrb[0].mxu0 %v608
        %v1196 = vpop.f32.mrb[0].mxu0
        %v1197 = vadd.f32 %v972, %v1196
        %v1198 = vpop.f32.mrb[0].mxu0
        %1199 = vmatprep.mubr.f32.mxu0 %v322
        %1200 = vmatmul.mubr.f32.gmra.mrb[0].mxu0 %v610
        %v1201 = vpop.f32.mrb[0].mxu0
        %v1202 = vadd.f32 %v977, %v1201
        %v1203 = vpop.f32.mrb[0].mxu0
        %1204 = vmatprep.mubr.f32.mxu0 %v412
        %1205 = vmatmul.mubr.f32.gmra.mrb[0].mxu0 %v613
        %v1206 = vpop.f32.mrb[0].mxu0
        %v1207 = vadd.f32 %v982, %v1206
        %v1208 = vpop.f32.mrb[0].mxu0
        %1209 = vmatprep.mubr.f32.mxu0 %v325
        %1210 = vmatmul.mubr.f32.gmra.mrb[0].mxu0 %v615
        %v1211 = vpop.f32.mrb[0].mxu0
        %v1212 = vadd.f32 %v987, %v1211
        %v1213 = vpop.f32.mrb[0].mxu0
        %1214 = vmatprep.mubr.f32.mxu0 %v413
        %1215 = vmatmul.mubr.f32.gmra.mrb[0].mxu0 %v618
        %v1216 = vpop.f32.mrb[0].mxu0
        %v1217 = vadd.f32 %v992, %v1216
        %v1218 = vpop.f32.mrb[0].mxu0
        %1219 = vmatprep.mubr.f32.mxu0 %v328
        %1220 = vmatmul.mubr.f32.gmra.mrb[0].mxu0 %v620
        %v1221 = vpop.f32.mrb[0].mxu0
        %v1222 = vadd.f32 %v997, %v1221
        %v1223 = vpop.f32.mrb[0].mxu0
        %1224 = vmatprep.mubr.f32.mxu0 %v414
        %1225 = vmatmul.mubr.f32.gmra.mrb[0].mxu0 %v623
        %v1226 = vpop.f32.mrb[0].mxu0
        %v1227 = vadd.f32 %v1002, %v1226
        %v1228 = vpop.f32.mrb[0].mxu0
        %1229 = vmatprep.mubr.f32.mxu0 %v331
        %1230 = vmatmul.mubr.f32.gmra.mrb[0].mxu0 %v625
        %v1231 = vpop.f32.mrb[0].mxu0
        %v1232 = vadd.f32 %v1007, %v1231
        %v1233 = vpop.f32.mrb[0].mxu0
        %1234 = vmatprep.mubr.f32.mxu0 %v415
        %1235 = vmatmul.mubr.f32.gmra.mrb[0].mxu0 %v628
        %v1236 = vpop.f32.mrb[0].mxu0
        %v1237 = vadd.f32 %v1012, %v1236
        %v1238 = vpop.f32.mrb[0].mxu0
        %1239 = vmatprep.mubr.f32.mxu0 %v334
        %1240 = vmatmul.mubr.f32.gmra.mrb[0].mxu0 %v630
        %v1241 = vpop.f32.mrb[0].mxu0
        %v1242 = vadd.f32 %v1017, %v1241
        %v1243 = vpop.f32.mrb[0].mxu0
        %1244 = vmatprep.mubr.f32.mxu0 %v416
        %1245 = vmatmul.mubr.f32.gmra.mrb[0].mxu0 %v633
        %v1246 = vpop.f32.mrb[0].mxu0
        %v1247 = vadd.f32 %v1022, %v1246
        %v1248 = vpop.f32.mrb[0].mxu0
        %1249 = vmatprep.mubr.f32.mxu0 %v337
        %1250 = vmatmul.mubr.f32.gmra.mrb[0].mxu0 %v635
        %v1251 = vpop.f32.mrb[0].mxu0
        %v1252 = vadd.f32 %v1027, %v1251
        %v1253 = vpop.f32.mrb[0].mxu0
        %1254 = vmatprep.mubr.f32.mxu0 %v417
        %1255 = vmatmul.mubr.f32.gmra.mrb[0].mxu0 %v638
        %v1256 = vpop.f32.mrb[0].mxu0
        %v1257 = vadd.f32 %v1032, %v1256
        %v1258 = vpop.f32.mrb[0].mxu0
        %1259 = vmatprep.mubr.f32.mxu0 %v340
        %1260 = vmatmul.mubr.f32.gmra.mrb[0].mxu0 %v640
        %v1261 = vpop.f32.mrb[0].mxu0
        %v1262 = vadd.f32 %v1037, %v1261
        %v1263 = vpop.f32.mrb[0].mxu0
        %1264 = vmatprep.mubr.f32.mxu0 %v418
        %1265 = vmatmul.mubr.f32.gmra.mrb[0].mxu0 %v643
        %v1266 = vpop.f32.mrb[0].mxu0
        %v1267 = vadd.f32 %v1042, %v1266
        %v1268 = vpop.f32.mrb[0].mxu0
        %1269 = vmatprep.mubr.f32.mxu0 %v343
        %1270 = vmatmul.mubr.f32.gmra.mrb[0].mxu0 %v645
        %v1271 = vpop.f32.mrb[0].mxu0
        %v1272 = vadd.f32 %v1047, %v1271
        %v1273 = vpop.f32.mrb[0].mxu0
        %1274 = vmatprep.mubr.f32.mxu0 %v419
        %1275 = vmatmul.mubr.f32.gmra.mrb[0].mxu0 %v648
        %v1276 = vpop.f32.mrb[0].mxu0
        %v1277 = vadd.f32 %v1052, %v1276
        %v1278 = vpop.f32.mrb[0].mxu0
        %1279 = vmatprep.mubr.f32.mxu0 %v346
        %1280 = vmatmul.mubr.f32.gmra.mrb[0].mxu0 %v650
        %v1281 = vpop.f32.mrb[0].mxu0
        %v1282 = vadd.f32 %v1057, %v1281
        %v1283 = vpop.f32.mrb[0].mxu0
        %1284 = vmatprep.mubr.f32.mxu0 %v420
        %1285 = vmatmul.mubr.f32.gmra.mrb[0].mxu0 %v653
        %v1286 = vpop.f32.mrb[0].mxu0
        %v1287 = vadd.f32 %v1062, %v1286
        %v1288 = vpop.f32.mrb[0].mxu0
        %1289 = vmatprep.mubr.f32.mxu0 %v349
        %1290 = vmatmul.mubr.f32.gmra.mrb[0].mxu0 %v655
        %v1291 = vpop.f32.mrb[0].mxu0
        %v1292 = vadd.f32 %v1067, %v1291
        %v1293 = vpop.f32.mrb[0].mxu0
        %1294 = vmatprep.mubr.f32.mxu0 %v421
        %1295 = vmatmul.mubr.f32.gmra.mrb[0].mxu0 %v658
        %v1296 = vpop.f32.mrb[0].mxu0
        %v1297 = vadd.f32 %v1072, %v1296
        %v1298 = vpop.f32.mrb[0].mxu0
        %1299 = vmatprep.mubr.f32.mxu0 %v352
        %1300 = vmatmul.mubr.f32.gmra.mrb[0].mxu0 %v660
        %v1301 = vpop.f32.mrb[0].mxu0
        %v1302 = vadd.f32 %v1077, %v1301
        %v1303 = vpop.f32.mrb[0].mxu0
        %1304 = vmatprep.mubr.f32.mxu0 %v422
        %1305 = vmatmul.mubr.f32.gmra.mrb[0].mxu0 %v663
        %v1306 = vpop.f32.mrb[0].mxu0
        %v1307 = vadd.f32 %v1082, %v1306
        %v1308 = vpop.f32.mrb[0].mxu0
        %1309 = vmatprep.mubr.f32.mxu0 %v355
        %1310 = vmatmul.mubr.f32.gmra.mrb[0].mxu0 %v665
        %v1311 = vpop.f32.mrb[0].mxu0
        %v1312 = vadd.f32 %v1087, %v1311
        %v1313 = vpop.f32.mrb[0].mxu0
        %1314 = vdwg.mxu0
        %1315 = vmatprep.subr.mxu0 0.0
        %1316 = vmatpush1.msra.mxu0 %v778
        %1317 = vmatprep.subr.mxu0 0.0
        %1318 = vmatpush1.msra.mxu0 %v779
        %1319 = vmatprep.subr.mxu0 0.0
        %1320 = vmatpush1.msra.mxu0 %v780
        %1321 = vmatprep.subr.mxu0 0.0
        %1322 = vmatpush1.msra.mxu0 %v781
        %1323 = vmatprep.subr.mxu0 0.0
        %1324 = vmatpush1.msra.mxu0 %v782
        %1325 = vmatprep.subr.mxu0 0.0
        %1326 = vmatpush1.msra.mxu0 %v783
        %1327 = vmatprep.subr.mxu0 0.0
        %1328 = vmatpush1.msra.mxu0 %v784
        %1329 = vmatprep.subr.mxu0 0.0
        %1330 = vmatpush1.msra.mxu0 %v785
        %1331 = vmatprep.subr.mxu0 0.0
        %1332 = vmatpush1.msra.mxu0 %v786
        %1333 = vmatprep.subr.mxu0 0.0
        %1334 = vmatpush1.msra.mxu0 %v787
        %1335 = vmatprep.subr.mxu0 0.0
        %1336 = vmatpush1.msra.mxu0 %v788
        %1337 = vmatprep.subr.mxu0 0.0
        %1338 = vmatpush1.msra.mxu0 %v789
        %1339 = vmatprep.subr.mxu0 0.0
        %1340 = vmatpush1.msra.mxu0 %v790
        %1341 = vmatprep.subr.mxu0 0.0
        %1342 = vmatpush1.msra.mxu0 %v791
        %1343 = vmatprep.subr.mxu0 0.0
        %1344 = vmatpush1.msra.mxu0 %v792
        %1345 = vmatprep.subr.mxu0 0.0
        %1346 = vmatpush1.msra.mxu0 %v793
        %1347 = vmatprep.subr.mxu0 0.0
        %1348 = vmatpush1.msra.mxu0 %v794
        %1349 = vmatprep.subr.mxu0 0.0
        %1350 = vmatpush1.msra.mxu0 %v795
        %1351 = vmatprep.subr.mxu0 0.0
        %1352 = vmatpush1.msra.mxu0 %v796
        %1353 = vmatprep.subr.mxu0 0.0
        %1354 = vmatpush1.msra.mxu0 %v797
        %1355 = vmatprep.subr.mxu0 0.0
        %1356 = vmatpush1.msra.mxu0 %v798
        %1357 = vmatprep.subr.mxu0 0.0
        %1358 = vmatpush1.msra.mxu0 %v799
        %1359 = vmatprep.subr.mxu0 0.0
        %1360 = vmatpush1.msra.mxu0 %v800
        %1361 = vmatprep.subr.mxu0 0.0
        %1362 = vmatpush1.msra.mxu0 %v801
        %1363 = vmatprep.subr.mxu0 0.0
        %1364 = vmatpush1.msra.mxu0 %v802
        %1365 = vmatprep.subr.mxu0 0.0
        %1366 = vmatpush1.msra.mxu0 %v803
        %1367 = vmatprep.subr.mxu0 0.0
        %1368 = vmatpush1.msra.mxu0 %v804
        %1369 = vmatprep.subr.mxu0 0.0
        %1370 = vmatpush1.msra.mxu0 %v805
        %1371 = vmatprep.subr.mxu0 0.0
        %1372 = vmatpush1.msra.mxu0 %v806
        %1373 = vmatprep.subr.mxu0 0.0
        %1374 = vmatpush1.msra.mxu0 %v807
        %1375 = vmatprep.subr.mxu0 0.0
        %1376 = vmatpush1.msra.mxu0 %v808
        %1377 = vmatprep.subr.mxu0 0.0
        %1378 = vmatpush1.msra.mxu0 %v809
        %1379 = vmatprep.mubr.f32.mxu0 %v593
        %1380 = vmatmul.mubr.f32.gmra.mrb[0].mxu0 %v480
        %v1381 = vpop.f32.mrb[0].mxu0
        %v1382 = vadd.f32 %v1157, %v1381
        %v1383 = vpop.f32.mrb[0].mxu0
        %1384 = vmatprep.mubr.f32.mxu0 %v595
        %1385 = vmatmul.mubr.f32.gmra.mrb[0].mxu0 %v482
        %v1386 = vpop.f32.mrb[0].mxu0
        %v1387 = vadd.f32 %v1162, %v1386
        %v1388 = vpop.f32.mrb[0].mxu0
        %1389 = vmatprep.mubr.f32.mxu0 %v598
        %1390 = vmatmul.mubr.f32.gmra.mrb[0].mxu0 %v485
        %v1391 = vpop.f32.mrb[0].mxu0
        %v1392 = vadd.f32 %v1167, %v1391
        %v1393 = vpop.f32.mrb[0].mxu0
        %1394 = vmatprep.mubr.f32.mxu0 %v600
        %1395 = vmatmul.mubr.f32.gmra.mrb[0].mxu0 %v487
        %v1396 = vpop.f32.mrb[0].mxu0
        %v1397 = vadd.f32 %v1172, %v1396
        %v1398 = vpop.f32.mrb[0].mxu0
        %1399 = vmatprep.mubr.f32.mxu0 %v603
        %1400 = vmatmul.mubr.f32.gmra.mrb[0].mxu0 %v490
        %v1401 = vpop.f32.mrb[0].mxu0
        %v1402 = vadd.f32 %v1177, %v1401
        %v1403 = vpop.f32.mrb[0].mxu0
        %1404 = vmatprep.mubr.f32.mxu0 %v605
        %1405 = vmatmul.mubr.f32.gmra.mrb[0].mxu0 %v492
        %v1406 = vpop.f32.mrb[0].mxu0
        %v1407 = vadd.f32 %v1182, %v1406
        %v1408 = vpop.f32.mrb[0].mxu0
        %1409 = vmatprep.mubr.f32.mxu0 %v608
        %1410 = vmatmul.mubr.f32.gmra.mrb[0].mxu0 %v495
        %v1411 = vpop.f32.mrb[0].mxu0
        %v1412 = vadd.f32 %v1187, %v1411
        %v1413 = vpop.f32.mrb[0].mxu0
        %1414 = vmatprep.mubr.f32.mxu0 %v610
        %1415 = vmatmul.mubr.f32.gmra.mrb[0].mxu0 %v497
        %v1416 = vpop.f32.mrb[0].mxu0
        %v1417 = vadd.f32 %v1192, %v1416
        %v1418 = vpop.f32.mrb[0].mxu0
        %1419 = vmatprep.mubr.f32.mxu0 %v613
        %1420 = vmatmul.mubr.f32.gmra.mrb[0].mxu0 %v500
        %v1421 = vpop.f32.mrb[0].mxu0
        %v1422 = vadd.f32 %v1197, %v1421
        %v1423 = vpop.f32.mrb[0].mxu0
        %1424 = vmatprep.mubr.f32.mxu0 %v615
        %1425 = vmatmul.mubr.f32.gmra.mrb[0].mxu0 %v502
        %v1426 = vpop.f32.mrb[0].mxu0
        %v1427 = vadd.f32 %v1202, %v1426
        %v1428 = vpop.f32.mrb[0].mxu0
        %1429 = vmatprep.mubr.f32.mxu0 %v618
        %1430 = vmatmul.mubr.f32.gmra.mrb[0].mxu0 %v505
        %v1431 = vpop.f32.mrb[0].mxu0
        %v1432 = vadd.f32 %v1207, %v1431
        %v1433 = vpop.f32.mrb[0].mxu0
        %1434 = vmatprep.mubr.f32.mxu0 %v620
        %1435 = vmatmul.mubr.f32.gmra.mrb[0].mxu0 %v507
        %v1436 = vpop.f32.mrb[0].mxu0
        %v1437 = vadd.f32 %v1212, %v1436
        %v1438 = vpop.f32.mrb[0].mxu0
        %1439 = vmatprep.mubr.f32.mxu0 %v623
        %1440 = vmatmul.mubr.f32.gmra.mrb[0].mxu0 %v510
        %v1441 = vpop.f32.mrb[0].mxu0
        %v1442 = vadd.f32 %v1217, %v1441
        %v1443 = vpop.f32.mrb[0].mxu0
        %1444 = vmatprep.mubr.f32.mxu0 %v625
        %1445 = vmatmul.mubr.f32.gmra.mrb[0].mxu0 %v512
        %v1446 = vpop.f32.mrb[0].mxu0
        %v1447 = vadd.f32 %v1222, %v1446
        %v1448 = vpop.f32.mrb[0].mxu0
        %1449 = vmatprep.mubr.f32.mxu0 %v628
        %1450 = vmatmul.mubr.f32.gmra.mrb[0].mxu0 %v515
        %v1451 = vpop.f32.mrb[0].mxu0
        %v1452 = vadd.f32 %v1227, %v1451
        %v1453 = vpop.f32.mrb[0].mxu0
        %1454 = vmatprep.mubr.f32.mxu0 %v630
        %1455 = vmatmul.mubr.f32.gmra.mrb[0].mxu0 %v517
        %v1456 = vpop.f32.mrb[0].mxu0
        %v1457 = vadd.f32 %v1232, %v1456
        %v1458 = vpop.f32.mrb[0].mxu0
        %1459 = vmatprep.mubr.f32.mxu0 %v633
        %1460 = vmatmul.mubr.f32.gmra.mrb[0].mxu0 %v520
        %v1461 = vpop.f32.mrb[0].mxu0
        %v1462 = vadd.f32 %v1237, %v1461
        %v1463 = vpop.f32.mrb[0].mxu0
        %1464 = vmatprep.mubr.f32.mxu0 %v635
        %1465 = vmatmul.mubr.f32.gmra.mrb[0].mxu0 %v522
        %v1466 = vpop.f32.mrb[0].mxu0
        %v1467 = vadd.f32 %v1242, %v1466
        %v1468 = vpop.f32.mrb[0].mxu0
        %1469 = vmatprep.mubr.f32.mxu0 %v638
        %1470 = vmatmul.mubr.f32.gmra.mrb[0].mxu0 %v525
        %v1471 = vpop.f32.mrb[0].mxu0
        %v1472 = vadd.f32 %v1247, %v1471
        %v1473 = vpop.f32.mrb[0].mxu0
        %1474 = vmatprep.mubr.f32.mxu0 %v640
        %1475 = vmatmul.mubr.f32.gmra.mrb[0].mxu0 %v527
        %v1476 = vpop.f32.mrb[0].mxu0
        %v1477 = vadd.f32 %v1252, %v1476
        %v1478 = vpop.f32.mrb[0].mxu0
        %1479 = vmatprep.mubr.f32.mxu0 %v643
        %1480 = vmatmul.mubr.f32.gmra.mrb[0].mxu0 %v530
        %v1481 = vpop.f32.mrb[0].mxu0
        %v1482 = vadd.f32 %v1257, %v1481
        %v1483 = vpop.f32.mrb[0].mxu0
        %1484 = vmatprep.mubr.f32.mxu0 %v645
        %1485 = vmatmul.mubr.f32.gmra.mrb[0].mxu0 %v532
        %v1486 = vpop.f32.mrb[0].mxu0
        %v1487 = vadd.f32 %v1262, %v1486
        %v1488 = vpop.f32.mrb[0].mxu0
        %1489 = vmatprep.mubr.f32.mxu0 %v648
        %1490 = vmatmul.mubr.f32.gmra.mrb[0].mxu0 %v535
        %v1491 = vpop.f32.mrb[0].mxu0
        %v1492 = vadd.f32 %v1267, %v1491
        %v1493 = vpop.f32.mrb[0].mxu0
        %1494 = vmatprep.mubr.f32.mxu0 %v650
        %1495 = vmatmul.mubr.f32.gmra.mrb[0].mxu0 %v537
        %v1496 = vpop.f32.mrb[0].mxu0
        %v1497 = vadd.f32 %v1272, %v1496
        %v1498 = vpop.f32.mrb[0].mxu0
        %1499 = vmatprep.mubr.f32.mxu0 %v653
        %1500 = vmatmul.mubr.f32.gmra.mrb[0].mxu0 %v540
        %v1501 = vpop.f32.mrb[0].mxu0
        %v1502 = vadd.f32 %v1277, %v1501
        %v1503 = vpop.f32.mrb[0].mxu0
        %1504 = vmatprep.mubr.f32.mxu0 %v655
        %1505 = vmatmul.mubr.f32.gmra.mrb[0].mxu0 %v542
        %v1506 = vpop.f32.mrb[0].mxu0
        %v1507 = vadd.f32 %v1282, %v1506
        %v1508 = vpop.f32.mrb[0].mxu0
        %1509 = vmatprep.mubr.f32.mxu0 %v658
        %1510 = vmatmul.mubr.f32.gmra.mrb[0].mxu0 %v545
        %v1511 = vpop.f32.mrb[0].mxu0
        %v1512 = vadd.f32 %v1287, %v1511
        %v1513 = vpop.f32.mrb[0].mxu0
        %1514 = vmatprep.mubr.f32.mxu0 %v660
        %1515 = vmatmul.mubr.f32.gmra.mrb[0].mxu0 %v547
        %v1516 = vpop.f32.mrb[0].mxu0
        %v1517 = vadd.f32 %v1292, %v1516
        %v1518 = vpop.f32.mrb[0].mxu0
        %1519 = vmatprep.mubr.f32.mxu0 %v663
        %1520 = vmatmul.mubr.f32.gmra.mrb[0].mxu0 %v550
        %v1521 = vpop.f32.mrb[0].mxu0
        %v1522 = vadd.f32 %v1297, %v1521
        %v1523 = vpop.f32.mrb[0].mxu0
        %1524 = vmatprep.mubr.f32.mxu0 %v665
        %1525 = vmatmul.mubr.f32.gmra.mrb[0].mxu0 %v552
        %v1526 = vpop.f32.mrb[0].mxu0
        %v1527 = vadd.f32 %v1302, %v1526
        %v1528 = vpop.f32.mrb[0].mxu0
        %1529 = vmatprep.mubr.f32.mxu0 %v709
        %1530 = vmatmul.mubr.f32.gmra.mrb[0].mxu0 %v702
        %v1531 = vpop.f32.mrb[0].mxu0
        %v1532 = vadd.f32 %v1307, %v1531
        %v1533 = vpop.f32.mrb[0].mxu0
        %1534 = vmatprep.mubr.f32.mxu0 %v711
        %1535 = vmatmul.mubr.f32.gmra.mrb[0].mxu0 %v704
        %v1536 = vpop.f32.mrb[0].mxu0
        %v1537 = vadd.f32 %v1312, %v1536
        %v1538 = vpop.f32.mrb[0].mxu0
        %1539 = vdwg.mxu0
        %1540 = vmatprep.subr.mxu0 0.0
        %1541 = vmatpush1.msra.mxu0 %v810
        %1542 = vmatprep.subr.mxu0 0.0
        %1543 = vmatpush1.msra.mxu0 %v811
        %1544 = vmatprep.subr.mxu0 0.0
        %1545 = vmatpush1.msra.mxu0 %v812
        %1546 = vmatprep.subr.mxu0 0.0
        %1547 = vmatpush1.msra.mxu0 %v813
        %1548 = vmatprep.subr.mxu0 0.0
        %1549 = vmatpush1.msra.mxu0 %v814
        %1550 = vmatprep.subr.mxu0 0.0
        %1551 = vmatpush1.msra.mxu0 %v815
        %1552 = vmatprep.subr.mxu0 0.0
        %1553 = vmatpush1.msra.mxu0 %v816
        %1554 = vmatprep.subr.mxu0 0.0
        %1555 = vmatpush1.msra.mxu0 %v817
        %1556 = vmatprep.subr.mxu0 0.0
        %1557 = vmatpush1.msra.mxu0 %v818
        %1558 = vmatprep.subr.mxu0 0.0
        %1559 = vmatpush1.msra.mxu0 %v819
        %1560 = vmatprep.subr.mxu0 0.0
        %1561 = vmatpush1.msra.mxu0 %v820
        %1562 = vmatprep.subr.mxu0 0.0
        %1563 = vmatpush1.msra.mxu0 %v821
        %1564 = vmatprep.subr.mxu0 0.0
        %1565 = vmatpush1.msra.mxu0 %v822
        %1566 = vmatprep.subr.mxu0 0.0
        %1567 = vmatpush1.msra.mxu0 %v823
        %1568 = vmatprep.subr.mxu0 0.0
        %1569 = vmatpush1.msra.mxu0 %v824
        %1570 = vmatprep.subr.mxu0 0.0
        %1571 = vmatpush1.msra.mxu0 %v825
        %1572 = vmatprep.subr.mxu0 0.0
        %1573 = vmatpush1.msra.mxu0 %v826
        %1574 = vmatprep.subr.mxu0 0.0
        %1575 = vmatpush1.msra.mxu0 %v827
        %1576 = vmatprep.subr.mxu0 0.0
        %1577 = vmatpush1.msra.mxu0 %v828
        %1578 = vmatprep.subr.mxu0 0.0
        %1579 = vmatpush1.msra.mxu0 %v829
        %1580 = vmatprep.subr.mxu0 0.0
        %1581 = vmatpush1.msra.mxu0 %v830
        %1582 = vmatprep.subr.mxu0 0.0
        %1583 = vmatpush1.msra.mxu0 %v831
        %1584 = vmatprep.subr.mxu0 0.0
        %1585 = vmatpush1.msra.mxu0 %v832
        %1586 = vmatprep.subr.mxu0 0.0
        %1587 = vmatpush1.msra.mxu0 %v833
        %1588 = vmatprep.subr.mxu0 0.0
        %1589 = vmatpush1.msra.mxu0 %v834
        %1590 = vmatprep.subr.mxu0 0.0
        %1591 = vmatpush1.msra.mxu0 %v835
        %1592 = vmatprep.subr.mxu0 0.0
        %1593 = vmatpush1.msra.mxu0 %v836
        %1594 = vmatprep.subr.mxu0 0.0
        %1595 = vmatpush1.msra.mxu0 %v837
        %1596 = vmatprep.subr.mxu0 0.0
        %1597 = vmatpush1.msra.mxu0 %v838
        %1598 = vmatprep.subr.mxu0 0.0
        %1599 = vmatpush1.msra.mxu0 %v839
        %1600 = vmatprep.subr.mxu0 0.0
        %1601 = vmatpush1.msra.mxu0 %v840
        %1602 = vmatprep.subr.mxu0 0.0
        %1603 = vmatpush1.msra.mxu0 %v841
        %1604 = vmatprep.mubr.f32.mxu0 %v485
        %1605 = vmatmul.mubr.f32.gmra.mrb[0].mxu0 %v408
        %v1606 = vpop.f32.mrb[0].mxu0
        %v1607 = vadd.f32 %v1382, %v1606
        %v1608 = vpop.f32.mrb[0].mxu0
        %1609 = vmatprep.mubr.f32.mxu0 %v487
        %1610 = vmatmul.mubr.f32.gmra.mrb[0].mxu0 %v313
        %v1611 = vpop.f32.mrb[0].mxu0
        %v1612 = vadd.f32 %v1387, %v1611
        %v1613 = vpop.f32.mrb[0].mxu0
        %1614 = vmatprep.mubr.f32.mxu0 %v490
        %1615 = vmatmul.mubr.f32.gmra.mrb[0].mxu0 %v409
        %v1616 = vpop.f32.mrb[0].mxu0
        %v1617 = vadd.f32 %v1392, %v1616
        %v1618 = vpop.f32.mrb[0].mxu0
        %1619 = vmatprep.mubr.f32.mxu0 %v492
        %1620 = vmatmul.mubr.f32.gmra.mrb[0].mxu0 %v316
        %v1621 = vpop.f32.mrb[0].mxu0
        %v1622 = vadd.f32 %v1397, %v1621
        %v1623 = vpop.f32.mrb[0].mxu0
        %1624 = vmatprep.mubr.f32.mxu0 %v495
        %1625 = vmatmul.mubr.f32.gmra.mrb[0].mxu0 %v410
        %v1626 = vpop.f32.mrb[0].mxu0
        %v1627 = vadd.f32 %v1402, %v1626
        %v1628 = vpop.f32.mrb[0].mxu0
        %1629 = vmatprep.mubr.f32.mxu0 %v497
        %1630 = vmatmul.mubr.f32.gmra.mrb[0].mxu0 %v319
        %v1631 = vpop.f32.mrb[0].mxu0
        %v1632 = vadd.f32 %v1407, %v1631
        %v1633 = vpop.f32.mrb[0].mxu0
        %1634 = vmatprep.mubr.f32.mxu0 %v500
        %1635 = vmatmul.mubr.f32.gmra.mrb[0].mxu0 %v411
        %v1636 = vpop.f32.mrb[0].mxu0
        %v1637 = vadd.f32 %v1412, %v1636
        %v1638 = vpop.f32.mrb[0].mxu0
        %1639 = vmatprep.mubr.f32.mxu0 %v502
        %1640 = vmatmul.mubr.f32.gmra.mrb[0].mxu0 %v322
        %v1641 = vpop.f32.mrb[0].mxu0
        %v1642 = vadd.f32 %v1417, %v1641
        %v1643 = vpop.f32.mrb[0].mxu0
        %1644 = vmatprep.mubr.f32.mxu0 %v505
        %1645 = vmatmul.mubr.f32.gmra.mrb[0].mxu0 %v412
        %v1646 = vpop.f32.mrb[0].mxu0
        %v1647 = vadd.f32 %v1422, %v1646
        %v1648 = vpop.f32.mrb[0].mxu0
        %1649 = vmatprep.mubr.f32.mxu0 %v507
        %1650 = vmatmul.mubr.f32.gmra.mrb[0].mxu0 %v325
        %v1651 = vpop.f32.mrb[0].mxu0
        %v1652 = vadd.f32 %v1427, %v1651
        %v1653 = vpop.f32.mrb[0].mxu0
        %1654 = vmatprep.mubr.f32.mxu0 %v510
        %1655 = vmatmul.mubr.f32.gmra.mrb[0].mxu0 %v413
        %v1656 = vpop.f32.mrb[0].mxu0
        %v1657 = vadd.f32 %v1432, %v1656
        %v1658 = vpop.f32.mrb[0].mxu0
        %1659 = vmatprep.mubr.f32.mxu0 %v512
        %1660 = vmatmul.mubr.f32.gmra.mrb[0].mxu0 %v328
        %v1661 = vpop.f32.mrb[0].mxu0
        %v1662 = vadd.f32 %v1437, %v1661
        %v1663 = vpop.f32.mrb[0].mxu0
        %1664 = vmatprep.mubr.f32.mxu0 %v515
        %1665 = vmatmul.mubr.f32.gmra.mrb[0].mxu0 %v414
        %v1666 = vpop.f32.mrb[0].mxu0
        %v1667 = vadd.f32 %v1442, %v1666
        %v1668 = vpop.f32.mrb[0].mxu0
        %1669 = vmatprep.mubr.f32.mxu0 %v517
        %1670 = vmatmul.mubr.f32.gmra.mrb[0].mxu0 %v331
        %v1671 = vpop.f32.mrb[0].mxu0
        %v1672 = vadd.f32 %v1447, %v1671
        %v1673 = vpop.f32.mrb[0].mxu0
        %1674 = vmatprep.mubr.f32.mxu0 %v520
        %1675 = vmatmul.mubr.f32.gmra.mrb[0].mxu0 %v415
        %v1676 = vpop.f32.mrb[0].mxu0
        %v1677 = vadd.f32 %v1452, %v1676
        %v1678 = vpop.f32.mrb[0].mxu0
        %1679 = vmatprep.mubr.f32.mxu0 %v522
        %1680 = vmatmul.mubr.f32.gmra.mrb[0].mxu0 %v334
        %v1681 = vpop.f32.mrb[0].mxu0
        %v1682 = vadd.f32 %v1457, %v1681
        %v1683 = vpop.f32.mrb[0].mxu0
        %1684 = vmatprep.mubr.f32.mxu0 %v525
        %1685 = vmatmul.mubr.f32.gmra.mrb[0].mxu0 %v416
        %v1686 = vpop.f32.mrb[0].mxu0
        %v1687 = vadd.f32 %v1462, %v1686
        %v1688 = vpop.f32.mrb[0].mxu0
        %1689 = vmatprep.mubr.f32.mxu0 %v527
        %1690 = vmatmul.mubr.f32.gmra.mrb[0].mxu0 %v337
        %v1691 = vpop.f32.mrb[0].mxu0
        %v1692 = vadd.f32 %v1467, %v1691
        %v1693 = vpop.f32.mrb[0].mxu0
        %1694 = vmatprep.mubr.f32.mxu0 %v530
        %1695 = vmatmul.mubr.f32.gmra.mrb[0].mxu0 %v417
        %v1696 = vpop.f32.mrb[0].mxu0
        %v1697 = vadd.f32 %v1472, %v1696
        %v1698 = vpop.f32.mrb[0].mxu0
        %1699 = vmatprep.mubr.f32.mxu0 %v532
        %1700 = vmatmul.mubr.f32.gmra.mrb[0].mxu0 %v340
        %v1701 = vpop.f32.mrb[0].mxu0
        %v1702 = vadd.f32 %v1477, %v1701
        %v1703 = vpop.f32.mrb[0].mxu0
        %1704 = vmatprep.mubr.f32.mxu0 %v535
        %1705 = vmatmul.mubr.f32.gmra.mrb[0].mxu0 %v418
        %v1706 = vpop.f32.mrb[0].mxu0
        %v1707 = vadd.f32 %v1482, %v1706
        %v1708 = vpop.f32.mrb[0].mxu0
        %1709 = vmatprep.mubr.f32.mxu0 %v537
        %1710 = vmatmul.mubr.f32.gmra.mrb[0].mxu0 %v343
        %v1711 = vpop.f32.mrb[0].mxu0
        %v1712 = vadd.f32 %v1487, %v1711
        %v1713 = vpop.f32.mrb[0].mxu0
        %1714 = vmatprep.mubr.f32.mxu0 %v540
        %1715 = vmatmul.mubr.f32.gmra.mrb[0].mxu0 %v419
        %v1716 = vpop.f32.mrb[0].mxu0
        %v1717 = vadd.f32 %v1492, %v1716
        %v1718 = vpop.f32.mrb[0].mxu0
        %1719 = vmatprep.mubr.f32.mxu0 %v542
        %1720 = vmatmul.mubr.f32.gmra.mrb[0].mxu0 %v346
        %v1721 = vpop.f32.mrb[0].mxu0
        %v1722 = vadd.f32 %v1497, %v1721
        %v1723 = vpop.f32.mrb[0].mxu0
        %1724 = vmatprep.mubr.f32.mxu0 %v545
        %1725 = vmatmul.mubr.f32.gmra.mrb[0].mxu0 %v420
        %v1726 = vpop.f32.mrb[0].mxu0
        %v1727 = vadd.f32 %v1502, %v1726
        %v1728 = vpop.f32.mrb[0].mxu0
        %1729 = vmatprep.mubr.f32.mxu0 %v547
        %1730 = vmatmul.mubr.f32.gmra.mrb[0].mxu0 %v349
        %v1731 = vpop.f32.mrb[0].mxu0
        %v1732 = vadd.f32 %v1507, %v1731
        %v1733 = vpop.f32.mrb[0].mxu0
        %1734 = vmatprep.mubr.f32.mxu0 %v550
        %1735 = vmatmul.mubr.f32.gmra.mrb[0].mxu0 %v421
        %v1736 = vpop.f32.mrb[0].mxu0
        %v1737 = vadd.f32 %v1512, %v1736
        %v1738 = vpop.f32.mrb[0].mxu0
        %1739 = vmatprep.mubr.f32.mxu0 %v552
        %1740 = vmatmul.mubr.f32.gmra.mrb[0].mxu0 %v352
        %v1741 = vpop.f32.mrb[0].mxu0
        %v1742 = vadd.f32 %v1517, %v1741
        %v1743 = vpop.f32.mrb[0].mxu0
        %1744 = vmatprep.mubr.f32.mxu0 %v702
        %1745 = vmatmul.mubr.f32.gmra.mrb[0].mxu0 %v422
        %v1746 = vpop.f32.mrb[0].mxu0
        %v1747 = vadd.f32 %v1522, %v1746
        %v1748 = vpop.f32.mrb[0].mxu0
        %1749 = vmatprep.mubr.f32.mxu0 %v704
        %1750 = vmatmul.mubr.f32.gmra.mrb[0].mxu0 %v355
        %v1751 = vpop.f32.mrb[0].mxu0
        %v1752 = vadd.f32 %v1527, %v1751
        %v1753 = vpop.f32.mrb[0].mxu0
        %1754 = vmatprep.mubr.f32.mxu0 %v475
        %1755 = vmatmul.mubr.f32.gmra.mrb[0].mxu0 %v406
        %v1756 = vpop.f32.mrb[0].mxu0
        %v1757 = vadd.f32 %v1532, %v1756
        %v1758 = vpop.f32.mrb[0].mxu0
        %1759 = vmatprep.mubr.f32.mxu0 %v477
        %1760 = vmatmul.mubr.f32.gmra.mrb[0].mxu0 %v307
        %v1761 = vpop.f32.mrb[0].mxu0
        %v1762 = vadd.f32 %v1537, %v1761
        %v1763 = vpop.f32.mrb[0].mxu0
        %1764 = vdwg.mxu0
        %1765 = vmatprep.subr.mxu0 0.0
        %1766 = vmatpush1.msra.mxu0 %v842
        %1767 = vmatprep.subr.mxu0 0.0
        %1768 = vmatpush1.msra.mxu0 %v843
        %1769 = vmatprep.subr.mxu0 0.0
        %1770 = vmatpush1.msra.mxu0 %v844
        %1771 = vmatprep.subr.mxu0 0.0
        %1772 = vmatpush1.msra.mxu0 %v845
        %1773 = vmatprep.subr.mxu0 0.0
        %1774 = vmatpush1.msra.mxu0 %v846
        %1775 = vmatprep.subr.mxu0 0.0
        %1776 = vmatpush1.msra.mxu0 %v847
        %1777 = vmatprep.subr.mxu0 0.0
        %1778 = vmatpush1.msra.mxu0 %v848
        %1779 = vmatprep.subr.mxu0 0.0
        %1780 = vmatpush1.msra.mxu0 %v849
        %1781 = vmatprep.subr.mxu0 0.0
        %1782 = vmatpush1.msra.mxu0 %v850
        %1783 = vmatprep.subr.mxu0 0.0
        %1784 = vmatpush1.msra.mxu0 %v851
        %1785 = vmatprep.subr.mxu0 0.0
        %1786 = vmatpush1.msra.mxu0 %v852
        %1787 = vmatprep.subr.mxu0 0.0
        %1788 = vmatpush1.msra.mxu0 %v853
        %1789 = vmatprep.subr.mxu0 0.0
        %1790 = vmatpush1.msra.mxu0 %v854
        %1791 = vmatprep.subr.mxu0 0.0
        %1792 = vmatpush1.msra.mxu0 %v855
        %1793 = vmatprep.subr.mxu0 0.0
        %1794 = vmatpush1.msra.mxu0 %v856
        %1795 = vmatprep.subr.mxu0 0.0
        %1796 = vmatpush1.msra.mxu0 %v857
        %1797 = vmatprep.subr.mxu0 0.0
        %1798 = vmatpush1.msra.mxu0 0.0
        %1799 = vmatprep.subr.mxu0 0.0
        %1800 = vmatpush1.msra.mxu0 0.0
        %1801 = vmatprep.subr.mxu0 0.0
        %1802 = vmatpush1.msra.mxu0 0.0
        %1803 = vmatprep.subr.mxu0 0.0
        %1804 = vmatpush1.msra.mxu0 0.0
        %1805 = vmatprep.subr.mxu0 0.0
        %1806 = vmatpush1.msra.mxu0 0.0
        %1807 = vmatprep.subr.mxu0 0.0
        %1808 = vmatpush1.msra.mxu0 0.0
        %1809 = vmatprep.subr.mxu0 0.0
        %1810 = vmatpush1.msra.mxu0 0.0
        %1811 = vmatprep.subr.mxu0 0.0
        %1812 = vmatpush1.msra.mxu0 0.0
        %1813 = vmatprep.subr.mxu0 0.0
        %1814 = vmatpush1.msra.mxu0 0.0
        %1815 = vmatprep.subr.mxu0 0.0
        %1816 = vmatpush1.msra.mxu0 0.0
        %1817 = vmatprep.subr.mxu0 0.0
        %1818 = vmatpush1.msra.mxu0 0.0
        %1819 = vmatprep.subr.mxu0 0.0
        %1820 = vmatpush1.msra.mxu0 0.0
        %1821 = vmatprep.subr.mxu0 0.0
        %1822 = vmatpush1.msra.mxu0 0.0
        %1823 = vmatprep.subr.mxu0 0.0
        %1824 = vmatpush1.msra.mxu0 0.0
        %1825 = vmatprep.subr.mxu0 0.0
        %1826 = vmatpush1.msra.mxu0 0.0
        %1827 = vmatprep.subr.mxu0 0.0
        %1828 = vmatpush1.msra.mxu0 0.0
        %1829 = vmatprep.mubr.f32.mxu0 0.0
        %1830 = vmatmul.mubr.f32.gmra.mrb[0].mxu0 %v598
        %v1831 = vpop.f32.mrb[0].mxu0
        %v1832 = vadd.f32 %v1607, %v1831
        %v1833 = vpop.f32.mrb[0].mxu0
        %1834 = vmatprep.mubr.f32.mxu0 0.0
        %1835 = vmatmul.mubr.f32.gmra.mrb[0].mxu0 %v600
        %v1836 = vpop.f32.mrb[0].mxu0
        %v1837 = vadd.f32 %v1612, %v1836
        %v1838 = vpop.f32.mrb[0].mxu0
        %1839 = vmatprep.mubr.f32.mxu0 0.0
        %1840 = vmatmul.mubr.f32.gmra.mrb[0].mxu0 %v603
        %v1841 = vpop.f32.mrb[0].mxu0
        %v1842 = vadd.f32 %v1617, %v1841
        %v1843 = vpop.f32.mrb[0].mxu0
        %1844 = vmatprep.mubr.f32.mxu0 0.0
        %1845 = vmatmul.mubr.f32.gmra.mrb[0].mxu0 %v605
        %v1846 = vpop.f32.mrb[0].mxu0
        %v1847 = vadd.f32 %v1622, %v1846
        %v1848 = vpop.f32.mrb[0].mxu0
        %1849 = vmatprep.mubr.f32.mxu0 0.0
        %1850 = vmatmul.mubr.f32.gmra.mrb[0].mxu0 %v608
        %v1851 = vpop.f32.mrb[0].mxu0
        %v1852 = vadd.f32 %v1627, %v1851
        %v1853 = vpop.f32.mrb[0].mxu0
        %1854 = vmatprep.mubr.f32.mxu0 0.0
        %1855 = vmatmul.mubr.f32.gmra.mrb[0].mxu0 %v610
        %v1856 = vpop.f32.mrb[0].mxu0
        %v1857 = vadd.f32 %v1632, %v1856
        %v1858 = vpop.f32.mrb[0].mxu0
        %1859 = vmatprep.mubr.f32.mxu0 0.0
        %1860 = vmatmul.mubr.f32.gmra.mrb[0].mxu0 %v613
        %v1861 = vpop.f32.mrb[0].mxu0
        %v1862 = vadd.f32 %v1637, %v1861
        %v1863 = vpop.f32.mrb[0].mxu0
        %1864 = vmatprep.mubr.f32.mxu0 0.0
        %1865 = vmatmul.mubr.f32.gmra.mrb[0].mxu0 %v615
        %v1866 = vpop.f32.mrb[0].mxu0
        %v1867 = vadd.f32 %v1642, %v1866
        %v1868 = vpop.f32.mrb[0].mxu0
        %1869 = vmatprep.mubr.f32.mxu0 0.0
        %1870 = vmatmul.mubr.f32.gmra.mrb[0].mxu0 %v618
        %v1871 = vpop.f32.mrb[0].mxu0
        %v1872 = vadd.f32 %v1647, %v1871
        %v1873 = vpop.f32.mrb[0].mxu0
        %1874 = vmatprep.mubr.f32.mxu0 0.0
        %1875 = vmatmul.mubr.f32.gmra.mrb[0].mxu0 %v620
        %v1876 = vpop.f32.mrb[0].mxu0
        %v1877 = vadd.f32 %v1652, %v1876
        %v1878 = vpop.f32.mrb[0].mxu0
        %1879 = vmatprep.mubr.f32.mxu0 0.0
        %1880 = vmatmul.mubr.f32.gmra.mrb[0].mxu0 %v623
        %v1881 = vpop.f32.mrb[0].mxu0
        %v1882 = vadd.f32 %v1657, %v1881
        %v1883 = vpop.f32.mrb[0].mxu0
        %1884 = vmatprep.mubr.f32.mxu0 0.0
        %1885 = vmatmul.mubr.f32.gmra.mrb[0].mxu0 %v625
        %v1886 = vpop.f32.mrb[0].mxu0
        %v1887 = vadd.f32 %v1662, %v1886
        %v1888 = vpop.f32.mrb[0].mxu0
        %1889 = vmatprep.mubr.f32.mxu0 0.0
        %1890 = vmatmul.mubr.f32.gmra.mrb[0].mxu0 %v628
        %v1891 = vpop.f32.mrb[0].mxu0
        %v1892 = vadd.f32 %v1667, %v1891
        %v1893 = vpop.f32.mrb[0].mxu0
        %1894 = vmatprep.mubr.f32.mxu0 0.0
        %1895 = vmatmul.mubr.f32.gmra.mrb[0].mxu0 %v630
        %v1896 = vpop.f32.mrb[0].mxu0
        %v1897 = vadd.f32 %v1672, %v1896
        %v1898 = vpop.f32.mrb[0].mxu0
        %1899 = vmatprep.mubr.f32.mxu0 0.0
        %1900 = vmatmul.mubr.f32.gmra.mrb[0].mxu0 %v633
        %v1901 = vpop.f32.mrb[0].mxu0
        %v1902 = vadd.f32 %v1677, %v1901
        %v1903 = vpop.f32.mrb[0].mxu0
        %1904 = vmatprep.mubr.f32.mxu0 0.0
        %1905 = vmatmul.mubr.f32.gmra.mrb[0].mxu0 %v635
        %v1906 = vpop.f32.mrb[0].mxu0
        %v1907 = vadd.f32 %v1682, %v1906
        %v1908 = vpop.f32.mrb[0].mxu0
        %1909 = vmatprep.mubr.f32.mxu0 0.0
        %1910 = vmatmul.mubr.f32.gmra.mrb[0].mxu0 %v638
        %v1911 = vpop.f32.mrb[0].mxu0
        %v1912 = vadd.f32 %v1687, %v1911
        %v1913 = vpop.f32.mrb[0].mxu0
        %1914 = vmatprep.mubr.f32.mxu0 0.0
        %1915 = vmatmul.mubr.f32.gmra.mrb[0].mxu0 %v640
        %v1916 = vpop.f32.mrb[0].mxu0
        %v1917 = vadd.f32 %v1692, %v1916
        %v1918 = vpop.f32.mrb[0].mxu0
        %1919 = vmatprep.mubr.f32.mxu0 0.0
        %1920 = vmatmul.mubr.f32.gmra.mrb[0].mxu0 %v643
        %v1921 = vpop.f32.mrb[0].mxu0
        %v1922 = vadd.f32 %v1697, %v1921
        %v1923 = vpop.f32.mrb[0].mxu0
        %1924 = vmatprep.mubr.f32.mxu0 0.0
        %1925 = vmatmul.mubr.f32.gmra.mrb[0].mxu0 %v645
        %v1926 = vpop.f32.mrb[0].mxu0
        %v1927 = vadd.f32 %v1702, %v1926
        %v1928 = vpop.f32.mrb[0].mxu0
        %1929 = vmatprep.mubr.f32.mxu0 0.0
        %1930 = vmatmul.mubr.f32.gmra.mrb[0].mxu0 %v648
        %v1931 = vpop.f32.mrb[0].mxu0
        %v1932 = vadd.f32 %v1707, %v1931
        %v1933 = vpop.f32.mrb[0].mxu0
        %1934 = vmatprep.mubr.f32.mxu0 0.0
        %1935 = vmatmul.mubr.f32.gmra.mrb[0].mxu0 %v650
        %v1936 = vpop.f32.mrb[0].mxu0
        %v1937 = vadd.f32 %v1712, %v1936
        %v1938 = vpop.f32.mrb[0].mxu0
        %1939 = vmatprep.mubr.f32.mxu0 0.0
        %1940 = vmatmul.mubr.f32.gmra.mrb[0].mxu0 %v653
        %v1941 = vpop.f32.mrb[0].mxu0
        %v1942 = vadd.f32 %v1717, %v1941
        %v1943 = vpop.f32.mrb[0].mxu0
        %1944 = vmatprep.mubr.f32.mxu0 0.0
        %1945 = vmatmul.mubr.f32.gmra.mrb[0].mxu0 %v655
        %v1946 = vpop.f32.mrb[0].mxu0
        %v1947 = vadd.f32 %v1722, %v1946
        %v1948 = vpop.f32.mrb[0].mxu0
        %1949 = vmatprep.mubr.f32.mxu0 0.0
        %1950 = vmatmul.mubr.f32.gmra.mrb[0].mxu0 %v658
        %v1951 = vpop.f32.mrb[0].mxu0
        %v1952 = vadd.f32 %v1727, %v1951
        %v1953 = vpop.f32.mrb[0].mxu0
        %1954 = vmatprep.mubr.f32.mxu0 0.0
        %1955 = vmatmul.mubr.f32.gmra.mrb[0].mxu0 %v660
        %v1956 = vpop.f32.mrb[0].mxu0
        %v1957 = vadd.f32 %v1732, %v1956
        %v1958 = vpop.f32.mrb[0].mxu0
        %1959 = vmatprep.mubr.f32.mxu0 0.0
        %1960 = vmatmul.mubr.f32.gmra.mrb[0].mxu0 %v663
        %v1961 = vpop.f32.mrb[0].mxu0
        %v1962 = vadd.f32 %v1737, %v1961
        %v1963 = vpop.f32.mrb[0].mxu0
        %1964 = vmatprep.mubr.f32.mxu0 0.0
        %1965 = vmatmul.mubr.f32.gmra.mrb[0].mxu0 %v665
        %v1966 = vpop.f32.mrb[0].mxu0
        %v1967 = vadd.f32 %v1742, %v1966
        %v1968 = vpop.f32.mrb[0].mxu0
        %1969 = vmatprep.mubr.f32.mxu0 0.0
        %1970 = vmatmul.mubr.f32.gmra.mrb[0].mxu0 %v709
        %v1971 = vpop.f32.mrb[0].mxu0
        %v1972 = vadd.f32 %v1747, %v1971
        %v1973 = vpop.f32.mrb[0].mxu0
        %1974 = vmatprep.mubr.f32.mxu0 0.0
        %1975 = vmatmul.mubr.f32.gmra.mrb[0].mxu0 %v711
        %v1976 = vpop.f32.mrb[0].mxu0
        %v1977 = vadd.f32 %v1752, %v1976
        %v1978 = vpop.f32.mrb[0].mxu0
        %1979 = vmatprep.mubr.f32.mxu0 0.0
        %1980 = vmatmul.mubr.f32.gmra.mrb[0].mxu0 %v588
        %v1981 = vpop.f32.mrb[0].mxu0
        %v1982 = vadd.f32 %v1757, %v1981
        %v1983 = vpop.f32.mrb[0].mxu0
        %1984 = vmatprep.mubr.f32.mxu0 0.0
        %1985 = vmatmul.mubr.f32.gmra.mrb[0].mxu0 %v590
        %v1986 = vpop.f32.mrb[0].mxu0
        %v1987 = vadd.f32 %v1762, %v1986
        %v1988 = vpop.f32.mrb[0].mxu0
        %1989 = vdwg.mxu0
        %v1990 = vmax.f32 %v1832, 0.0
        %v1991 = vmax.f32 %v1837, 0.0
        %v1992 = vmax.f32 %v1842, 0.0
        %v1993 = vmax.f32 %v1847, 0.0
        %v1994 = vmax.f32 %v1852, 0.0
        %v1995 = vmax.f32 %v1857, 0.0
        %v1996 = vmax.f32 %v1862, 0.0
        %v1997 = vmax.f32 %v1867, 0.0
        %v1998 = vmax.f32 %v1872, 0.0
        %v1999 = vmax.f32 %v1877, 0.0
        %v2000 = vmax.f32 %v1882, 0.0
        %v2001 = vmax.f32 %v1887, 0.0
        %v2002 = vmax.f32 %v1892, 0.0
        %v2003 = vmax.f32 %v1897, 0.0
        %v2004 = vmax.f32 %v1902, 0.0
        %v2005 = vmax.f32 %v1907, 0.0
        %v2006 = vmax.f32 %v1912, 0.0
        %v2007 = vmax.f32 %v1917, 0.0
        %v2008 = vmax.f32 %v1922, 0.0
        %v2009 = vmax.f32 %v1927, 0.0
        %v2010 = vmax.f32 %v1932, 0.0
        %v2011 = vmax.f32 %v1937, 0.0
        %v2012 = vmax.f32 %v1942, 0.0
        %v2013 = vmax.f32 %v1947, 0.0
        %v2014 = vmax.f32 %v1952, 0.0
        %v2015 = vmax.f32 %v1957, 0.0
        %v2016 = vmax.f32 %v1962, 0.0
        %v2017 = vmax.f32 %v1967, 0.0
        %v2018 = vmax.f32 %v1972, 0.0
        %v2019 = vmax.f32 %v1977, 0.0
        %v2020 = vmax.f32 %v1982, 0.0
        %v2021 = vmax.f32 %v1987, 0.0
        %v2054 = vrot.slane %v1990, 7
        %v2055 = vrot.slane %v1991, 7
        %v2056 = vsel %vm305, %v2054, %v2055
        %v2057 = vrot.slane %v1992, 7
        %v2058 = vrot.slane %v1993, 7
        %v2059 = vsel %vm305, %v2057, %v2058
        %v2060 = vrot.slane %v1994, 7
        %v2061 = vrot.slane %v1995, 7
        %v2062 = vsel %vm305, %v2060, %v2061
        %v2063 = vrot.slane %v1996, 7
        %v2064 = vrot.slane %v1997, 7
        %v2065 = vsel %vm305, %v2063, %v2064
        %v2066 = vrot.slane %v1998, 7
        %v2067 = vrot.slane %v1999, 7
        %v2068 = vsel %vm305, %v2066, %v2067
        %v2069 = vrot.slane %v2000, 7
        %v2070 = vrot.slane %v2001, 7
        %v2071 = vsel %vm305, %v2069, %v2070
        %v2072 = vrot.slane %v2002, 7
        %v2073 = vrot.slane %v2003, 7
        %v2074 = vsel %vm305, %v2072, %v2073
        %v2075 = vrot.slane %v2004, 7
        %v2076 = vrot.slane %v2005, 7
        %v2077 = vsel %vm305, %v2075, %v2076
        %v2078 = vrot.slane %v2006, 7
        %v2079 = vrot.slane %v2007, 7
        %v2080 = vsel %vm305, %v2078, %v2079
        %v2081 = vrot.slane %v2008, 7
        %v2082 = vrot.slane %v2009, 7
        %v2083 = vsel %vm305, %v2081, %v2082
        %v2084 = vrot.slane %v2010, 7
        %v2085 = vrot.slane %v2011, 7
        %v2086 = vsel %vm305, %v2084, %v2085
        %v2087 = vrot.slane %v2012, 7
        %v2088 = vrot.slane %v2013, 7
        %v2089 = vsel %vm305, %v2087, %v2088
        %v2090 = vrot.slane %v2014, 7
        %v2091 = vrot.slane %v2015, 7
        %v2092 = vsel %vm305, %v2090, %v2091
        %v2093 = vrot.slane %v2016, 7
        %v2094 = vrot.slane %v2017, 7
        %v2095 = vsel %vm305, %v2093, %v2094
        %v2096 = vrot.slane %v2018, 7
        %v2097 = vrot.slane %v2019, 7
        %v2098 = vsel %vm305, %v2096, %v2097
        %v2099 = vrot.slane %v2020, 7
        %v2100 = vrot.slane %v2021, 7
        %v2101 = vsel %vm305, %v2099, %v2100
        %v2150 = vsel %vm305, 0.0, %v2054
        %v2151 = vsel %vm305, 0.0, %v2057
        %v2152 = vsel %vm305, 0.0, %v2060
        %v2153 = vsel %vm305, 0.0, %v2063
        %v2154 = vsel %vm305, 0.0, %v2066
        %v2155 = vsel %vm305, 0.0, %v2069
        %v2156 = vsel %vm305, 0.0, %v2072
        %v2157 = vsel %vm305, 0.0, %v2075
        %v2158 = vsel %vm305, 0.0, %v2078
        %v2159 = vsel %vm305, 0.0, %v2081
        %v2160 = vsel %vm305, 0.0, %v2084
        %v2161 = vsel %vm305, 0.0, %v2087
        %v2162 = vsel %vm305, 0.0, %v2090
        %v2163 = vsel %vm305, 0.0, %v2093
        %v2164 = vsel %vm305, 0.0, %v2096
        %v2165 = vsel %vm305, 0.0, %v2099
        %v2166 = vsel %vm305, %v2055, 0.0
        %v2167 = vsel %vm305, %v2058, 0.0
        %v2168 = vsel %vm305, %v2061, 0.0
        %v2169 = vsel %vm305, %v2064, 0.0
        %v2170 = vsel %vm305, %v2067, 0.0
        %v2171 = vsel %vm305, %v2070, 0.0
        %v2172 = vsel %vm305, %v2073, 0.0
        %v2173 = vsel %vm305, %v2076, 0.0
        %v2174 = vsel %vm305, %v2079, 0.0
        %v2175 = vsel %vm305, %v2082, 0.0
        %v2176 = vsel %vm305, %v2085, 0.0
        %v2177 = vsel %vm305, %v2088, 0.0
        %v2178 = vsel %vm305, %v2091, 0.0
        %v2179 = vsel %vm305, %v2094, 0.0
        %v2180 = vsel %vm305, %v2097, 0.0
        %v2181 = vsel %vm305, %v2100, 0.0
        %v2212 = vrot.slane %v2150, 1
        %v2213 = vrot.slane %v2056, 1
        %v2214 = vsel %vm472, %v2212, %v2213
        %v2215 = vrot.slane %v2166, 1
        %v2216 = vsel %vm472, %v2213, %v2215
        %v2217 = vrot.slane %v2151, 1
        %v2218 = vrot.slane %v2059, 1
        %v2219 = vsel %vm472, %v2217, %v2218
        %v2220 = vrot.slane %v2167, 1
        %v2221 = vsel %vm472, %v2218, %v2220
        %v2222 = vrot.slane %v2152, 1
        %v2223 = vrot.slane %v2062, 1
        %v2224 = vsel %vm472, %v2222, %v2223
        %v2225 = vrot.slane %v2168, 1
        %v2226 = vsel %vm472, %v2223, %v2225
        %v2227 = vrot.slane %v2153, 1
        %v2228 = vrot.slane %v2065, 1
        %v2229 = vsel %vm472, %v2227, %v2228
        %v2230 = vrot.slane %v2169, 1
        %v2231 = vsel %vm472, %v2228, %v2230
        %v2232 = vrot.slane %v2154, 1
        %v2233 = vrot.slane %v2068, 1
        %v2234 = vsel %vm472, %v2232, %v2233
        %v2235 = vrot.slane %v2170, 1
        %v2236 = vsel %vm472, %v2233, %v2235
        %v2237 = vrot.slane %v2155, 1
        %v2238 = vrot.slane %v2071, 1
        %v2239 = vsel %vm472, %v2237, %v2238
        %v2240 = vrot.slane %v2171, 1
        %v2241 = vsel %vm472, %v2238, %v2240
        %v2242 = vrot.slane %v2156, 1
        %v2243 = vrot.slane %v2074, 1
        %v2244 = vsel %vm472, %v2242, %v2243
        %v2245 = vrot.slane %v2172, 1
        %v2246 = vsel %vm472, %v2243, %v2245
        %v2247 = vrot.slane %v2157, 1
        %v2248 = vrot.slane %v2077, 1
        %v2249 = vsel %vm472, %v2247, %v2248
        %v2250 = vrot.slane %v2173, 1
        %v2251 = vsel %vm472, %v2248, %v2250
        %v2252 = vrot.slane %v2158, 1
        %v2253 = vrot.slane %v2080, 1
        %v2254 = vsel %vm472, %v2252, %v2253
        %v2255 = vrot.slane %v2174, 1
        %v2256 = vsel %vm472, %v2253, %v2255
        %v2257 = vrot.slane %v2159, 1
        %v2258 = vrot.slane %v2083, 1
        %v2259 = vsel %vm472, %v2257, %v2258
        %v2260 = vrot.slane %v2175, 1
        %v2261 = vsel %vm472, %v2258, %v2260
        %v2262 = vrot.slane %v2160, 1
        %v2263 = vrot.slane %v2086, 1
        %v2264 = vsel %vm472, %v2262, %v2263
        %v2265 = vrot.slane %v2176, 1
        %v2266 = vsel %vm472, %v2263, %v2265
        %v2267 = vrot.slane %v2161, 1
        %v2268 = vrot.slane %v2089, 1
        %v2269 = vsel %vm472, %v2267, %v2268
        %v2270 = vrot.slane %v2177, 1
        %v2271 = vsel %vm472, %v2268, %v2270
        %v2272 = vrot.slane %v2162, 1
        %v2273 = vrot.slane %v2092, 1
        %v2274 = vsel %vm472, %v2272, %v2273
        %v2275 = vrot.slane %v2178, 1
        %v2276 = vsel %vm472, %v2273, %v2275
        %v2277 = vrot.slane %v2163, 1
        %v2278 = vrot.slane %v2095, 1
        %v2279 = vsel %vm472, %v2277, %v2278
        %v2280 = vrot.slane %v2179, 1
        %v2281 = vsel %vm472, %v2278, %v2280
        %v2282 = vrot.slane %v2164, 1
        %v2283 = vrot.slane %v2098, 1
        %v2284 = vsel %vm472, %v2282, %v2283
        %v2285 = vrot.slane %v2180, 1
        %v2286 = vsel %vm472, %v2283, %v2285
        %v2317 = vrot.slane %v2150, 2
        %v2318 = vrot.slane %v2056, 2
        %v2319 = vsel %vm585, %v2317, %v2318
        %v2320 = vrot.slane %v2166, 2
        %v2321 = vsel %vm585, %v2318, %v2320
        %v2322 = vrot.slane %v2151, 2
        %v2323 = vrot.slane %v2059, 2
        %v2324 = vsel %vm585, %v2322, %v2323
        %v2325 = vrot.slane %v2167, 2
        %v2326 = vsel %vm585, %v2323, %v2325
        %v2327 = vrot.slane %v2152, 2
        %v2328 = vrot.slane %v2062, 2
        %v2329 = vsel %vm585, %v2327, %v2328
        %v2330 = vrot.slane %v2168, 2
        %v2331 = vsel %vm585, %v2328, %v2330
        %v2332 = vrot.slane %v2153, 2
        %v2333 = vrot.slane %v2065, 2
        %v2334 = vsel %vm585, %v2332, %v2333
        %v2335 = vrot.slane %v2169, 2
        %v2336 = vsel %vm585, %v2333, %v2335
        %v2337 = vrot.slane %v2154, 2
        %v2338 = vrot.slane %v2068, 2
        %v2339 = vsel %vm585, %v2337, %v2338
        %v2340 = vrot.slane %v2170, 2
        %v2341 = vsel %vm585, %v2338, %v2340
        %v2342 = vrot.slane %v2155, 2
        %v2343 = vrot.slane %v2071, 2
        %v2344 = vsel %vm585, %v2342, %v2343
        %v2345 = vrot.slane %v2171, 2
        %v2346 = vsel %vm585, %v2343, %v2345
        %v2347 = vrot.slane %v2156, 2
        %v2348 = vrot.slane %v2074, 2
        %v2349 = vsel %vm585, %v2347, %v2348
        %v2350 = vrot.slane %v2172, 2
        %v2351 = vsel %vm585, %v2348, %v2350
        %v2352 = vrot.slane %v2157, 2
        %v2353 = vrot.slane %v2077, 2
        %v2354 = vsel %vm585, %v2352, %v2353
        %v2355 = vrot.slane %v2173, 2
        %v2356 = vsel %vm585, %v2353, %v2355
        %v2357 = vrot.slane %v2158, 2
        %v2358 = vrot.slane %v2080, 2
        %v2359 = vsel %vm585, %v2357, %v2358
        %v2360 = vrot.slane %v2174, 2
        %v2361 = vsel %vm585, %v2358, %v2360
        %v2362 = vrot.slane %v2159, 2
        %v2363 = vrot.slane %v2083, 2
        %v2364 = vsel %vm585, %v2362, %v2363
        %v2365 = vrot.slane %v2175, 2
        %v2366 = vsel %vm585, %v2363, %v2365
        %v2367 = vrot.slane %v2160, 2
        %v2368 = vrot.slane %v2086, 2
        %v2369 = vsel %vm585, %v2367, %v2368
        %v2370 = vrot.slane %v2176, 2
        %v2371 = vsel %vm585, %v2368, %v2370
        %v2372 = vrot.slane %v2161, 2
        %v2373 = vrot.slane %v2089, 2
        %v2374 = vsel %vm585, %v2372, %v2373
        %v2375 = vrot.slane %v2177, 2
        %v2376 = vsel %vm585, %v2373, %v2375
        %v2377 = vrot.slane %v2162, 2
        %v2378 = vrot.slane %v2092, 2
        %v2379 = vsel %vm585, %v2377, %v2378
        %v2380 = vrot.slane %v2178, 2
        %v2381 = vsel %vm585, %v2378, %v2380
        %v2382 = vrot.slane %v2163, 2
        %v2383 = vrot.slane %v2095, 2
        %v2384 = vsel %vm585, %v2382, %v2383
        %v2385 = vrot.slane %v2179, 2
        %v2386 = vsel %vm585, %v2383, %v2385
        %v2387 = vrot.slane %v2164, 2
        %v2388 = vrot.slane %v2098, 2
        %v2389 = vsel %vm585, %v2387, %v2388
        %v2390 = vrot.slane %v2180, 2
        %v2391 = vsel %vm585, %v2388, %v2390
        %v2424 = vrot.slane %v2165, 1
        %v2425 = vrot.slane %v2101, 1
        %v2426 = vsel %vm472, %v2424, %v2425
        %v2427 = vrot.slane %v2181, 1
        %v2428 = vsel %vm472, %v2425, %v2427
        %v2431 = vrot.slane %v2165, 2
        %v2432 = vrot.slane %v2101, 2
        %v2433 = vsel %vm585, %v2431, %v2432
        %v2434 = vrot.slane %v2181, 2
        %v2435 = vsel %vm585, %v2432, %v2434
        %v2438 = vld [vmem:[%s3] sm:$0xff]
        %v2439 = vld [vmem:[%s3 + $0x8] sm:$0xff]
        %v2440 = vld [vmem:[%s3 + $0x10] sm:$0xff]
        %v2441 = vld [vmem:[%s3 + $0x18] sm:$0xff]
        %v2442 = vld [vmem:[%s3 + $0x20] sm:$0xff]
        %v2443 = vld [vmem:[%s3 + $0x28] sm:$0xff]
        %v2444 = vld [vmem:[%s3 + $0x30] sm:$0xff]
        %v2445 = vld [vmem:[%s3 + $0x38] sm:$0xff]
        %v2446 = vld [vmem:[%s3 + $0x40] sm:$0xff]
        %v2447 = vld [vmem:[%s3 + $0x48] sm:$0xff]
        %v2448 = vld [vmem:[%s3 + $0x50] sm:$0xff]
        %v2449 = vld [vmem:[%s3 + $0x58] sm:$0xff]
        %v2450 = vld [vmem:[%s3 + $0x60] sm:$0xff]
        %v2451 = vld [vmem:[%s3 + $0x68] sm:$0xff]
        %v2452 = vld [vmem:[%s3 + $0x70] sm:$0xff]
        %v2453 = vld [vmem:[%s3 + $0x78] sm:$0xff]
        %v2454 = vld [vmem:[%s3 + $0x80] sm:$0xff]
        %v2455 = vld [vmem:[%s3 + $0x88] sm:$0xff]
        %v2456 = vld [vmem:[%s3 + $0x90] sm:$0xff]
        %v2457 = vld [vmem:[%s3 + $0x98] sm:$0xff]
        %v2458 = vld [vmem:[%s3 + $0xa0] sm:$0xff]
        %v2459 = vld [vmem:[%s3 + $0xa8] sm:$0xff]
        %v2460 = vld [vmem:[%s3 + $0xb0] sm:$0xff]
        %v2461 = vld [vmem:[%s3 + $0xb8] sm:$0xff]
        %v2462 = vld [vmem:[%s3 + $0xc0] sm:$0xff]
        %v2463 = vld [vmem:[%s3 + $0xc8] sm:$0xff]
        %v2464 = vld [vmem:[%s3 + $0xd0] sm:$0xff]
        %v2465 = vld [vmem:[%s3 + $0xd8] sm:$0xff]
        %v2466 = vld [vmem:[%s3 + $0xe0] sm:$0xff]
        %v2467 = vld [vmem:[%s3 + $0xe8] sm:$0xff]
        %v2468 = vld [vmem:[%s3 + $0xf0] sm:$0xff]
        %v2469 = vld [vmem:[%s3 + $0xf8] sm:$0xff]
        %v2470 = vld [vmem:[%s3 + $0x100] sm:$0xff]
        %v2471 = vld [vmem:[%s3 + $0x108] sm:$0xff]
        %v2472 = vld [vmem:[%s3 + $0x110] sm:$0xff]
        %v2473 = vld [vmem:[%s3 + $0x118] sm:$0xff]
        %v2474 = vld [vmem:[%s3 + $0x120] sm:$0xff]
        %v2475 = vld [vmem:[%s3 + $0x128] sm:$0xff]
        %v2476 = vld [vmem:[%s3 + $0x130] sm:$0xff]
        %v2477 = vld [vmem:[%s3 + $0x138] sm:$0xff]
        %v2478 = vld [vmem:[%s3 + $0x140] sm:$0xff]
        %v2479 = vld [vmem:[%s3 + $0x148] sm:$0xff]
        %v2480 = vld [vmem:[%s3 + $0x150] sm:$0xff]
        %v2481 = vld [vmem:[%s3 + $0x158] sm:$0xff]
        %v2482 = vld [vmem:[%s3 + $0x160] sm:$0xff]
        %v2483 = vld [vmem:[%s3 + $0x168] sm:$0xff]
        %v2484 = vld [vmem:[%s3 + $0x170] sm:$0xff]
        %v2485 = vld [vmem:[%s3 + $0x178] sm:$0xff]
        %v2486 = vld [vmem:[%s3 + $0x180] sm:$0xff]
        %v2487 = vld [vmem:[%s3 + $0x188] sm:$0xff]
        %v2488 = vld [vmem:[%s3 + $0x190] sm:$0xff]
        %v2489 = vld [vmem:[%s3 + $0x198] sm:$0xff]
        %v2490 = vld [vmem:[%s3 + $0x1a0] sm:$0xff]
        %v2491 = vld [vmem:[%s3 + $0x1a8] sm:$0xff]
        %v2492 = vld [vmem:[%s3 + $0x1b0] sm:$0xff]
        %v2493 = vld [vmem:[%s3 + $0x1b8] sm:$0xff]
        %v2494 = vld [vmem:[%s3 + $0x1c0] sm:$0xff]
        %v2495 = vld [vmem:[%s3 + $0x1c8] sm:$0xff]
        %v2496 = vld [vmem:[%s3 + $0x1d0] sm:$0xff]
        %v2497 = vld [vmem:[%s3 + $0x1d8] sm:$0xff]
        %v2498 = vld [vmem:[%s3 + $0x1e0] sm:$0xff]
        %v2499 = vld [vmem:[%s3 + $0x1e8] sm:$0xff]
        %v2500 = vld [vmem:[%s3 + $0x1f0] sm:$0xff]
        %v2501 = vld [vmem:[%s3 + $0x1f8] sm:$0xff]
        %v2502 = vld [vmem:[%s3 + $0x200] sm:$0xff]
        %v2503 = vld [vmem:[%s3 + $0x208] sm:$0xff]
        %v2504 = vld [vmem:[%s3 + $0x210] sm:$0xff]
        %v2505 = vld [vmem:[%s3 + $0x218] sm:$0xff]
        %v2506 = vld [vmem:[%s3 + $0x220] sm:$0xff]
        %v2507 = vld [vmem:[%s3 + $0x228] sm:$0xff]
        %v2508 = vld [vmem:[%s3 + $0x230] sm:$0xff]
        %v2509 = vld [vmem:[%s3 + $0x238] sm:$0xff]
        %v2510 = vld [vmem:[%s3 + $0x240] sm:$0xff]
        %v2511 = vld [vmem:[%s3 + $0x248] sm:$0xff]
        %v2512 = vld [vmem:[%s3 + $0x250] sm:$0xff]
        %v2513 = vld [vmem:[%s3 + $0x258] sm:$0xff]
        %v2514 = vld [vmem:[%s3 + $0x260] sm:$0xff]
        %v2515 = vld [vmem:[%s3 + $0x268] sm:$0xff]
        %v2516 = vld [vmem:[%s3 + $0x270] sm:$0xff]
        %v2517 = vld [vmem:[%s3 + $0x278] sm:$0xff]
        %v2518 = vld [vmem:[%s3 + $0x280] sm:$0xff]
        %v2519 = vld [vmem:[%s3 + $0x288] sm:$0xff]
        %v2520 = vld [vmem:[%s3 + $0x290] sm:$0xff]
        %v2521 = vld [vmem:[%s3 + $0x298] sm:$0xff]
        %v2522 = vld [vmem:[%s3 + $0x2a0] sm:$0xff]
        %v2523 = vld [vmem:[%s3 + $0x2a8] sm:$0xff]
        %v2524 = vld [vmem:[%s3 + $0x2b0] sm:$0xff]
        %v2525 = vld [vmem:[%s3 + $0x2b8] sm:$0xff]
        %v2526 = vld [vmem:[%s3 + $0x2c0] sm:$0xff]
        %v2527 = vld [vmem:[%s3 + $0x2c8] sm:$0xff]
        %v2528 = vld [vmem:[%s3 + $0x2d0] sm:$0xff]
        %v2529 = vld [vmem:[%s3 + $0x2d8] sm:$0xff]
        %v2530 = vld [vmem:[%s3 + $0x2e0] sm:$0xff]
        %v2531 = vld [vmem:[%s3 + $0x2e8] sm:$0xff]
        %v2532 = vld [vmem:[%s3 + $0x2f0] sm:$0xff]
        %v2533 = vld [vmem:[%s3 + $0x2f8] sm:$0xff]
        %v2534 = vld [vmem:[%s3 + $0x300] sm:$0xff]
        %v2535 = vld [vmem:[%s3 + $0x308] sm:$0xff]
        %v2536 = vld [vmem:[%s3 + $0x310] sm:$0xff]
        %v2537 = vld [vmem:[%s3 + $0x318] sm:$0xff]
        %v2538 = vld [vmem:[%s3 + $0x320] sm:$0xff]
        %v2539 = vld [vmem:[%s3 + $0x328] sm:$0xff]
        %v2540 = vld [vmem:[%s3 + $0x330] sm:$0xff]
        %v2541 = vld [vmem:[%s3 + $0x338] sm:$0xff]
        %v2542 = vld [vmem:[%s3 + $0x340] sm:$0xff]
        %v2543 = vld [vmem:[%s3 + $0x348] sm:$0xff]
        %v2544 = vld [vmem:[%s3 + $0x350] sm:$0xff]
        %v2545 = vld [vmem:[%s3 + $0x358] sm:$0xff]
        %v2546 = vld [vmem:[%s3 + $0x360] sm:$0xff]
        %v2547 = vld [vmem:[%s3 + $0x368] sm:$0xff]
        %v2548 = vld [vmem:[%s3 + $0x370] sm:$0xff]
        %v2549 = vld [vmem:[%s3 + $0x378] sm:$0xff]
        %v2550 = vld [vmem:[%s3 + $0x380] sm:$0xff]
        %v2551 = vld [vmem:[%s3 + $0x388] sm:$0xff]
        %v2552 = vld [vmem:[%s3 + $0x390] sm:$0xff]
        %v2553 = vld [vmem:[%s3 + $0x398] sm:$0xff]
        %v2554 = vld [vmem:[%s3 + $0x3a0] sm:$0xff]
        %v2555 = vld [vmem:[%s3 + $0x3a8] sm:$0xff]
        %v2556 = vld [vmem:[%s3 + $0x3b0] sm:$0xff]
        %v2557 = vld [vmem:[%s3 + $0x3b8] sm:$0xff]
        %v2558 = vld [vmem:[%s3 + $0x3c0] sm:$0xff]
        %v2559 = vld [vmem:[%s3 + $0x3c8] sm:$0xff]
        %v2560 = vld [vmem:[%s3 + $0x3d0] sm:$0xff]
        %v2561 = vld [vmem:[%s3 + $0x3d8] sm:$0xff]
        %v2562 = vld [vmem:[%s3 + $0x3e0] sm:$0xff]
        %v2563 = vld [vmem:[%s3 + $0x3e8] sm:$0xff]
        %v2564 = vld [vmem:[%s3 + $0x3f0] sm:$0xff]
        %v2565 = vld [vmem:[%s3 + $0x3f8] sm:$0xff]
        %v2566 = vld [vmem:[%s3 + $0x400] sm:$0xff]
        %v2567 = vld [vmem:[%s3 + $0x408] sm:$0xff]
        %v2568 = vld [vmem:[%s3 + $0x410] sm:$0xff]
        %v2569 = vld [vmem:[%s3 + $0x418] sm:$0xff]
        %v2570 = vld [vmem:[%s3 + $0x420] sm:$0xff]
        %v2571 = vld [vmem:[%s3 + $0x428] sm:$0xff]
        %v2572 = vld [vmem:[%s3 + $0x430] sm:$0xff]
        %v2573 = vld [vmem:[%s3 + $0x438] sm:$0xff]
        %v2574 = vld [vmem:[%s3 + $0x440] sm:$0xff]
        %v2575 = vld [vmem:[%s3 + $0x448] sm:$0xff]
        %v2576 = vld [vmem:[%s3 + $0x450] sm:$0xff]
        %v2577 = vld [vmem:[%s3 + $0x458] sm:$0xff]
        %v2578 = vld [vmem:[%s3 + $0x460] sm:$0xff]
        %v2579 = vld [vmem:[%s3 + $0x468] sm:$0xff]
        %v2580 = vld [vmem:[%s3 + $0x470] sm:$0xff]
        %v2581 = vld [vmem:[%s3 + $0x478] sm:$0xff]
        %v2582 = vld [vmem:[%s4] sm:$0x1]
        %v2584 = vlaneseq
        %v2585 = vshrl.u32 %v2584, 7
        %v2586 = vsub.s32 0, %v2585
        %v2587 = vrot.slane %v2582, %v2586
        %2589 = vmatprep.subr.mxu0 0.0
        %2590 = vmatpush1.msra.mxu0 %v2438
        %2591 = vmatprep.subr.mxu0 0.0
        %2592 = vmatpush1.msra.mxu0 %v2439
        %2593 = vmatprep.subr.mxu0 0.0
        %2594 = vmatpush1.msra.mxu0 %v2440
        %2595 = vmatprep.subr.mxu0 0.0
        %2596 = vmatpush1.msra.mxu0 %v2441
        %2597 = vmatprep.subr.mxu0 0.0
        %2598 = vmatpush1.msra.mxu0 %v2442
        %2599 = vmatprep.subr.mxu0 0.0
        %2600 = vmatpush1.msra.mxu0 %v2443
        %2601 = vmatprep.subr.mxu0 0.0
        %2602 = vmatpush1.msra.mxu0 %v2444
        %2603 = vmatprep.subr.mxu0 0.0
        %2604 = vmatpush1.msra.mxu0 %v2445
        %2605 = vmatprep.subr.mxu0 0.0
        %2606 = vmatpush1.msra.mxu0 %v2446
        %2607 = vmatprep.subr.mxu0 0.0
        %2608 = vmatpush1.msra.mxu0 %v2447
        %2609 = vmatprep.subr.mxu0 0.0
        %2610 = vmatpush1.msra.mxu0 %v2448
        %2611 = vmatprep.subr.mxu0 0.0
        %2612 = vmatpush1.msra.mxu0 %v2449
        %2613 = vmatprep.subr.mxu0 0.0
        %2614 = vmatpush1.msra.mxu0 %v2450
        %2615 = vmatprep.subr.mxu0 0.0
        %2616 = vmatpush1.msra.mxu0 %v2451
        %2617 = vmatprep.subr.mxu0 0.0
        %2618 = vmatpush1.msra.mxu0 %v2452
        %2619 = vmatprep.subr.mxu0 0.0
        %2620 = vmatpush1.msra.mxu0 %v2453
        %2621 = vmatprep.subr.mxu0 0.0
        %2622 = vmatpush1.msra.mxu0 %v2454
        %2623 = vmatprep.subr.mxu0 0.0
        %2624 = vmatpush1.msra.mxu0 %v2455
        %2625 = vmatprep.subr.mxu0 0.0
        %2626 = vmatpush1.msra.mxu0 %v2456
        %2627 = vmatprep.subr.mxu0 0.0
        %2628 = vmatpush1.msra.mxu0 %v2457
        %2629 = vmatprep.subr.mxu0 0.0
        %2630 = vmatpush1.msra.mxu0 %v2458
        %2631 = vmatprep.subr.mxu0 0.0
        %2632 = vmatpush1.msra.mxu0 %v2459
        %2633 = vmatprep.subr.mxu0 0.0
        %2634 = vmatpush1.msra.mxu0 %v2460
        %2635 = vmatprep.subr.mxu0 0.0
        %2636 = vmatpush1.msra.mxu0 %v2461
        %2637 = vmatprep.subr.mxu0 0.0
        %2638 = vmatpush1.msra.mxu0 %v2462
        %2639 = vmatprep.subr.mxu0 0.0
        %2640 = vmatpush1.msra.mxu0 %v2463
        %2641 = vmatprep.subr.mxu0 0.0
        %2642 = vmatpush1.msra.mxu0 %v2464
        %2643 = vmatprep.subr.mxu0 0.0
        %2644 = vmatpush1.msra.mxu0 %v2465
        %2645 = vmatprep.subr.mxu0 0.0
        %2646 = vmatpush1.msra.mxu0 %v2466
        %2647 = vmatprep.subr.mxu0 0.0
        %2648 = vmatpush1.msra.mxu0 %v2467
        %2649 = vmatprep.subr.mxu0 0.0
        %2650 = vmatpush1.msra.mxu0 %v2468
        %2651 = vmatprep.subr.mxu0 0.0
        %2652 = vmatpush1.msra.mxu0 %v2469
        %2653 = vmatprep.mubr.f32.mxu0 %v475
        %2654 = vmatmul.mubr.f32.gmra.mrb[0].mxu0 %v406
        %v2655 = vpop.f32.mrb[0].mxu0
        %v2656 = vadd.f32 %v2587, %v2655
        %v2657 = vpop.f32.mrb[0].mxu0
        %2658 = vmatprep.mubr.f32.mxu0 %v477
        %2659 = vmatmul.mubr.f32.gmra.mrb[0].mxu0 %v307
        %v2660 = vpop.f32.mrb[0].mxu0
        %v2661 = vadd.f32 %v2587, %v2660
        %v2662 = vpop.f32.mrb[0].mxu0
        %2663 = vmatprep.mubr.f32.mxu0 %v2214
        %2664 = vmatmul.mubr.f32.gmra.mrb[0].mxu0 %v2150
        %v2665 = vpop.f32.mrb[0].mxu0
        %v2666 = vadd.f32 %v2587, %v2665
        %v2667 = vpop.f32.mrb[0].mxu0
        %2668 = vmatprep.mubr.f32.mxu0 %v2216
        %2669 = vmatmul.mubr.f32.gmra.mrb[0].mxu0 %v2056
        %v2670 = vpop.f32.mrb[0].mxu0
        %v2671 = vadd.f32 %v2587, %v2670
        %v2672 = vpop.f32.mrb[0].mxu0
        %2673 = vmatprep.mubr.f32.mxu0 %v2219
        %2674 = vmatmul.mubr.f32.gmra.mrb[0].mxu0 %v2151
        %v2675 = vpop.f32.mrb[0].mxu0
        %v2676 = vadd.f32 %v2587, %v2675
        %v2677 = vpop.f32.mrb[0].mxu0
        %2678 = vmatprep.mubr.f32.mxu0 %v2221
        %2679 = vmatmul.mubr.f32.gmra.mrb[0].mxu0 %v2059
        %v2680 = vpop.f32.mrb[0].mxu0
        %v2681 = vadd.f32 %v2587, %v2680
        %v2682 = vpop.f32.mrb[0].mxu0
        %2683 = vmatprep.mubr.f32.mxu0 %v2224
        %2684 = vmatmul.mubr.f32.gmra.mrb[0].mxu0 %v2152
        %v2685 = vpop.f32.mrb[0].mxu0
        %v2686 = vadd.f32 %v2587, %v2685
        %v2687 = vpop.f32.mrb[0].mxu0
        %2688 = vmatprep.mubr.f32.mxu0 %v2226
        %2689 = vmatmul.mubr.f32.gmra.mrb[0].mxu0 %v2062
        %v2690 = vpop.f32.mrb[0].mxu0
        %v2691 = vadd.f32 %v2587, %v2690
        %v2692 = vpop.f32.mrb[0].mxu0
        %2693 = vmatprep.mubr.f32.mxu0 %v2229
        %2694 = vmatmul.mubr.f32.gmra.mrb[0].mxu0 %v2153
        %v2695 = vpop.f32.mrb[0].mxu0
        %v2696 = vadd.f32 %v2587, %v2695
        %v2697 = vpop.f32.mrb[0].mxu0
        %2698 = vmatprep.mubr.f32.mxu0 %v2231
        %2699 = vmatmul.mubr.f32.gmra.mrb[0].mxu0 %v2065
        %v2700 = vpop.f32.mrb[0].mxu0
        %v2701 = vadd.f32 %v2587, %v2700
        %v2702 = vpop.f32.mrb[0].mxu0
        %2703 = vmatprep.mubr.f32.mxu0 %v2234
        %2704 = vmatmul.mubr.f32.gmra.mrb[0].mxu0 %v2154
        %v2705 = vpop.f32.mrb[0].mxu0
        %v2706 = vadd.f32 %v2587, %v2705
        %v2707 = vpop.f32.mrb[0].mxu0
        %2708 = vmatprep.mubr.f32.mxu0 %v2236
        %2709 = vmatmul.mubr.f32.gmra.mrb[0].mxu0 %v2068
        %v2710 = vpop.f32.mrb[0].mxu0
        %v2711 = vadd.f32 %v2587, %v2710
        %v2712 = vpop.f32.mrb[0].mxu0
        %2713 = vmatprep.mubr.f32.mxu0 %v2239
        %2714 = vmatmul.mubr.f32.gmra.mrb[0].mxu0 %v2155
        %v2715 = vpop.f32.mrb[0].mxu0
        %v2716 = vadd.f32 %v2587, %v2715
        %v2717 = vpop.f32.mrb[0].mxu0
        %2718 = vmatprep.mubr.f32.mxu0 %v2241
        %2719 = vmatmul.mubr.f32.gmra.mrb[0].mxu0 %v2071
        %v2720 = vpop.f32.mrb[0].mxu0
        %v2721 = vadd.f32 %v2587, %v2720
        %v2722 = vpop.f32.mrb[0].mxu0
        %2723 = vmatprep.mubr.f32.mxu0 %v2244
        %2724 = vmatmul.mubr.f32.gmra.mrb[0].mxu0 %v2156
        %v2725 = vpop.f32.mrb[0].mxu0
        %v2726 = vadd.f32 %v2587, %v2725
        %v2727 = vpop.f32.mrb[0].mxu0
        %2728 = vmatprep.mubr.f32.mxu0 %v2246
        %2729 = vmatmul.mubr.f32.gmra.mrb[0].mxu0 %v2074
        %v2730 = vpop.f32.mrb[0].mxu0
        %v2731 = vadd.f32 %v2587, %v2730
        %v2732 = vpop.f32.mrb[0].mxu0
        %2733 = vmatprep.mubr.f32.mxu0 %v2249
        %2734 = vmatmul.mubr.f32.gmra.mrb[0].mxu0 %v2157
        %v2735 = vpop.f32.mrb[0].mxu0
        %v2736 = vadd.f32 %v2587, %v2735
        %v2737 = vpop.f32.mrb[0].mxu0
        %2738 = vmatprep.mubr.f32.mxu0 %v2251
        %2739 = vmatmul.mubr.f32.gmra.mrb[0].mxu0 %v2077
        %v2740 = vpop.f32.mrb[0].mxu0
        %v2741 = vadd.f32 %v2587, %v2740
        %v2742 = vpop.f32.mrb[0].mxu0
        %2743 = vmatprep.mubr.f32.mxu0 %v2254
        %2744 = vmatmul.mubr.f32.gmra.mrb[0].mxu0 %v2158
        %v2745 = vpop.f32.mrb[0].mxu0
        %v2746 = vadd.f32 %v2587, %v2745
        %v2747 = vpop.f32.mrb[0].mxu0
        %2748 = vmatprep.mubr.f32.mxu0 %v2256
        %2749 = vmatmul.mubr.f32.gmra.mrb[0].mxu0 %v2080
        %v2750 = vpop.f32.mrb[0].mxu0
        %v2751 = vadd.f32 %v2587, %v2750
        %v2752 = vpop.f32.mrb[0].mxu0
        %2753 = vmatprep.mubr.f32.mxu0 %v2259
        %2754 = vmatmul.mubr.f32.gmra.mrb[0].mxu0 %v2159
        %v2755 = vpop.f32.mrb[0].mxu0
        %v2756 = vadd.f32 %v2587, %v2755
        %v2757 = vpop.f32.mrb[0].mxu0
        %2758 = vmatprep.mubr.f32.mxu0 %v2261
        %2759 = vmatmul.mubr.f32.gmra.mrb[0].mxu0 %v2083
        %v2760 = vpop.f32.mrb[0].mxu0
        %v2761 = vadd.f32 %v2587, %v2760
        %v2762 = vpop.f32.mrb[0].mxu0
        %2763 = vmatprep.mubr.f32.mxu0 %v2264
        %2764 = vmatmul.mubr.f32.gmra.mrb[0].mxu0 %v2160
        %v2765 = vpop.f32.mrb[0].mxu0
        %v2766 = vadd.f32 %v2587, %v2765
        %v2767 = vpop.f32.mrb[0].mxu0
        %2768 = vmatprep.mubr.f32.mxu0 %v2266
        %2769 = vmatmul.mubr.f32.gmra.mrb[0].mxu0 %v2086
        %v2770 = vpop.f32.mrb[0].mxu0
        %v2771 = vadd.f32 %v2587, %v2770
        %v2772 = vpop.f32.mrb[0].mxu0
        %2773 = vmatprep.mubr.f32.mxu0 %v2269
        %2774 = vmatmul.mubr.f32.gmra.mrb[0].mxu0 %v2161
        %v2775 = vpop.f32.mrb[0].mxu0
        %v2776 = vadd.f32 %v2587, %v2775
        %v2777 = vpop.f32.mrb[0].mxu0
        %2778 = vmatprep.mubr.f32.mxu0 %v2271
        %2779 = vmatmul.mubr.f32.gmra.mrb[0].mxu0 %v2089
        %v2780 = vpop.f32.mrb[0].mxu0
        %v2781 = vadd.f32 %v2587, %v2780
        %v2782 = vpop.f32.mrb[0].mxu0
        %2783 = vmatprep.mubr.f32.mxu0 %v2274
        %2784 = vmatmul.mubr.f32.gmra.mrb[0].mxu0 %v2162
        %v2785 = vpop.f32.mrb[0].mxu0
        %v2786 = vadd.f32 %v2587, %v2785
        %v2787 = vpop.f32.mrb[0].mxu0
        %2788 = vmatprep.mubr.f32.mxu0 %v2276
        %2789 = vmatmul.mubr.f32.gmra.mrb[0].mxu0 %v2092
        %v2790 = vpop.f32.mrb[0].mxu0
        %v2791 = vadd.f32 %v2587, %v2790
        %v2792 = vpop.f32.mrb[0].mxu0
        %2793 = vmatprep.mubr.f32.mxu0 %v2279
        %2794 = vmatmul.mubr.f32.gmra.mrb[0].mxu0 %v2163
        %v2795 = vpop.f32.mrb[0].mxu0
        %v2796 = vadd.f32 %v2587, %v2795
        %v2797 = vpop.f32.mrb[0].mxu0
        %2798 = vmatprep.mubr.f32.mxu0 %v2281
        %2799 = vmatmul.mubr.f32.gmra.mrb[0].mxu0 %v2095
        %v2800 = vpop.f32.mrb[0].mxu0
        %v2801 = vadd.f32 %v2587, %v2800
        %v2802 = vpop.f32.mrb[0].mxu0
        %2803 = vmatprep.mubr.f32.mxu0 %v2284
        %2804 = vmatmul.mubr.f32.gmra.mrb[0].mxu0 %v2164
        %v2805 = vpop.f32.mrb[0].mxu0
        %v2806 = vadd.f32 %v2587, %v2805
        %v2807 = vpop.f32.mrb[0].mxu0
        %2808 = vmatprep.mubr.f32.mxu0 %v2286
        %2809 = vmatmul.mubr.f32.gmra.mrb[0].mxu0 %v2098
        %v2810 = vpop.f32.mrb[0].mxu0
        %v2811 = vadd.f32 %v2587, %v2810
        %v2812 = vpop.f32.mrb[0].mxu0
        %2813 = vdwg.mxu0
        %2814 = vmatprep.subr.mxu0 0.0
        %2815 = vmatpush1.msra.mxu0 %v2470
        %2816 = vmatprep.subr.mxu0 0.0
        %2817 = vmatpush1.msra.mxu0 %v2471
        %2818 = vmatprep.subr.mxu0 0.0
        %2819 = vmatpush1.msra.mxu0 %v2472
        %2820 = vmatprep.subr.mxu0 0.0
        %2821 = vmatpush1.msra.mxu0 %v2473
        %2822 = vmatprep.subr.mxu0 0.0
        %2823 = vmatpush1.msra.mxu0 %v2474
        %2824 = vmatprep.subr.mxu0 0.0
        %2825 = vmatpush1.msra.mxu0 %v2475
        %2826 = vmatprep.subr.mxu0 0.0
        %2827 = vmatpush1.msra.mxu0 %v2476
        %2828 = vmatprep.subr.mxu0 0.0
        %2829 = vmatpush1.msra.mxu0 %v2477
        %2830 = vmatprep.subr.mxu0 0.0
        %2831 = vmatpush1.msra.mxu0 %v2478
        %2832 = vmatprep.subr.mxu0 0.0
        %2833 = vmatpush1.msra.mxu0 %v2479
        %2834 = vmatprep.subr.mxu0 0.0
        %2835 = vmatpush1.msra.mxu0 %v2480
        %2836 = vmatprep.subr.mxu0 0.0
        %2837 = vmatpush1.msra.mxu0 %v2481
        %2838 = vmatprep.subr.mxu0 0.0
        %2839 = vmatpush1.msra.mxu0 %v2482
        %2840 = vmatprep.subr.mxu0 0.0
        %2841 = vmatpush1.msra.mxu0 %v2483
        %2842 = vmatprep.subr.mxu0 0.0
        %2843 = vmatpush1.msra.mxu0 %v2484
        %2844 = vmatprep.subr.mxu0 0.0
        %2845 = vmatpush1.msra.mxu0 %v2485
        %2846 = vmatprep.subr.mxu0 0.0
        %2847 = vmatpush1.msra.mxu0 %v2486
        %2848 = vmatprep.subr.mxu0 0.0
        %2849 = vmatpush1.msra.mxu0 %v2487
        %2850 = vmatprep.subr.mxu0 0.0
        %2851 = vmatpush1.msra.mxu0 %v2488
        %2852 = vmatprep.subr.mxu0 0.0
        %2853 = vmatpush1.msra.mxu0 %v2489
        %2854 = vmatprep.subr.mxu0 0.0
        %2855 = vmatpush1.msra.mxu0 %v2490
        %2856 = vmatprep.subr.mxu0 0.0
        %2857 = vmatpush1.msra.mxu0 %v2491
        %2858 = vmatprep.subr.mxu0 0.0
        %2859 = vmatpush1.msra.mxu0 %v2492
        %2860 = vmatprep.subr.mxu0 0.0
        %2861 = vmatpush1.msra.mxu0 %v2493
        %2862 = vmatprep.subr.mxu0 0.0
        %2863 = vmatpush1.msra.mxu0 %v2494
        %2864 = vmatprep.subr.mxu0 0.0
        %2865 = vmatpush1.msra.mxu0 %v2495
        %2866 = vmatprep.subr.mxu0 0.0
        %2867 = vmatpush1.msra.mxu0 %v2496
        %2868 = vmatprep.subr.mxu0 0.0
        %2869 = vmatpush1.msra.mxu0 %v2497
        %2870 = vmatprep.subr.mxu0 0.0
        %2871 = vmatpush1.msra.mxu0 %v2498
        %2872 = vmatprep.subr.mxu0 0.0
        %2873 = vmatpush1.msra.mxu0 %v2499
        %2874 = vmatprep.subr.mxu0 0.0
        %2875 = vmatpush1.msra.mxu0 %v2500
        %2876 = vmatprep.subr.mxu0 0.0
        %2877 = vmatpush1.msra.mxu0 %v2501
        %2878 = vmatprep.mubr.f32.mxu0 %v2150
        %2879 = vmatmul.mubr.f32.gmra.mrb[0].mxu0 %v588
        %v2880 = vpop.f32.mrb[0].mxu0
        %v2881 = vadd.f32 %v2656, %v2880
        %v2882 = vpop.f32.mrb[0].mxu0
        %2883 = vmatprep.mubr.f32.mxu0 %v2056
        %2884 = vmatmul.mubr.f32.gmra.mrb[0].mxu0 %v590
        %v2885 = vpop.f32.mrb[0].mxu0
        %v2886 = vadd.f32 %v2661, %v2885
        %v2887 = vpop.f32.mrb[0].mxu0
        %2888 = vmatprep.mubr.f32.mxu0 %v2151
        %2889 = vmatmul.mubr.f32.gmra.mrb[0].mxu0 %v2319
        %v2890 = vpop.f32.mrb[0].mxu0
        %v2891 = vadd.f32 %v2666, %v2890
        %v2892 = vpop.f32.mrb[0].mxu0
        %2893 = vmatprep.mubr.f32.mxu0 %v2059
        %2894 = vmatmul.mubr.f32.gmra.mrb[0].mxu0 %v2321
        %v2895 = vpop.f32.mrb[0].mxu0
        %v2896 = vadd.f32 %v2671, %v2895
        %v2897 = vpop.f32.mrb[0].mxu0
        %2898 = vmatprep.mubr.f32.mxu0 %v2152
        %2899 = vmatmul.mubr.f32.gmra.mrb[0].mxu0 %v2324
        %v2900 = vpop.f32.mrb[0].mxu0
        %v2901 = vadd.f32 %v2676, %v2900
        %v2902 = vpop.f32.mrb[0].mxu0
        %2903 = vmatprep.mubr.f32.mxu0 %v2062
        %2904 = vmatmul.mubr.f32.gmra.mrb[0].mxu0 %v2326
        %v2905 = vpop.f32.mrb[0].mxu0
        %v2906 = vadd.f32 %v2681, %v2905
        %v2907 = vpop.f32.mrb[0].mxu0
        %2908 = vmatprep.mubr.f32.mxu0 %v2153
        %2909 = vmatmul.mubr.f32.gmra.mrb[0].mxu0 %v2329
        %v2910 = vpop.f32.mrb[0].mxu0
        %v2911 = vadd.f32 %v2686, %v2910
        %v2912 = vpop.f32.mrb[0].mxu0
        %2913 = vmatprep.mubr.f32.mxu0 %v2065
        %2914 = vmatmul.mubr.f32.gmra.mrb[0].mxu0 %v2331
        %v2915 = vpop.f32.mrb[0].mxu0
        %v2916 = vadd.f32 %v2691, %v2915
        %v2917 = vpop.f32.mrb[0].mxu0
        %2918 = vmatprep.mubr.f32.mxu0 %v2154
        %2919 = vmatmul.mubr.f32.gmra.mrb[0].mxu0 %v2334
        %v2920 = vpop.f32.mrb[0].mxu0
        %v2921 = vadd.f32 %v2696, %v2920
        %v2922 = vpop.f32.mrb[0].mxu0
        %2923 = vmatprep.mubr.f32.mxu0 %v2068
        %2924 = vmatmul.mubr.f32.gmra.mrb[0].mxu0 %v2336
        %v2925 = vpop.f32.mrb[0].mxu0
        %v2926 = vadd.f32 %v2701, %v2925
        %v2927 = vpop.f32.mrb[0].mxu0
        %2928 = vmatprep.mubr.f32.mxu0 %v2155
        %2929 = vmatmul.mubr.f32.gmra.mrb[0].mxu0 %v2339
        %v2930 = vpop.f32.mrb[0].mxu0
        %v2931 = vadd.f32 %v2706, %v2930
        %v2932 = vpop.f32.mrb[0].mxu0
        %2933 = vmatprep.mubr.f32.mxu0 %v2071
        %2934 = vmatmul.mubr.f32.gmra.mrb[0].mxu0 %v2341
        %v2935 = vpop.f32.mrb[0].mxu0
        %v2936 = vadd.f32 %v2711, %v2935
        %v2937 = vpop.f32.mrb[0].mxu0
        %2938 = vmatprep.mubr.f32.mxu0 %v2156
        %2939 = vmatmul.mubr.f32.gmra.mrb[0].mxu0 %v2344
        %v2940 = vpop.f32.mrb[0].mxu0
        %v2941 = vadd.f32 %v2716, %v2940
        %v2942 = vpop.f32.mrb[0].mxu0
        %2943 = vmatprep.mubr.f32.mxu0 %v2074
        %2944 = vmatmul.mubr.f32.gmra.mrb[0].mxu0 %v2346
        %v2945 = vpop.f32.mrb[0].mxu0
        %v2946 = vadd.f32 %v2721, %v2945
        %v2947 = vpop.f32.mrb[0].mxu0
        %2948 = vmatprep.mubr.f32.mxu0 %v2157
        %2949 = vmatmul.mubr.f32.gmra.mrb[0].mxu0 %v2349
        %v2950 = vpop.f32.mrb[0].mxu0
        %v2951 = vadd.f32 %v2726, %v2950
        %v2952 = vpop.f32.mrb[0].mxu0
        %2953 = vmatprep.mubr.f32.mxu0 %v2077
        %2954 = vmatmul.mubr.f32.gmra.mrb[0].mxu0 %v2351
        %v2955 = vpop.f32.mrb[0].mxu0
        %v2956 = vadd.f32 %v2731, %v2955
        %v2957 = vpop.f32.mrb[0].mxu0
        %2958 = vmatprep.mubr.f32.mxu0 %v2158
        %2959 = vmatmul.mubr.f32.gmra.mrb[0].mxu0 %v2354
        %v2960 = vpop.f32.mrb[0].mxu0
        %v2961 = vadd.f32 %v2736, %v2960
        %v2962 = vpop.f32.mrb[0].mxu0
        %2963 = vmatprep.mubr.f32.mxu0 %v2080
        %2964 = vmatmul.mubr.f32.gmra.mrb[0].mxu0 %v2356
        %v2965 = vpop.f32.mrb[0].mxu0
        %v2966 = vadd.f32 %v2741, %v2965
        %v2967 = vpop.f32.mrb[0].mxu0
        %2968 = vmatprep.mubr.f32.mxu0 %v2159
        %2969 = vmatmul.mubr.f32.gmra.mrb[0].mxu0 %v2359
        %v2970 = vpop.f32.mrb[0].mxu0
        %v2971 = vadd.f32 %v2746, %v2970
        %v2972 = vpop.f32.mrb[0].mxu0
        %2973 = vmatprep.mubr.f32.mxu0 %v2083
        %2974 = vmatmul.mubr.f32.gmra.mrb[0].mxu0 %v2361
        %v2975 = vpop.f32.mrb[0].mxu0
        %v2976 = vadd.f32 %v2751, %v2975
        %v2977 = vpop.f32.mrb[0].mxu0
        %2978 = vmatprep.mubr.f32.mxu0 %v2160
        %2979 = vmatmul.mubr.f32.gmra.mrb[0].mxu0 %v2364
        %v2980 = vpop.f32.mrb[0].mxu0
        %v2981 = vadd.f32 %v2756, %v2980
        %v2982 = vpop.f32.mrb[0].mxu0
        %2983 = vmatprep.mubr.f32.mxu0 %v2086
        %2984 = vmatmul.mubr.f32.gmra.mrb[0].mxu0 %v2366
        %v2985 = vpop.f32.mrb[0].mxu0
        %v2986 = vadd.f32 %v2761, %v2985
        %v2987 = vpop.f32.mrb[0].mxu0
        %2988 = vmatprep.mubr.f32.mxu0 %v2161
        %2989 = vmatmul.mubr.f32.gmra.mrb[0].mxu0 %v2369
        %v2990 = vpop.f32.mrb[0].mxu0
        %v2991 = vadd.f32 %v2766, %v2990
        %v2992 = vpop.f32.mrb[0].mxu0
        %2993 = vmatprep.mubr.f32.mxu0 %v2089
        %2994 = vmatmul.mubr.f32.gmra.mrb[0].mxu0 %v2371
        %v2995 = vpop.f32.mrb[0].mxu0
        %v2996 = vadd.f32 %v2771, %v2995
        %v2997 = vpop.f32.mrb[0].mxu0
        %2998 = vmatprep.mubr.f32.mxu0 %v2162
        %2999 = vmatmul.mubr.f32.gmra.mrb[0].mxu0 %v2374
        %v3000 = vpop.f32.mrb[0].mxu0
        %v3001 = vadd.f32 %v2776, %v3000
        %v3002 = vpop.f32.mrb[0].mxu0
        %3003 = vmatprep.mubr.f32.mxu0 %v2092
        %3004 = vmatmul.mubr.f32.gmra.mrb[0].mxu0 %v2376
        %v3005 = vpop.f32.mrb[0].mxu0
        %v3006 = vadd.f32 %v2781, %v3005
        %v3007 = vpop.f32.mrb[0].mxu0
        %3008 = vmatprep.mubr.f32.mxu0 %v2163
        %3009 = vmatmul.mubr.f32.gmra.mrb[0].mxu0 %v2379
        %v3010 = vpop.f32.mrb[0].mxu0
        %v3011 = vadd.f32 %v2786, %v3010
        %v3012 = vpop.f32.mrb[0].mxu0
        %3013 = vmatprep.mubr.f32.mxu0 %v2095
        %3014 = vmatmul.mubr.f32.gmra.mrb[0].mxu0 %v2381
        %v3015 = vpop.f32.mrb[0].mxu0
        %v3016 = vadd.f32 %v2791, %v3015
        %v3017 = vpop.f32.mrb[0].mxu0
        %3018 = vmatprep.mubr.f32.mxu0 %v2164
        %3019 = vmatmul.mubr.f32.gmra.mrb[0].mxu0 %v2384
        %v3020 = vpop.f32.mrb[0].mxu0
        %v3021 = vadd.f32 %v2796, %v3020
        %v3022 = vpop.f32.mrb[0].mxu0
        %3023 = vmatprep.mubr.f32.mxu0 %v2098
        %3024 = vmatmul.mubr.f32.gmra.mrb[0].mxu0 %v2386
        %v3025 = vpop.f32.mrb[0].mxu0
        %v3026 = vadd.f32 %v2801, %v3025
        %v3027 = vpop.f32.mrb[0].mxu0
        %3028 = vmatprep.mubr.f32.mxu0 %v2165
        %3029 = vmatmul.mubr.f32.gmra.mrb[0].mxu0 %v2389
        %v3030 = vpop.f32.mrb[0].mxu0
        %v3031 = vadd.f32 %v2806, %v3030
        %v3032 = vpop.f32.mrb[0].mxu0
        %3033 = vmatprep.mubr.f32.mxu0 %v2101
        %3034 = vmatmul.mubr.f32.gmra.mrb[0].mxu0 %v2391
        %v3035 = vpop.f32.mrb[0].mxu0
        %v3036 = vadd.f32 %v2811, %v3035
        %v3037 = vpop.f32.mrb[0].mxu0
        %3038 = vdwg.mxu0
        %3039 = vmatprep.subr.mxu0 0.0
        %3040 = vmatpush1.msra.mxu0 %v2502
        %3041 = vmatprep.subr.mxu0 0.0
        %3042 = vmatpush1.msra.mxu0 %v2503
        %3043 = vmatprep.subr.mxu0 0.0
        %3044 = vmatpush1.msra.mxu0 %v2504
        %3045 = vmatprep.subr.mxu0 0.0
        %3046 = vmatpush1.msra.mxu0 %v2505
        %3047 = vmatprep.subr.mxu0 0.0
        %3048 = vmatpush1.msra.mxu0 %v2506
        %3049 = vmatprep.subr.mxu0 0.0
        %3050 = vmatpush1.msra.mxu0 %v2507
        %3051 = vmatprep.subr.mxu0 0.0
        %3052 = vmatpush1.msra.mxu0 %v2508
        %3053 = vmatprep.subr.mxu0 0.0
        %3054 = vmatpush1.msra.mxu0 %v2509
        %3055 = vmatprep.subr.mxu0 0.0
        %3056 = vmatpush1.msra.mxu0 %v2510
        %3057 = vmatprep.subr.mxu0 0.0
        %3058 = vmatpush1.msra.mxu0 %v2511
        %3059 = vmatprep.subr.mxu0 0.0
        %3060 = vmatpush1.msra.mxu0 %v2512
        %3061 = vmatprep.subr.mxu0 0.0
        %3062 = vmatpush1.msra.mxu0 %v2513
        %3063 = vmatprep.subr.mxu0 0.0
        %3064 = vmatpush1.msra.mxu0 %v2514
        %3065 = vmatprep.subr.mxu0 0.0
        %3066 = vmatpush1.msra.mxu0 %v2515
        %3067 = vmatprep.subr.mxu0 0.0
        %3068 = vmatpush1.msra.mxu0 %v2516
        %3069 = vmatprep.subr.mxu0 0.0
        %3070 = vmatpush1.msra.mxu0 %v2517
        %3071 = vmatprep.subr.mxu0 0.0
        %3072 = vmatpush1.msra.mxu0 %v2518
        %3073 = vmatprep.subr.mxu0 0.0
        %3074 = vmatpush1.msra.mxu0 %v2519
        %3075 = vmatprep.subr.mxu0 0.0
        %3076 = vmatpush1.msra.mxu0 %v2520
        %3077 = vmatprep.subr.mxu0 0.0
        %3078 = vmatpush1.msra.mxu0 %v2521
        %3079 = vmatprep.subr.mxu0 0.0
        %3080 = vmatpush1.msra.mxu0 %v2522
        %3081 = vmatprep.subr.mxu0 0.0
        %3082 = vmatpush1.msra.mxu0 %v2523
        %3083 = vmatprep.subr.mxu0 0.0
        %3084 = vmatpush1.msra.mxu0 %v2524
        %3085 = vmatprep.subr.mxu0 0.0
        %3086 = vmatpush1.msra.mxu0 %v2525
        %3087 = vmatprep.subr.mxu0 0.0
        %3088 = vmatpush1.msra.mxu0 %v2526
        %3089 = vmatprep.subr.mxu0 0.0
        %3090 = vmatpush1.msra.mxu0 %v2527
        %3091 = vmatprep.subr.mxu0 0.0
        %3092 = vmatpush1.msra.mxu0 %v2528
        %3093 = vmatprep.subr.mxu0 0.0
        %3094 = vmatpush1.msra.mxu0 %v2529
        %3095 = vmatprep.subr.mxu0 0.0
        %3096 = vmatpush1.msra.mxu0 %v2530
        %3097 = vmatprep.subr.mxu0 0.0
        %3098 = vmatpush1.msra.mxu0 %v2531
        %3099 = vmatprep.subr.mxu0 0.0
        %3100 = vmatpush1.msra.mxu0 %v2532
        %3101 = vmatprep.subr.mxu0 0.0
        %3102 = vmatpush1.msra.mxu0 %v2533
        %3103 = vmatprep.mubr.f32.mxu0 %v2319
        %3104 = vmatmul.mubr.f32.gmra.mrb[0].mxu0 %v2214
        %v3105 = vpop.f32.mrb[0].mxu0
        %v3106 = vadd.f32 %v2881, %v3105
        %v3107 = vpop.f32.mrb[0].mxu0
        %3108 = vmatprep.mubr.f32.mxu0 %v2321
        %3109 = vmatmul.mubr.f32.gmra.mrb[0].mxu0 %v2216
        %v3110 = vpop.f32.mrb[0].mxu0
        %v3111 = vadd.f32 %v2886, %v3110
        %v3112 = vpop.f32.mrb[0].mxu0
        %3113 = vmatprep.mubr.f32.mxu0 %v2324
        %3114 = vmatmul.mubr.f32.gmra.mrb[0].mxu0 %v2219
        %v3115 = vpop.f32.mrb[0].mxu0
        %v3116 = vadd.f32 %v2891, %v3115
        %v3117 = vpop.f32.mrb[0].mxu0
        %3118 = vmatprep.mubr.f32.mxu0 %v2326
        %3119 = vmatmul.mubr.f32.gmra.mrb[0].mxu0 %v2221
        %v3120 = vpop.f32.mrb[0].mxu0
        %v3121 = vadd.f32 %v2896, %v3120
        %v3122 = vpop.f32.mrb[0].mxu0
        %3123 = vmatprep.mubr.f32.mxu0 %v2329
        %3124 = vmatmul.mubr.f32.gmra.mrb[0].mxu0 %v2224
        %v3125 = vpop.f32.mrb[0].mxu0
        %v3126 = vadd.f32 %v2901, %v3125
        %v3127 = vpop.f32.mrb[0].mxu0
        %3128 = vmatprep.mubr.f32.mxu0 %v2331
        %3129 = vmatmul.mubr.f32.gmra.mrb[0].mxu0 %v2226
        %v3130 = vpop.f32.mrb[0].mxu0
        %v3131 = vadd.f32 %v2906, %v3130
        %v3132 = vpop.f32.mrb[0].mxu0
        %3133 = vmatprep.mubr.f32.mxu0 %v2334
        %3134 = vmatmul.mubr.f32.gmra.mrb[0].mxu0 %v2229
        %v3135 = vpop.f32.mrb[0].mxu0
        %v3136 = vadd.f32 %v2911, %v3135
        %v3137 = vpop.f32.mrb[0].mxu0
        %3138 = vmatprep.mubr.f32.mxu0 %v2336
        %3139 = vmatmul.mubr.f32.gmra.mrb[0].mxu0 %v2231
        %v3140 = vpop.f32.mrb[0].mxu0
        %v3141 = vadd.f32 %v2916, %v3140
        %v3142 = vpop.f32.mrb[0].mxu0
        %3143 = vmatprep.mubr.f32.mxu0 %v2339
        %3144 = vmatmul.mubr.f32.gmra.mrb[0].mxu0 %v2234
        %v3145 = vpop.f32.mrb[0].mxu0
        %v3146 = vadd.f32 %v2921, %v3145
        %v3147 = vpop.f32.mrb[0].mxu0
        %3148 = vmatprep.mubr.f32.mxu0 %v2341
        %3149 = vmatmul.mubr.f32.gmra.mrb[0].mxu0 %v2236
        %v3150 = vpop.f32.mrb[0].mxu0
        %v3151 = vadd.f32 %v2926, %v3150
        %v3152 = vpop.f32.mrb[0].mxu0
        %3153 = vmatprep.mubr.f32.mxu0 %v2344
        %3154 = vmatmul.mubr.f32.gmra.mrb[0].mxu0 %v2239
        %v3155 = vpop.f32.mrb[0].mxu0
        %v3156 = vadd.f32 %v2931, %v3155
        %v3157 = vpop.f32.mrb[0].mxu0
        %3158 = vmatprep.mubr.f32.mxu0 %v2346
        %3159 = vmatmul.mubr.f32.gmra.mrb[0].mxu0 %v2241
        %v3160 = vpop.f32.mrb[0].mxu0
        %v3161 = vadd.f32 %v2936, %v3160
        %v3162 = vpop.f32.mrb[0].mxu0
        %3163 = vmatprep.mubr.f32.mxu0 %v2349
        %3164 = vmatmul.mubr.f32.gmra.mrb[0].mxu0 %v2244
        %v3165 = vpop.f32.mrb[0].mxu0
        %v3166 = vadd.f32 %v2941, %v3165
        %v3167 = vpop.f32.mrb[0].mxu0
        %3168 = vmatprep.mubr.f32.mxu0 %v2351
        %3169 = vmatmul.mubr.f32.gmra.mrb[0].mxu0 %v2246
        %v3170 = vpop.f32.mrb[0].mxu0
        %v3171 = vadd.f32 %v2946, %v3170
        %v3172 = vpop.f32.mrb[0].mxu0
        %3173 = vmatprep.mubr.f32.mxu0 %v2354
        %3174 = vmatmul.mubr.f32.gmra.mrb[0].mxu0 %v2249
        %v3175 = vpop.f32.mrb[0].mxu0
        %v3176 = vadd.f32 %v2951, %v3175
        %v3177 = vpop.f32.mrb[0].mxu0
        %3178 = vmatprep.mubr.f32.mxu0 %v2356
        %3179 = vmatmul.mubr.f32.gmra.mrb[0].mxu0 %v2251
        %v3180 = vpop.f32.mrb[0].mxu0
        %v3181 = vadd.f32 %v2956, %v3180
        %v3182 = vpop.f32.mrb[0].mxu0
        %3183 = vmatprep.mubr.f32.mxu0 %v2359
        %3184 = vmatmul.mubr.f32.gmra.mrb[0].mxu0 %v2254
        %v3185 = vpop.f32.mrb[0].mxu0
        %v3186 = vadd.f32 %v2961, %v3185
        %v3187 = vpop.f32.mrb[0].mxu0
        %3188 = vmatprep.mubr.f32.mxu0 %v2361
        %3189 = vmatmul.mubr.f32.gmra.mrb[0].mxu0 %v2256
        %v3190 = vpop.f32.mrb[0].mxu0
        %v3191 = vadd.f32 %v2966, %v3190
        %v3192 = vpop.f32.mrb[0].mxu0
        %3193 = vmatprep.mubr.f32.mxu0 %v2364
        %3194 = vmatmul.mubr.f32.gmra.mrb[0].mxu0 %v2259
        %v3195 = vpop.f32.mrb[0].mxu0
        %v3196 = vadd.f32 %v2971, %v3195
        %v3197 = vpop.f32.mrb[0].mxu0
        %3198 = vmatprep.mubr.f32.mxu0 %v2366
        %3199 = vmatmul.mubr.f32.gmra.mrb[0].mxu0 %v2261
        %v3200 = vpop.f32.mrb[0].mxu0
        %v3201 = vadd.f32 %v2976, %v3200
        %v3202 = vpop.f32.mrb[0].mxu0
        %3203 = vmatprep.mubr.f32.mxu0 %v2369
        %3204 = vmatmul.mubr.f32.gmra.mrb[0].mxu0 %v2264
        %v3205 = vpop.f32.mrb[0].mxu0
        %v3206 = vadd.f32 %v2981, %v3205
        %v3207 = vpop.f32.mrb[0].mxu0
        %3208 = vmatprep.mubr.f32.mxu0 %v2371
        %3209 = vmatmul.mubr.f32.gmra.mrb[0].mxu0 %v2266
        %v3210 = vpop.f32.mrb[0].mxu0
        %v3211 = vadd.f32 %v2986, %v3210
        %v3212 = vpop.f32.mrb[0].mxu0
        %3213 = vmatprep.mubr.f32.mxu0 %v2374
        %3214 = vmatmul.mubr.f32.gmra.mrb[0].mxu0 %v2269
        %v3215 = vpop.f32.mrb[0].mxu0
        %v3216 = vadd.f32 %v2991, %v3215
        %v3217 = vpop.f32.mrb[0].mxu0
        %3218 = vmatprep.mubr.f32.mxu0 %v2376
        %3219 = vmatmul.mubr.f32.gmra.mrb[0].mxu0 %v2271
        %v3220 = vpop.f32.mrb[0].mxu0
        %v3221 = vadd.f32 %v2996, %v3220
        %v3222 = vpop.f32.mrb[0].mxu0
        %3223 = vmatprep.mubr.f32.mxu0 %v2379
        %3224 = vmatmul.mubr.f32.gmra.mrb[0].mxu0 %v2274
        %v3225 = vpop.f32.mrb[0].mxu0
        %v3226 = vadd.f32 %v3001, %v3225
        %v3227 = vpop.f32.mrb[0].mxu0
        %3228 = vmatprep.mubr.f32.mxu0 %v2381
        %3229 = vmatmul.mubr.f32.gmra.mrb[0].mxu0 %v2276
        %v3230 = vpop.f32.mrb[0].mxu0
        %v3231 = vadd.f32 %v3006, %v3230
        %v3232 = vpop.f32.mrb[0].mxu0
        %3233 = vmatprep.mubr.f32.mxu0 %v2384
        %3234 = vmatmul.mubr.f32.gmra.mrb[0].mxu0 %v2279
        %v3235 = vpop.f32.mrb[0].mxu0
        %v3236 = vadd.f32 %v3011, %v3235
        %v3237 = vpop.f32.mrb[0].mxu0
        %3238 = vmatprep.mubr.f32.mxu0 %v2386
        %3239 = vmatmul.mubr.f32.gmra.mrb[0].mxu0 %v2281
        %v3240 = vpop.f32.mrb[0].mxu0
        %v3241 = vadd.f32 %v3016, %v3240
        %v3242 = vpop.f32.mrb[0].mxu0
        %3243 = vmatprep.mubr.f32.mxu0 %v2389
        %3244 = vmatmul.mubr.f32.gmra.mrb[0].mxu0 %v2284
        %v3245 = vpop.f32.mrb[0].mxu0
        %v3246 = vadd.f32 %v3021, %v3245
        %v3247 = vpop.f32.mrb[0].mxu0
        %3248 = vmatprep.mubr.f32.mxu0 %v2391
        %3249 = vmatmul.mubr.f32.gmra.mrb[0].mxu0 %v2286
        %v3250 = vpop.f32.mrb[0].mxu0
        %v3251 = vadd.f32 %v3026, %v3250
        %v3252 = vpop.f32.mrb[0].mxu0
        %3253 = vmatprep.mubr.f32.mxu0 %v2433
        %3254 = vmatmul.mubr.f32.gmra.mrb[0].mxu0 %v2426
        %v3255 = vpop.f32.mrb[0].mxu0
        %v3256 = vadd.f32 %v3031, %v3255
        %v3257 = vpop.f32.mrb[0].mxu0
        %3258 = vmatprep.mubr.f32.mxu0 %v2435
        %3259 = vmatmul.mubr.f32.gmra.mrb[0].mxu0 %v2428
        %v3260 = vpop.f32.mrb[0].mxu0
        %v3261 = vadd.f32 %v3036, %v3260
        %v3262 = vpop.f32.mrb[0].mxu0
        %3263 = vdwg.mxu0
        %3264 = vmatprep.subr.mxu0 0.0
        %3265 = vmatpush1.msra.mxu0 %v2534
        %3266 = vmatprep.subr.mxu0 0.0
        %3267 = vmatpush1.msra.mxu0 %v2535
        %3268 = vmatprep.subr.mxu0 0.0
        %3269 = vmatpush1.msra.mxu0 %v2536
        %3270 = vmatprep.subr.mxu0 0.0
        %3271 = vmatpush1.msra.mxu0 %v2537
        %3272 = vmatprep.subr.mxu0 0.0
        %3273 = vmatpush1.msra.mxu0 %v2538
        %3274 = vmatprep.subr.mxu0 0.0
        %3275 = vmatpush1.msra.mxu0 %v2539
        %3276 = vmatprep.subr.mxu0 0.0
        %3277 = vmatpush1.msra.mxu0 %v2540
        %3278 = vmatprep.subr.mxu0 0.0
        %3279 = vmatpush1.msra.mxu0 %v2541
        %3280 = vmatprep.subr.mxu0 0.0
        %3281 = vmatpush1.msra.mxu0 %v2542
        %3282 = vmatprep.subr.mxu0 0.0
        %3283 = vmatpush1.msra.mxu0 %v2543
        %3284 = vmatprep.subr.mxu0 0.0
        %3285 = vmatpush1.msra.mxu0 %v2544
        %3286 = vmatprep.subr.mxu0 0.0
        %3287 = vmatpush1.msra.mxu0 %v2545
        %3288 = vmatprep.subr.mxu0 0.0
        %3289 = vmatpush1.msra.mxu0 %v2546
        %3290 = vmatprep.subr.mxu0 0.0
        %3291 = vmatpush1.msra.mxu0 %v2547
        %3292 = vmatprep.subr.mxu0 0.0
        %3293 = vmatpush1.msra.mxu0 %v2548
        %3294 = vmatprep.subr.mxu0 0.0
        %3295 = vmatpush1.msra.mxu0 %v2549
        %3296 = vmatprep.subr.mxu0 0.0
        %3297 = vmatpush1.msra.mxu0 %v2550
        %3298 = vmatprep.subr.mxu0 0.0
        %3299 = vmatpush1.msra.mxu0 %v2551
        %3300 = vmatprep.subr.mxu0 0.0
        %3301 = vmatpush1.msra.mxu0 %v2552
        %3302 = vmatprep.subr.mxu0 0.0
        %3303 = vmatpush1.msra.mxu0 %v2553
        %3304 = vmatprep.subr.mxu0 0.0
        %3305 = vmatpush1.msra.mxu0 %v2554
        %3306 = vmatprep.subr.mxu0 0.0
        %3307 = vmatpush1.msra.mxu0 %v2555
        %3308 = vmatprep.subr.mxu0 0.0
        %3309 = vmatpush1.msra.mxu0 %v2556
        %3310 = vmatprep.subr.mxu0 0.0
        %3311 = vmatpush1.msra.mxu0 %v2557
        %3312 = vmatprep.subr.mxu0 0.0
        %3313 = vmatpush1.msra.mxu0 %v2558
        %3314 = vmatprep.subr.mxu0 0.0
        %3315 = vmatpush1.msra.mxu0 %v2559
        %3316 = vmatprep.subr.mxu0 0.0
        %3317 = vmatpush1.msra.mxu0 %v2560
        %3318 = vmatprep.subr.mxu0 0.0
        %3319 = vmatpush1.msra.mxu0 %v2561
        %3320 = vmatprep.subr.mxu0 0.0
        %3321 = vmatpush1.msra.mxu0 %v2562
        %3322 = vmatprep.subr.mxu0 0.0
        %3323 = vmatpush1.msra.mxu0 %v2563
        %3324 = vmatprep.subr.mxu0 0.0
        %3325 = vmatpush1.msra.mxu0 %v2564
        %3326 = vmatprep.subr.mxu0 0.0
        %3327 = vmatpush1.msra.mxu0 %v2565
        %3328 = vmatprep.mubr.f32.mxu0 %v2219
        %3329 = vmatmul.mubr.f32.gmra.mrb[0].mxu0 %v2151
        %v3330 = vpop.f32.mrb[0].mxu0
        %v3331 = vadd.f32 %v3106, %v3330
        %v3332 = vpop.f32.mrb[0].mxu0
        %3333 = vmatprep.mubr.f32.mxu0 %v2221
        %3334 = vmatmul.mubr.f32.gmra.mrb[0].mxu0 %v2059
        %v3335 = vpop.f32.mrb[0].mxu0
        %v3336 = vadd.f32 %v3111, %v3335
        %v3337 = vpop.f32.mrb[0].mxu0
        %3338 = vmatprep.mubr.f32.mxu0 %v2224
        %3339 = vmatmul.mubr.f32.gmra.mrb[0].mxu0 %v2152
        %v3340 = vpop.f32.mrb[0].mxu0
        %v3341 = vadd.f32 %v3116, %v3340
        %v3342 = vpop.f32.mrb[0].mxu0
        %3343 = vmatprep.mubr.f32.mxu0 %v2226
        %3344 = vmatmul.mubr.f32.gmra.mrb[0].mxu0 %v2062
        %v3345 = vpop.f32.mrb[0].mxu0
        %v3346 = vadd.f32 %v3121, %v3345
        %v3347 = vpop.f32.mrb[0].mxu0
        %3348 = vmatprep.mubr.f32.mxu0 %v2229
        %3349 = vmatmul.mubr.f32.gmra.mrb[0].mxu0 %v2153
        %v3350 = vpop.f32.mrb[0].mxu0
        %v3351 = vadd.f32 %v3126, %v3350
        %v3352 = vpop.f32.mrb[0].mxu0
        %3353 = vmatprep.mubr.f32.mxu0 %v2231
        %3354 = vmatmul.mubr.f32.gmra.mrb[0].mxu0 %v2065
        %v3355 = vpop.f32.mrb[0].mxu0
        %v3356 = vadd.f32 %v3131, %v3355
        %v3357 = vpop.f32.mrb[0].mxu0
        %3358 = vmatprep.mubr.f32.mxu0 %v2234
        %3359 = vmatmul.mubr.f32.gmra.mrb[0].mxu0 %v2154
        %v3360 = vpop.f32.mrb[0].mxu0
        %v3361 = vadd.f32 %v3136, %v3360
        %v3362 = vpop.f32.mrb[0].mxu0
        %3363 = vmatprep.mubr.f32.mxu0 %v2236
        %3364 = vmatmul.mubr.f32.gmra.mrb[0].mxu0 %v2068
        %v3365 = vpop.f32.mrb[0].mxu0
        %v3366 = vadd.f32 %v3141, %v3365
        %v3367 = vpop.f32.mrb[0].mxu0
        %3368 = vmatprep.mubr.f32.mxu0 %v2239
        %3369 = vmatmul.mubr.f32.gmra.mrb[0].mxu0 %v2155
        %v3370 = vpop.f32.mrb[0].mxu0
        %v3371 = vadd.f32 %v3146, %v3370
        %v3372 = vpop.f32.mrb[0].mxu0
        %3373 = vmatprep.mubr.f32.mxu0 %v2241
        %3374 = vmatmul.mubr.f32.gmra.mrb[0].mxu0 %v2071
        %v3375 = vpop.f32.mrb[0].mxu0
        %v3376 = vadd.f32 %v3151, %v3375
        %v3377 = vpop.f32.mrb[0].mxu0
        %3378 = vmatprep.mubr.f32.mxu0 %v2244
        %3379 = vmatmul.mubr.f32.gmra.mrb[0].mxu0 %v2156
        %v3380 = vpop.f32.mrb[0].mxu0
        %v3381 = vadd.f32 %v3156, %v3380
        %v3382 = vpop.f32.mrb[0].mxu0
        %3383 = vmatprep.mubr.f32.mxu0 %v2246
        %3384 = vmatmul.mubr.f32.gmra.mrb[0].mxu0 %v2074
        %v3385 = vpop.f32.mrb[0].mxu0
        %v3386 = vadd.f32 %v3161, %v3385
        %v3387 = vpop.f32.mrb[0].mxu0
        %3388 = vmatprep.mubr.f32.mxu0 %v2249
        %3389 = vmatmul.mubr.f32.gmra.mrb[0].mxu0 %v2157
        %v3390 = vpop.f32.mrb[0].mxu0
        %v3391 = vadd.f32 %v3166, %v3390
        %v3392 = vpop.f32.mrb[0].mxu0
        %3393 = vmatprep.mubr.f32.mxu0 %v2251
        %3394 = vmatmul.mubr.f32.gmra.mrb[0].mxu0 %v2077
        %v3395 = vpop.f32.mrb[0].mxu0
        %v3396 = vadd.f32 %v3171, %v3395
        %v3397 = vpop.f32.mrb[0].mxu0
        %3398 = vmatprep.mubr.f32.mxu0 %v2254
        %3399 = vmatmul.mubr.f32.gmra.mrb[0].mxu0 %v2158
        %v3400 = vpop.f32.mrb[0].mxu0
        %v3401 = vadd.f32 %v3176, %v3400
        %v3402 = vpop.f32.mrb[0].mxu0
        %3403 = vmatprep.mubr.f32.mxu0 %v2256
        %3404 = vmatmul.mubr.f32.gmra.mrb[0].mxu0 %v2080
        %v3405 = vpop.f32.mrb[0].mxu0
        %v3406 = vadd.f32 %v3181, %v3405
        %v3407 = vpop.f32.mrb[0].mxu0
        %3408 = vmatprep.mubr.f32.mxu0 %v2259
        %3409 = vmatmul.mubr.f32.gmra.mrb[0].mxu0 %v2159
        %v3410 = vpop.f32.mrb[0].mxu0
        %v3411 = vadd.f32 %v3186, %v3410
        %v3412 = vpop.f32.mrb[0].mxu0
        %3413 = vmatprep.mubr.f32.mxu0 %v2261
        %3414 = vmatmul.mubr.f32.gmra.mrb[0].mxu0 %v2083
        %v3415 = vpop.f32.mrb[0].mxu0
        %v3416 = vadd.f32 %v3191, %v3415
        %v3417 = vpop.f32.mrb[0].mxu0
        %3418 = vmatprep.mubr.f32.mxu0 %v2264
        %3419 = vmatmul.mubr.f32.gmra.mrb[0].mxu0 %v2160
        %v3420 = vpop.f32.mrb[0].mxu0
        %v3421 = vadd.f32 %v3196, %v3420
        %v3422 = vpop.f32.mrb[0].mxu0
        %3423 = vmatprep.mubr.f32.mxu0 %v2266
        %3424 = vmatmul.mubr.f32.gmra.mrb[0].mxu0 %v2086
        %v3425 = vpop.f32.mrb[0].mxu0
        %v3426 = vadd.f32 %v3201, %v3425
        %v3427 = vpop.f32.mrb[0].mxu0
        %3428 = vmatprep.mubr.f32.mxu0 %v2269
        %3429 = vmatmul.mubr.f32.gmra.mrb[0].mxu0 %v2161
        %v3430 = vpop.f32.mrb[0].mxu0
        %v3431 = vadd.f32 %v3206, %v3430
        %v3432 = vpop.f32.mrb[0].mxu0
        %3433 = vmatprep.mubr.f32.mxu0 %v2271
        %3434 = vmatmul.mubr.f32.gmra.mrb[0].mxu0 %v2089
        %v3435 = vpop.f32.mrb[0].mxu0
        %v3436 = vadd.f32 %v3211, %v3435
        %v3437 = vpop.f32.mrb[0].mxu0
        %3438 = vmatprep.mubr.f32.mxu0 %v2274
        %3439 = vmatmul.mubr.f32.gmra.mrb[0].mxu0 %v2162
        %v3440 = vpop.f32.mrb[0].mxu0
        %v3441 = vadd.f32 %v3216, %v3440
        %v3442 = vpop.f32.mrb[0].mxu0
        %3443 = vmatprep.mubr.f32.mxu0 %v2276
        %3444 = vmatmul.mubr.f32.gmra.mrb[0].mxu0 %v2092
        %v3445 = vpop.f32.mrb[0].mxu0
        %v3446 = vadd.f32 %v3221, %v3445
        %v3447 = vpop.f32.mrb[0].mxu0
        %3448 = vmatprep.mubr.f32.mxu0 %v2279
        %3449 = vmatmul.mubr.f32.gmra.mrb[0].mxu0 %v2163
        %v3450 = vpop.f32.mrb[0].mxu0
        %v3451 = vadd.f32 %v3226, %v3450
        %v3452 = vpop.f32.mrb[0].mxu0
        %3453 = vmatprep.mubr.f32.mxu0 %v2281
        %3454 = vmatmul.mubr.f32.gmra.mrb[0].mxu0 %v2095
        %v3455 = vpop.f32.mrb[0].mxu0
        %v3456 = vadd.f32 %v3231, %v3455
        %v3457 = vpop.f32.mrb[0].mxu0
        %3458 = vmatprep.mubr.f32.mxu0 %v2284
        %3459 = vmatmul.mubr.f32.gmra.mrb[0].mxu0 %v2164
        %v3460 = vpop.f32.mrb[0].mxu0
        %v3461 = vadd.f32 %v3236, %v3460
        %v3462 = vpop.f32.mrb[0].mxu0
        %3463 = vmatprep.mubr.f32.mxu0 %v2286
        %3464 = vmatmul.mubr.f32.gmra.mrb[0].mxu0 %v2098
        %v3465 = vpop.f32.mrb[0].mxu0
        %v3466 = vadd.f32 %v3241, %v3465
        %v3467 = vpop.f32.mrb[0].mxu0
        %3468 = vmatprep.mubr.f32.mxu0 %v2426
        %3469 = vmatmul.mubr.f32.gmra.mrb[0].mxu0 %v2165
        %v3470 = vpop.f32.mrb[0].mxu0
        %v3471 = vadd.f32 %v3246, %v3470
        %v3472 = vpop.f32.mrb[0].mxu0
        %3473 = vmatprep.mubr.f32.mxu0 %v2428
        %3474 = vmatmul.mubr.f32.gmra.mrb[0].mxu0 %v2101
        %v3475 = vpop.f32.mrb[0].mxu0
        %v3476 = vadd.f32 %v3251, %v3475
        %v3477 = vpop.f32.mrb[0].mxu0
        %3478 = vmatprep.mubr.f32.mxu0 %v475
        %3479 = vmatmul.mubr.f32.gmra.mrb[0].mxu0 %v406
        %v3480 = vpop.f32.mrb[0].mxu0
        %v3481 = vadd.f32 %v3256, %v3480
        %v3482 = vpop.f32.mrb[0].mxu0
        %3483 = vmatprep.mubr.f32.mxu0 %v477
        %3484 = vmatmul.mubr.f32.gmra.mrb[0].mxu0 %v307
        %v3485 = vpop.f32.mrb[0].mxu0
        %v3486 = vadd.f32 %v3261, %v3485
        %v3487 = vpop.f32.mrb[0].mxu0
        %3488 = vdwg.mxu0
        %3489 = vmatprep.subr.mxu0 0.0
        %3490 = vmatpush1.msra.mxu0 %v2566
        %3491 = vmatprep.subr.mxu0 0.0
        %3492 = vmatpush1.msra.mxu0 %v2567
        %3493 = vmatprep.subr.mxu0 0.0
        %3494 = vmatpush1.msra.mxu0 %v2568
        %3495 = vmatprep.subr.mxu0 0.0
        %3496 = vmatpush1.msra.mxu0 %v2569
        %3497 = vmatprep.subr.mxu0 0.0
        %3498 = vmatpush1.msra.mxu0 %v2570
        %3499 = vmatprep.subr.mxu0 0.0
        %3500 = vmatpush1.msra.mxu0 %v2571
        %3501 = vmatprep.subr.mxu0 0.0
        %3502 = vmatpush1.msra.mxu0 %v2572
        %3503 = vmatprep.subr.mxu0 0.0
        %3504 = vmatpush1.msra.mxu0 %v2573
        %3505 = vmatprep.subr.mxu0 0.0
        %3506 = vmatpush1.msra.mxu0 %v2574
        %3507 = vmatprep.subr.mxu0 0.0
        %3508 = vmatpush1.msra.mxu0 %v2575
        %3509 = vmatprep.subr.mxu0 0.0
        %3510 = vmatpush1.msra.mxu0 %v2576
        %3511 = vmatprep.subr.mxu0 0.0
        %3512 = vmatpush1.msra.mxu0 %v2577
        %3513 = vmatprep.subr.mxu0 0.0
        %3514 = vmatpush1.msra.mxu0 %v2578
        %3515 = vmatprep.subr.mxu0 0.0
        %3516 = vmatpush1.msra.mxu0 %v2579
        %3517 = vmatprep.subr.mxu0 0.0
        %3518 = vmatpush1.msra.mxu0 %v2580
        %3519 = vmatprep.subr.mxu0 0.0
        %3520 = vmatpush1.msra.mxu0 %v2581
        %3521 = vmatprep.subr.mxu0 0.0
        %3522 = vmatpush1.msra.mxu0 0.0
        %3523 = vmatprep.subr.mxu0 0.0
        %3524 = vmatpush1.msra.mxu0 0.0
        %3525 = vmatprep.subr.mxu0 0.0
        %3526 = vmatpush1.msra.mxu0 0.0
        %3527 = vmatprep.subr.mxu0 0.0
        %3528 = vmatpush1.msra.mxu0 0.0
        %3529 = vmatprep.subr.mxu0 0.0
        %3530 = vmatpush1.msra.mxu0 0.0
        %3531 = vmatprep.subr.mxu0 0.0
        %3532 = vmatpush1.msra.mxu0 0.0
        %3533 = vmatprep.subr.mxu0 0.0
        %3534 = vmatpush1.msra.mxu0 0.0
        %3535 = vmatprep.subr.mxu0 0.0
        %3536 = vmatpush1.msra.mxu0 0.0
        %3537 = vmatprep.subr.mxu0 0.0
        %3538 = vmatpush1.msra.mxu0 0.0
        %3539 = vmatprep.subr.mxu0 0.0
        %3540 = vmatpush1.msra.mxu0 0.0
        %3541 = vmatprep.subr.mxu0 0.0
        %3542 = vmatpush1.msra.mxu0 0.0
        %3543 = vmatprep.subr.mxu0 0.0
        %3544 = vmatpush1.msra.mxu0 0.0
        %3545 = vmatprep.subr.mxu0 0.0
        %3546 = vmatpush1.msra.mxu0 0.0
        %3547 = vmatprep.subr.mxu0 0.0
        %3548 = vmatpush1.msra.mxu0 0.0
        %3549 = vmatprep.subr.mxu0 0.0
        %3550 = vmatpush1.msra.mxu0 0.0
        %3551 = vmatprep.subr.mxu0 0.0
        %3552 = vmatpush1.msra.mxu0 0.0
        %3553 = vmatprep.mubr.f32.mxu0 0.0
        %3554 = vmatmul.mubr.f32.gmra.mrb[0].mxu0 %v2324
        %v3555 = vpop.f32.mrb[0].mxu0
        %v3556 = vadd.f32 %v3331, %v3555
        %v3557 = vpop.f32.mrb[0].mxu0
        %3558 = vmatprep.mubr.f32.mxu0 0.0
        %3559 = vmatmul.mubr.f32.gmra.mrb[0].mxu0 %v2326
        %v3560 = vpop.f32.mrb[0].mxu0
        %v3561 = vadd.f32 %v3336, %v3560
        %v3562 = vpop.f32.mrb[0].mxu0
        %3563 = vmatprep.mubr.f32.mxu0 0.0
        %3564 = vmatmul.mubr.f32.gmra.mrb[0].mxu0 %v2329
        %v3565 = vpop.f32.mrb[0].mxu0
        %v3566 = vadd.f32 %v3341, %v3565
        %v3567 = vpop.f32.mrb[0].mxu0
        %3568 = vmatprep.mubr.f32.mxu0 0.0
        %3569 = vmatmul.mubr.f32.gmra.mrb[0].mxu0 %v2331
        %v3570 = vpop.f32.mrb[0].mxu0
        %v3571 = vadd.f32 %v3346, %v3570
        %v3572 = vpop.f32.mrb[0].mxu0
        %3573 = vmatprep.mubr.f32.mxu0 0.0
        %3574 = vmatmul.mubr.f32.gmra.mrb[0].mxu0 %v2334
        %v3575 = vpop.f32.mrb[0].mxu0
        %v3576 = vadd.f32 %v3351, %v3575
        %v3577 = vpop.f32.mrb[0].mxu0
        %3578 = vmatprep.mubr.f32.mxu0 0.0
        %3579 = vmatmul.mubr.f32.gmra.mrb[0].mxu0 %v2336
        %v3580 = vpop.f32.mrb[0].mxu0
        %v3581 = vadd.f32 %v3356, %v3580
        %v3582 = vpop.f32.mrb[0].mxu0
        %3583 = vmatprep.mubr.f32.mxu0 0.0
        %3584 = vmatmul.mubr.f32.gmra.mrb[0].mxu0 %v2339
        %v3585 = vpop.f32.mrb[0].mxu0
        %v3586 = vadd.f32 %v3361, %v3585
        %v3587 = vpop.f32.mrb[0].mxu0
        %3588 = vmatprep.mubr.f32.mxu0 0.0
        %3589 = vmatmul.mubr.f32.gmra.mrb[0].mxu0 %v2341
        %v3590 = vpop.f32.mrb[0].mxu0
        %v3591 = vadd.f32 %v3366, %v3590
        %v3592 = vpop.f32.mrb[0].mxu0
        %3593 = vmatprep.mubr.f32.mxu0 0.0
        %3594 = vmatmul.mubr.f32.gmra.mrb[0].mxu0 %v2344
        %v3595 = vpop.f32.mrb[0].mxu0
        %v3596 = vadd.f32 %v3371, %v3595
        %v3597 = vpop.f32.mrb[0].mxu0
        %3598 = vmatprep.mubr.f32.mxu0 0.0
        %3599 = vmatmul.mubr.f32.gmra.mrb[0].mxu0 %v2346
        %v3600 = vpop.f32.mrb[0].mxu0
        %v3601 = vadd.f32 %v3376, %v3600
        %v3602 = vpop.f32.mrb[0].mxu0
        %3603 = vmatprep.mubr.f32.mxu0 0.0
        %3604 = vmatmul.mubr.f32.gmra.mrb[0].mxu0 %v2349
        %v3605 = vpop.f32.mrb[0].mxu0
        %v3606 = vadd.f32 %v3381, %v3605
        %v3607 = vpop.f32.mrb[0].mxu0
        %3608 = vmatprep.mubr.f32.mxu0 0.0
        %3609 = vmatmul.mubr.f32.gmra.mrb[0].mxu0 %v2351
        %v3610 = vpop.f32.mrb[0].mxu0
        %v3611 = vadd.f32 %v3386, %v3610
        %v3612 = vpop.f32.mrb[0].mxu0
        %3613 = vmatprep.mubr.f32.mxu0 0.0
        %3614 = vmatmul.mubr.f32.gmra.mrb[0].mxu0 %v2354
        %v3615 = vpop.f32.mrb[0].mxu0
        %v3616 = vadd.f32 %v3391, %v3615
        %v3617 = vpop.f32.mrb[0].mxu0
        %3618 = vmatprep.mubr.f32.mxu0 0.0
        %3619 = vmatmul.mubr.f32.gmra.mrb[0].mxu0 %v2356
        %v3620 = vpop.f32.mrb[0].mxu0
        %v3621 = vadd.f32 %v3396, %v3620
        %v3622 = vpop.f32.mrb[0].mxu0
        %3623 = vmatprep.mubr.f32.mxu0 0.0
        %3624 = vmatmul.mubr.f32.gmra.mrb[0].mxu0 %v2359
        %v3625 = vpop.f32.mrb[0].mxu0
        %v3626 = vadd.f32 %v3401, %v3625
        %v3627 = vpop.f32.mrb[0].mxu0
        %3628 = vmatprep.mubr.f32.mxu0 0.0
        %3629 = vmatmul.mubr.f32.gmra.mrb[0].mxu0 %v2361
        %v3630 = vpop.f32.mrb[0].mxu0
        %v3631 = vadd.f32 %v3406, %v3630
        %v3632 = vpop.f32.mrb[0].mxu0
        %3633 = vmatprep.mubr.f32.mxu0 0.0
        %3634 = vmatmul.mubr.f32.gmra.mrb[0].mxu0 %v2364
        %v3635 = vpop.f32.mrb[0].mxu0
        %v3636 = vadd.f32 %v3411, %v3635
        %v3637 = vpop.f32.mrb[0].mxu0
        %3638 = vmatprep.mubr.f32.mxu0 0.0
        %3639 = vmatmul.mubr.f32.gmra.mrb[0].mxu0 %v2366
        %v3640 = vpop.f32.mrb[0].mxu0
        %v3641 = vadd.f32 %v3416, %v3640
        %v3642 = vpop.f32.mrb[0].mxu0
        %3643 = vmatprep.mubr.f32.mxu0 0.0
        %3644 = vmatmul.mubr.f32.gmra.mrb[0].mxu0 %v2369
        %v3645 = vpop.f32.mrb[0].mxu0
        %v3646 = vadd.f32 %v3421, %v3645
        %v3647 = vpop.f32.mrb[0].mxu0
        %3648 = vmatprep.mubr.f32.mxu0 0.0
        %3649 = vmatmul.mubr.f32.gmra.mrb[0].mxu0 %v2371
        %v3650 = vpop.f32.mrb[0].mxu0
        %v3651 = vadd.f32 %v3426, %v3650
        %v3652 = vpop.f32.mrb[0].mxu0
        %3653 = vmatprep.mubr.f32.mxu0 0.0
        %3654 = vmatmul.mubr.f32.gmra.mrb[0].mxu0 %v2374
        %v3655 = vpop.f32.mrb[0].mxu0
        %v3656 = vadd.f32 %v3431, %v3655
        %v3657 = vpop.f32.mrb[0].mxu0
        %3658 = vmatprep.mubr.f32.mxu0 0.0
        %3659 = vmatmul.mubr.f32.gmra.mrb[0].mxu0 %v2376
        %v3660 = vpop.f32.mrb[0].mxu0
        %v3661 = vadd.f32 %v3436, %v3660
        %v3662 = vpop.f32.mrb[0].mxu0
        %3663 = vmatprep.mubr.f32.mxu0 0.0
        %3664 = vmatmul.mubr.f32.gmra.mrb[0].mxu0 %v2379
        %v3665 = vpop.f32.mrb[0].mxu0
        %v3666 = vadd.f32 %v3441, %v3665
        %v3667 = vpop.f32.mrb[0].mxu0
        %3668 = vmatprep.mubr.f32.mxu0 0.0
        %3669 = vmatmul.mubr.f32.gmra.mrb[0].mxu0 %v2381
        %v3670 = vpop.f32.mrb[0].mxu0
        %v3671 = vadd.f32 %v3446, %v3670
        %v3672 = vpop.f32.mrb[0].mxu0
        %3673 = vmatprep.mubr.f32.mxu0 0.0
        %3674 = vmatmul.mubr.f32.gmra.mrb[0].mxu0 %v2384
        %v3675 = vpop.f32.mrb[0].mxu0
        %v3676 = vadd.f32 %v3451, %v3675
        %v3677 = vpop.f32.mrb[0].mxu0
        %3678 = vmatprep.mubr.f32.mxu0 0.0
        %3679 = vmatmul.mubr.f32.gmra.mrb[0].mxu0 %v2386
        %v3680 = vpop.f32.mrb[0].mxu0
        %v3681 = vadd.f32 %v3456, %v3680
        %v3682 = vpop.f32.mrb[0].mxu0
        %3683 = vmatprep.mubr.f32.mxu0 0.0
        %3684 = vmatmul.mubr.f32.gmra.mrb[0].mxu0 %v2389
        %v3685 = vpop.f32.mrb[0].mxu0
        %v3686 = vadd.f32 %v3461, %v3685
        %v3687 = vpop.f32.mrb[0].mxu0
        %3688 = vmatprep.mubr.f32.mxu0 0.0
        %3689 = vmatmul.mubr.f32.gmra.mrb[0].mxu0 %v2391
        %v3690 = vpop.f32.mrb[0].mxu0
        %v3691 = vadd.f32 %v3466, %v3690
        %v3692 = vpop.f32.mrb[0].mxu0
        %3693 = vmatprep.mubr.f32.mxu0 0.0
        %3694 = vmatmul.mubr.f32.gmra.mrb[0].mxu0 %v2433
        %v3695 = vpop.f32.mrb[0].mxu0
        %v3696 = vadd.f32 %v3471, %v3695
        %v3697 = vpop.f32.mrb[0].mxu0
        %3698 = vmatprep.mubr.f32.mxu0 0.0
        %3699 = vmatmul.mubr.f32.gmra.mrb[0].mxu0 %v2435
        %v3700 = vpop.f32.mrb[0].mxu0
        %v3701 = vadd.f32 %v3476, %v3700
        %v3702 = vpop.f32.mrb[0].mxu0
        %3703 = vmatprep.mubr.f32.mxu0 0.0
        %3704 = vmatmul.mubr.f32.gmra.mrb[0].mxu0 %v588
        %v3705 = vpop.f32.mrb[0].mxu0
        %v3706 = vadd.f32 %v3481, %v3705
        %v3707 = vpop.f32.mrb[0].mxu0
        %3708 = vmatprep.mubr.f32.mxu0 0.0
        %3709 = vmatmul.mubr.f32.gmra.mrb[0].mxu0 %v590
        %v3710 = vpop.f32.mrb[0].mxu0
        %v3711 = vadd.f32 %v3486, %v3710
        %v3712 = vpop.f32.mrb[0].mxu0
        %3713 = vdwg.mxu0
        %v3714 = vmax.f32 %v3556, 0.0
        %v3715 = vmax.f32 %v3561, 0.0
        %v3716 = vmax.f32 %v3566, 0.0
        %v3717 = vmax.f32 %v3571, 0.0
        %v3718 = vmax.f32 %v3576, 0.0
        %v3719 = vmax.f32 %v3581, 0.0
        %v3720 = vmax.f32 %v3586, 0.0
        %v3721 = vmax.f32 %v3591, 0.0
        %v3722 = vmax.f32 %v3596, 0.0
        %v3723 = vmax.f32 %v3601, 0.0
        %v3724 = vmax.f32 %v3606, 0.0
        %v3725 = vmax.f32 %v3611, 0.0
        %v3726 = vmax.f32 %v3616, 0.0
        %v3727 = vmax.f32 %v3621, 0.0
        %v3728 = vmax.f32 %v3626, 0.0
        %v3729 = vmax.f32 %v3631, 0.0
        %v3730 = vmax.f32 %v3636, 0.0
        %v3731 = vmax.f32 %v3641, 0.0
        %v3732 = vmax.f32 %v3646, 0.0
        %v3733 = vmax.f32 %v3651, 0.0
        %v3734 = vmax.f32 %v3656, 0.0
        %v3735 = vmax.f32 %v3661, 0.0
        %v3736 = vmax.f32 %v3666, 0.0
        %v3737 = vmax.f32 %v3671, 0.0
        %v3738 = vmax.f32 %v3676, 0.0
        %v3739 = vmax.f32 %v3681, 0.0
        %v3740 = vmax.f32 %v3686, 0.0
        %v3741 = vmax.f32 %v3691, 0.0
        %v3742 = vmax.f32 %v3696, 0.0
        %v3743 = vmax.f32 %v3701, 0.0
        %v3744 = vmax.f32 %v3706, 0.0
        %v3745 = vmax.f32 %v3711, 0.0
        %v3746 = vmax.f32 %v3714, %v3716
        %v3747 = vmax.f32 %v3715, %v3717
        %v3748 = vmax.f32 %v3718, %v3720
        %v3749 = vmax.f32 %v3719, %v3721
        %v3750 = vmax.f32 %v3722, %v3724
        %v3751 = vmax.f32 %v3723, %v3725
        %v3752 = vmax.f32 %v3726, %v3728
        %v3753 = vmax.f32 %v3727, %v3729
        %v3754 = vmax.f32 %v3730, %v3732
        %v3755 = vmax.f32 %v3731, %v3733
        %v3756 = vmax.f32 %v3734, %v3736
        %v3757 = vmax.f32 %v3735, %v3737
        %v3758 = vmax.f32 %v3738, %v3740
        %v3759 = vmax.f32 %v3739, %v3741
        %v3760 = vmax.f32 %v3742, %v3744
        %v3761 = vmax.f32 %v3743, %v3745
        %3762 = vst [vmem:[#allocation2] sm:$0xff] %v3746
        %3763 = vst [vmem:[#allocation2 + $0x8] sm:$0xff] %v3747
        %3764 = vst [vmem:[#allocation2 + $0x10] sm:$0xff] %v3748
        %3765 = vst [vmem:[#allocation2 + $0x18] sm:$0xff] %v3749
        %3766 = vst [vmem:[#allocation2 + $0x20] sm:$0xff] %v3750
        %3767 = vst [vmem:[#allocation2 + $0x28] sm:$0xff] %v3751
        %3768 = vst [vmem:[#allocation2 + $0x30] sm:$0xff] %v3752
        %3769 = vst [vmem:[#allocation2 + $0x38] sm:$0xff] %v3753
        %3770 = vst [vmem:[#allocation2 + $0x40] sm:$0xff] %v3754
        %3771 = vst [vmem:[#allocation2 + $0x48] sm:$0xff] %v3755
        %3772 = vst [vmem:[#allocation2 + $0x50] sm:$0xff] %v3756
        %3773 = vst [vmem:[#allocation2 + $0x58] sm:$0xff] %v3757
        %3774 = vst [vmem:[#allocation2 + $0x60] sm:$0xff] %v3758
        %3775 = vst [vmem:[#allocation2 + $0x68] sm:$0xff] %v3759
        %3776 = vst [vmem:[#allocation2 + $0x70] sm:$0xff] %v3760
        %3777 = vst [vmem:[#allocation2 + $0x78] sm:$0xff] %v3761
        %v3778 = vld [vmem:[#allocation2] ss:$2 sm:$0xff]
        %s3779 = scalar_lea.vmem [#allocation2], 16
        %v3780 = vld [vmem:[%s3779] ss:$2 sm:$0xff]
        %s3781 = scalar_lea.vmem [#allocation2], 32
        %v3782 = vld [vmem:[%s3781] ss:$2 sm:$0xff]
        %s3783 = scalar_lea.vmem [#allocation2], 48
        %v3784 = vld [vmem:[%s3783] ss:$2 sm:$0xff]
        %s3785 = scalar_lea.vmem [#allocation2], 64
        %v3786 = vld [vmem:[%s3785] ss:$2 sm:$0xff]
        %s3787 = scalar_lea.vmem [#allocation2], 80
        %v3788 = vld [vmem:[%s3787] ss:$2 sm:$0xff]
        %s3789 = scalar_lea.vmem [#allocation2], 96
        %v3790 = vld [vmem:[%s3789] ss:$2 sm:$0xff]
        %s3791 = scalar_lea.vmem [#allocation2], 112
        %v3792 = vld [vmem:[%s3791] ss:$2 sm:$0xff]
        %s3793 = scalar_lea.vmem [#allocation2], 1
        %v3794 = vld [vmem:[%s3793] ss:$2 sm:$0xff]
        %s3795 = scalar_lea.vmem [#allocation2], 17
        %v3796 = vld [vmem:[%s3795] ss:$2 sm:$0xff]
        %s3797 = scalar_lea.vmem [#allocation2], 33
        %v3798 = vld [vmem:[%s3797] ss:$2 sm:$0xff]
        %s3799 = scalar_lea.vmem [#allocation2], 49
        %v3800 = vld [vmem:[%s3799] ss:$2 sm:$0xff]
        %s3801 = scalar_lea.vmem [#allocation2], 65
        %v3802 = vld [vmem:[%s3801] ss:$2 sm:$0xff]
        %s3803 = scalar_lea.vmem [#allocation2], 81
        %v3804 = vld [vmem:[%s3803] ss:$2 sm:$0xff]
        %s3805 = scalar_lea.vmem [#allocation2], 97
        %v3806 = vld [vmem:[%s3805] ss:$2 sm:$0xff]
        %s3807 = scalar_lea.vmem [#allocation2], 113
        %v3808 = vld [vmem:[%s3807] ss:$2 sm:$0xff]
        %v3809 = vmax.f32 %v3778, %v3794
        %v3810 = vmax.f32 %v3780, %v3796
        %v3811 = vmax.f32 %v3782, %v3798
        %v3812 = vmax.f32 %v3784, %v3800
        %v3813 = vmax.f32 %v3786, %v3802
        %v3814 = vmax.f32 %v3788, %v3804
        %v3815 = vmax.f32 %v3790, %v3806
        %v3816 = vmax.f32 %v3792, %v3808
        %3817 = vst [vmem:[%s239] sm:$0xff] %v3809
        %3818 = vst [vmem:[%s239 + $0x8] sm:$0xff] %v3810
        %3819 = vst [vmem:[%s239 + $0x10] sm:$0xff] %v3811
        %3820 = vst [vmem:[%s239 + $0x18] sm:$0xff] %v3812
        %3821 = vst [vmem:[%s239 + $0x20] sm:$0xff] %v3813
        %3822 = vst [vmem:[%s239 + $0x28] sm:$0xff] %v3814
        %3823 = vst [vmem:[%s239 + $0x30] sm:$0xff] %v3815
        %3824 = vst [vmem:[%s239 + $0x38] sm:$0xff] %v3816
        %p3825 = scmp.lt.s32.totalorder %s17, 1
        %s3826 = scalar_select %p3825, %s17, 1
        %s3827 = smul.addr %s3826, 8
        %s3828 = smul.addr %s3827, 8
        %s3829 = scalar_lea.vmem %s5, %s3828
        // Predicated region
        $region45: #{conv_block_forward.1} parent=39 // pred_check
          %p3830 = pneg %p145
        $region46: #{conv_block_forward.1} parent=39 // pred_check_branch
          %3832 = sbr.rel (%p3830) target = $region48
        $region47: #{conv_block_forward.1} parent=39 // pred_region
          _
        $region48: #{conv_block_forward.1} parent=39 // pred_fallthru
          _
      $region40: #{conv_block_forward.1} parent=5 // pred_fallthru
        _
      %p3833 = scmp.le.s32.totalorder 2, %s12
      // Predicated region
      $region49: #{conv_block_forward.1} parent=5 // pred_check
        %p3834 = pneg %p3833
      $region50: #{conv_block_forward.1} parent=5 // pred_check_branch
        %3836 = sbr.rel (%p3834) target = $region52
      $region51: #{conv_block_forward.1} parent=5 // pred_region
        %s3837 = ssub.s32 %s12, 2
        // Predicated region
        $region53: #{conv_block_forward.1} parent=51 // pred_check
          %p3838 = pneg %p151
        $region54: #{conv_block_forward.1} parent=51 // pred_check_branch
          %3840 = sbr.rel (%p3838) target = $region56
        $region55: #{conv_block_forward.1} parent=51 // pred_region
          %p3841 = scmp.lt.s32.totalorder %s18, 1
          %s3842 = scalar_select %p3841, %s18, 1
          %s3843 = smul.addr %s3842, 8
          %s3844 = smul.addr %s3843, 8
          %s3845 = scalar_lea.vmem %s5, %s3844
        $region56: #{conv_block_forward.1} parent=51 // pred_fallthru
          _
      $region52: #{conv_block_forward.1} parent=5 // pred_fallthru
        _
    $region6: #{conv_block_forward.1} parent=1 // loop_footer
      %s16 = sadd.s32 1, %s12
    $region7: #{conv_block_forward.1} parent=1 // loop_footer_branch
      %11 = sbr.rel target = $region3
    $region8: #{conv_block_forward.1} parent=1 // loop_exit
      _
    %3846 = vsyncpa [#allocation4], 1
    %s3847 = scalar_lea.sflag [#allocation4], 1
    %3848 = vsyncpa %s3847, 1

</llo_original>
